<compile_context>
chip_gen: v6e
topology: v6e:2x2x1
jax: 0.10.0
libtpu: 0.0.40
codegen_flags: <defaults>
</compile_context>

<pallas_src>
import jax
import jax.numpy as jnp
from jax.experimental import pallas as pl
from jax.experimental.pallas import tpu as pltpu


def birnn_kernel(proj_ref, whh_ref, out_ref, h_ref):
    """One (batch_tile, time_tile) block of the fused bidirectional recurrence.

    proj_ref: (BT, T, 2Hp)  precomputed x @ [Wih_f|Wih_b] + [b_f|b_b]  (VMEM)
    whh_ref : (2Hp, 2Hp)    block_diag(Whh_f, Whh_b), zero-padded       (VMEM)
    out_ref : (BT, T, 2Hp)  per-step hidden state, both directions      (VMEM)
    h_ref   : (BT, 2Hp)     hidden state carried across time tiles      (scratch)
    """
    t_tile = pl.program_id(1)

    @pl.when(t_tile == 0)
    def _():
        h_ref[...] = jnp.zeros_like(h_ref)

    whh = whh_ref[...]          # hoisted: loaded once per grid step
    h = h_ref[...]
    T = proj_ref.shape[1]

    # Fully unrolled over the (small, static) time tile: the only serial work
    # left per timestep is one (BT, 2Hp) x (2Hp, 2Hp) MXU matmul + tanh + add.
    for t in range(T):
        h = jnp.tanh(
            proj_ref[:, t, :]
            + jnp.dot(h, whh, preferred_element_type=jnp.float32)
        )
        out_ref[:, t, :] = h.astype(out_ref.dtype)

    h_ref[...] = h


def birnn_pallas(x, wih_f, whh_f, b_f, wih_b, whh_b, b_b, *, t_block=8, b_block=None):
    """x: (B, S, F) float32. Returns (B, S, 2H) float32 = [fwd | bwd] per step."""
    B, S, F = x.shape
    H = whh_f.shape[0]
    H2 = 2 * H
    # Pad fused hidden width to a lane-dense multiple of 128 (layout only; the
    # extra lanes are zero through the whole recurrence and sliced off below).
    H2p = max(128, ((H2 + 127) // 128) * 128)

    # ---- (1) hoisted input projection: one large GEMM, bias folded in ----
    wih = jnp.concatenate([wih_f, wih_b], axis=1)                 # (F, 2H)
    bias = jnp.concatenate([b_f.reshape(-1), b_b.reshape(-1)])    # (2H,)
    proj = jnp.dot(x.reshape(B * S, F), wih,
                   precision=jax.lax.Precision.HIGHEST) + bias
    proj = proj.reshape(B, S, H2)                                 # (B, S, 2H)
    if H2p != H2:
        proj = jnp.pad(proj, ((0, 0), (0, 0), (0, H2p - H2)))     # (B, S, 2Hp)

    # ---- (2) fused block-diagonal recurrent weight (one matmul / step) ----
    whh = jnp.zeros((H2p, H2p), jnp.float32)
    whh = whh.at[:H, :H].set(whh_f)
    whh = whh.at[H:H2, H:H2].set(whh_b)

    # ---- (4) timestep blocking (sublane-tile aligned), pad tail if needed ----
    if t_block >= S:
        t_block = S            # block equals full dim -> always legal
    else:
        t_block = max(8, (t_block // 8) * 8)
    n_t = pl.cdiv(S, t_block)
    S_pad = n_t * t_block
    if S_pad != S:
        proj = jnp.pad(proj, ((0, 0), (0, S_pad - S), (0, 0)))

    # ---- (6) batch tiling (parallel axis; megacore-shardable on v7x) ----
    if b_block is None or b_block > B:
        b_block = B
    assert B % b_block == 0, "batch must be divisible by b_block"
    n_b = B // b_block

    grid_spec = pltpu.PrefetchScalarGridSpec(
        num_scalar_prefetch=0,
        grid=(n_b, n_t),
        in_specs=[
            pl.BlockSpec((b_block, t_block, H2p), lambda b, t: (b, t, 0)),  # proj
            pl.BlockSpec((H2p, H2p), lambda b, t: (0, 0)),                  # W_hh
        ],
        out_specs=pl.BlockSpec((b_block, t_block, H2p), lambda b, t: (b, t, 0)),
        scratch_shapes=[
            pltpu.VMEM((b_block, H2p), jnp.float32),  # carried fused state
        ],
    )

    out = pl.pallas_call(
        birnn_kernel,
        out_shape=jax.ShapeDtypeStruct((B, S_pad, H2p), jnp.float32),
        grid_spec=grid_spec,
        compiler_params=pltpu.CompilerParams(
            dimension_semantics=("parallel", "arbitrary"),
        ),
    )(proj, whh)

    return out[:, :S, :H2]


def birnn_ref(x, wih_f, whh_f, b_f, wih_b, whh_b, b_b):
    """Plain-JAX reference mirroring the PyTorch BiRNN forward."""
    B, S, F = x.shape
    H = whh_f.shape[0]
    hf = jnp.zeros((B, H), jnp.float32)
    hb = jnp.zeros((B, H), jnp.float32)
    outs = []
    for t in range(S):
        x_t = x[:, t, :]
        hf = jnp.tanh(x_t @ wih_f + hf @ whh_f + b_f)
        hb = jnp.tanh(x_t @ wih_b + hb @ whh_b + b_b)
        outs.append(jnp.concatenate([hf, hb], axis=-1))
    return jnp.stack(outs, axis=1)  # (B, S, 2H)


if __name__ == "__main__":
    # Keep f32 matmuls at full precision so the Pallas path and the reference
    # agree to tight tolerances.
    jax.config.update("jax_default_matmul_precision", "highest")

    B, S, F, H = 2, 16, 16, 32  # batch, seq, input_dim, hidden_dim

    key = jax.random.PRNGKey(0)
    k_x, k1, k2, k3, k4, k5, k6 = jax.random.split(key, 7)

    bound = 1.0 / (H ** 0.5)  # PyTorch RNNCell-style uniform init
    x = jax.random.normal(k_x, (B, S, F), dtype=jnp.float32)
    wih_f = jax.random.uniform(k1, (F, H), jnp.float32, -bound, bound)
    whh_f = jax.random.uniform(k2, (H, H), jnp.float32, -bound, bound)
    b_f = jax.random.uniform(k3, (1, H), jnp.float32, -bound, bound)
    wih_b = jax.random.uniform(k4, (F, H), jnp.float32, -bound, bound)
    whh_b = jax.random.uniform(k5, (H, H), jnp.float32, -bound, bound)
    b_b = jax.random.uniform(k6, (1, H), jnp.float32, -bound, bound)

    # t_block=8 with S=16 -> grid=(1, 2): exercises state carry across grid steps.
    out = birnn_pallas(x, wih_f, whh_f, b_f, wih_b, whh_b, b_b, t_block=8)
    out = jax.block_until_ready(out)

    ref = birnn_ref(x, wih_f, whh_f, b_f, wih_b, whh_b, b_b)
    assert out.shape == (B, S, 2 * H), out.shape
    assert jnp.allclose(out, ref, atol=1e-5, rtol=1e-5), \
        float(jnp.max(jnp.abs(out - ref)))

    print("KERNEL_OK")
</pallas_src>

<mosaic_0001>
module attributes {stable_mosaic.version = 11 : i64} {
  func.func @birnn_kernel(%arg0: i32, %arg1: i32, %arg2: memref<2x8x128xf32, #tpu.memory_space<vmem>>, %arg3: memref<128x128xf32, #tpu.memory_space<vmem>>, %arg4: memref<2x8x128xf32, #tpu.memory_space<vmem>>, %arg5: memref<2x128xf32, #tpu.memory_space<vmem>>) attributes {dimension_semantics = [#tpu.dimension_semantics<parallel>, #tpu.dimension_semantics<arbitrary>], iteration_bounds = array<i64: 1, 2>, scalar_prefetch = 0 : i64, scratch_operands = 1 : i64, tpu.core_type = #tpu.core_type<tc>, window_params = [{transform_indices = @transform_0, window_bounds = array<i64: 2, 8, 128>}, {pipeline_mode = #tpu.pipeline_mode<synchronous>, transform_indices = @transform_1, window_bounds = array<i64: 128, 128>}, {transform_indices = @transform_2, window_bounds = array<i64: 2, 8, 128>}]} {
    %c0_i32 = arith.constant 0 : i32
    %0 = arith.cmpi eq, %arg1, %c0_i32 : i32
    %1 = arith.extui %0 : i1 to i32
    %c0_i32_0 = arith.constant 0 : i32
    %2 = arith.cmpi ne, %1, %c0_i32_0 : i32
    scf.if %2 {
      %cst_54 = arith.constant 0.000000e+00 : f32
      %70 = vector.broadcast %cst_54 : f32 to vector<2x128xf32>
      %c0_55 = arith.constant 0 : index
      %c0_56 = arith.constant 0 : index
      %71 = vector.load %arg5[%c0_55, %c0_56] : memref<2x128xf32, #tpu.memory_space<vmem>>, vector<2x128xf32>
      tpu.vector_store %arg5[%c0_55, %c0_56], %70 {strides = array<i32>} : memref<2x128xf32, #tpu.memory_space<vmem>>, vector<2x128xf32>,
    } else {
    }
    %c0 = arith.constant 0 : index
    %c0_1 = arith.constant 0 : index
    %3 = vector.load %arg3[%c0, %c0_1] : memref<128x128xf32, #tpu.memory_space<vmem>>, vector<128x128xf32>
    %c0_2 = arith.constant 0 : index
    %c0_3 = arith.constant 0 : index
    %4 = vector.load %arg5[%c0_2, %c0_3] : memref<2x128xf32, #tpu.memory_space<vmem>>, vector<2x128xf32>
    %c0_4 = arith.constant 0 : index
    %c0_5 = arith.constant 0 : index
    %c0_6 = arith.constant 0 : index
    %5 = vector.load %arg2[%c0_4, %c0_5, %c0_6] : memref<2x8x128xf32, #tpu.memory_space<vmem>>, vector<2x1x128xf32>
    %6 = vector.shape_cast %5 : vector<2x1x128xf32> to vector<2x128xf32>
    %cst = arith.constant dense<0.000000e+00> : vector<2x128xf32>
    %7 = tpu.matmul %4, %3, %cst {dimension_numbers = #tpu.dot_dimension_numbers<[1], [0], [0], [1], [0, 0, 1, 1], [], []>, precision = #tpu.contract_precision<fp32>} : vector<2x128xf32>, vector<128x128xf32>, vector<2x128xf32> -> vector<2x128xf32>
    %8 = arith.addf %6, %7 : vector<2x128xf32>
    %9 = math.tanh %8 : vector<2x128xf32>
    %c0_7 = arith.constant 0 : index
    %c0_8 = arith.constant 0 : index
    %c0_9 = arith.constant 0 : index
    %10 = vector.load %arg4[%c0_7, %c0_8, %c0_9] : memref<2x8x128xf32, #tpu.memory_space<vmem>>, vector<2x1x128xf32>
    %11 = vector.shape_cast %10 : vector<2x1x128xf32> to vector<2x128xf32>
    %12 = vector.shape_cast %9 : vector<2x128xf32> to vector<2x1x128xf32>
    tpu.vector_store %arg4[%c0_7, %c0_8, %c0_9], %12 {strides = array<i32>} : memref<2x8x128xf32, #tpu.memory_space<vmem>>, vector<2x1x128xf32>,
    %c0_10 = arith.constant 0 : index
    %c1 = arith.constant 1 : index
    %c0_11 = arith.constant 0 : index
    %13 = vector.load %arg2[%c0_10, %c1, %c0_11] : memref<2x8x128xf32, #tpu.memory_space<vmem>>, vector<2x1x128xf32>
    %14 = vector.shape_cast %13 : vector<2x1x128xf32> to vector<2x128xf32>
    %cst_12 = arith.constant dense<0.000000e+00> : vector<2x128xf32>
    %15 = tpu.matmul %9, %3, %cst_12 {dimension_numbers = #tpu.dot_dimension_numbers<[1], [0], [0], [1], [0, 0, 1, 1], [], []>, precision = #tpu.contract_precision<fp32>} : vector<2x128xf32>, vector<128x128xf32>, vector<2x128xf32> -> vector<2x128xf32>
    %16 = arith.addf %14, %15 : vector<2x128xf32>
    %17 = math.tanh %16 : vector<2x128xf32>
    %c0_13 = arith.constant 0 : index
    %c1_14 = arith.constant 1 : index
    %c0_15 = arith.constant 0 : index
    %18 = vector.load %arg4[%c0_13, %c1_14, %c0_15] : memref<2x8x128xf32, #tpu.memory_space<vmem>>, vector<2x1x128xf32>
    %19 = vector.shape_cast %18 : vector<2x1x128xf32> to vector<2x128xf32>
    %20 = vector.shape_cast %17 : vector<2x128xf32> to vector<2x1x128xf32>
    tpu.vector_store %arg4[%c0_13, %c1_14, %c0_15], %20 {strides = array<i32>} : memref<2x8x128xf32, #tpu.memory_space<vmem>>, vector<2x1x128xf32>,
    %c0_16 = arith.constant 0 : index
    %c2 = arith.constant 2 : index
    %c0_17 = arith.constant 0 : index
    %21 = vector.load %arg2[%c0_16, %c2, %c0_17] : memref<2x8x128xf32, #tpu.memory_space<vmem>>, vector<2x1x128xf32>
    %22 = vector.shape_cast %21 : vector<2x1x128xf32> to vector<2x128xf32>
    %cst_18 = arith.constant dense<0.000000e+00> : vector<2x128xf32>
    %23 = tpu.matmul %17, %3, %cst_18 {dimension_numbers = #tpu.dot_dimension_numbers<[1], [0], [0], [1], [0, 0, 1, 1], [], []>, precision = #tpu.contract_precision<fp32>} : vector<2x128xf32>, vector<128x128xf32>, vector<2x128xf32> -> vector<2x128xf32>
    %24 = arith.addf %22, %23 : vector<2x128xf32>
    %25 = math.tanh %24 : vector<2x128xf32>
    %c0_19 = arith.constant 0 : index
    %c2_20 = arith.constant 2 : index
    %c0_21 = arith.constant 0 : index
    %26 = vector.load %arg4[%c0_19, %c2_20, %c0_21] : memref<2x8x128xf32, #tpu.memory_space<vmem>>, vector<2x1x128xf32>
    %27 = vector.shape_cast %26 : vector<2x1x128xf32> to vector<2x128xf32>
    %28 = vector.shape_cast %25 : vector<2x128xf32> to vector<2x1x128xf32>
    tpu.vector_store %arg4[%c0_19, %c2_20, %c0_21], %28 {strides = array<i32>} : memref<2x8x128xf32, #tpu.memory_space<vmem>>, vector<2x1x128xf32>,
    %c0_22 = arith.constant 0 : index
    %c3 = arith.constant 3 : index
    %c0_23 = arith.constant 0 : index
    %29 = vector.load %arg2[%c0_22, %c3, %c0_23] : memref<2x8x128xf32, #tpu.memory_space<vmem>>, vector<2x1x128xf32>
    %30 = vector.shape_cast %29 : vector<2x1x128xf32> to vector<2x128xf32>
    %cst_24 = arith.constant dense<0.000000e+00> : vector<2x128xf32>
    %31 = tpu.matmul %25, %3, %cst_24 {dimension_numbers = #tpu.dot_dimension_numbers<[1], [0], [0], [1], [0, 0, 1, 1], [], []>, precision = #tpu.contract_precision<fp32>} : vector<2x128xf32>, vector<128x128xf32>, vector<2x128xf32> -> vector<2x128xf32>
    %32 = arith.addf %30, %31 : vector<2x128xf32>
    %33 = math.tanh %32 : vector<2x128xf32>
    %c0_25 = arith.constant 0 : index
    %c3_26 = arith.constant 3 : index
    %c0_27 = arith.constant 0 : index
    %34 = vector.load %arg4[%c0_25, %c3_26, %c0_27] : memref<2x8x128xf32, #tpu.memory_space<vmem>>, vector<2x1x128xf32>
    %35 = vector.shape_cast %34 : vector<2x1x128xf32> to vector<2x128xf32>
    %36 = vector.shape_cast %33 : vector<2x128xf32> to vector<2x1x128xf32>
    tpu.vector_store %arg4[%c0_25, %c3_26, %c0_27], %36 {strides = array<i32>} : memref<2x8x128xf32, #tpu.memory_space<vmem>>, vector<2x1x128xf32>,
    %c0_28 = arith.constant 0 : index
    %c4 = arith.constant 4 : index
    %c0_29 = arith.constant 0 : index
    %37 = vector.load %arg2[%c0_28, %c4, %c0_29] : memref<2x8x128xf32, #tpu.memory_space<vmem>>, vector<2x1x128xf32>
    %38 = vector.shape_cast %37 : vector<2x1x128xf32> to vector<2x128xf32>
    %cst_30 = arith.constant dense<0.000000e+00> : vector<2x128xf32>
    %39 = tpu.matmul %33, %3, %cst_30 {dimension_numbers = #tpu.dot_dimension_numbers<[1], [0], [0], [1], [0, 0, 1, 1], [], []>, precision = #tpu.contract_precision<fp32>} : vector<2x128xf32>, vector<128x128xf32>, vector<2x128xf32> -> vector<2x128xf32>
    %40 = arith.addf %38, %39 : vector<2x128xf32>
    %41 = math.tanh %40 : vector<2x128xf32>
    %c0_31 = arith.constant 0 : index
    %c4_32 = arith.constant 4 : index
    %c0_33 = arith.constant 0 : index
    %42 = vector.load %arg4[%c0_31, %c4_32, %c0_33] : memref<2x8x128xf32, #tpu.memory_space<vmem>>, vector<2x1x128xf32>
    %43 = vector.shape_cast %42 : vector<2x1x128xf32> to vector<2x128xf32>
    %44 = vector.shape_cast %41 : vector<2x128xf32> to vector<2x1x128xf32>
    tpu.vector_store %arg4[%c0_31, %c4_32, %c0_33], %44 {strides = array<i32>} : memref<2x8x128xf32, #tpu.memory_space<vmem>>, vector<2x1x128xf32>,
    %c0_34 = arith.constant 0 : index
    %c5 = arith.constant 5 : index
    %c0_35 = arith.constant 0 : index
    %45 = vector.load %arg2[%c0_34, %c5, %c0_35] : memref<2x8x128xf32, #tpu.memory_space<vmem>>, vector<2x1x128xf32>
    %46 = vector.shape_cast %45 : vector<2x1x128xf32> to vector<2x128xf32>
    %cst_36 = arith.constant dense<0.000000e+00> : vector<2x128xf32>
    %47 = tpu.matmul %41, %3, %cst_36 {dimension_numbers = #tpu.dot_dimension_numbers<[1], [0], [0], [1], [0, 0, 1, 1], [], []>, precision = #tpu.contract_precision<fp32>} : vector<2x128xf32>, vector<128x128xf32>, vector<2x128xf32> -> vector<2x128xf32>
    %48 = arith.addf %46, %47 : vector<2x128xf32>
    %49 = math.tanh %48 : vector<2x128xf32>
    %c0_37 = arith.constant 0 : index
    %c5_38 = arith.constant 5 : index
    %c0_39 = arith.constant 0 : index
    %50 = vector.load %arg4[%c0_37, %c5_38, %c0_39] : memref<2x8x128xf32, #tpu.memory_space<vmem>>, vector<2x1x128xf32>
    %51 = vector.shape_cast %50 : vector<2x1x128xf32> to vector<2x128xf32>
    %52 = vector.shape_cast %49 : vector<2x128xf32> to vector<2x1x128xf32>
    tpu.vector_store %arg4[%c0_37, %c5_38, %c0_39], %52 {strides = array<i32>} : memref<2x8x128xf32, #tpu.memory_space<vmem>>, vector<2x1x128xf32>,
    %c0_40 = arith.constant 0 : index
    %c6 = arith.constant 6 : index
    %c0_41 = arith.constant 0 : index
    %53 = vector.load %arg2[%c0_40, %c6, %c0_41] : memref<2x8x128xf32, #tpu.memory_space<vmem>>, vector<2x1x128xf32>
    %54 = vector.shape_cast %53 : vector<2x1x128xf32> to vector<2x128xf32>
    %cst_42 = arith.constant dense<0.000000e+00> : vector<2x128xf32>
    %55 = tpu.matmul %49, %3, %cst_42 {dimension_numbers = #tpu.dot_dimension_numbers<[1], [0], [0], [1], [0, 0, 1, 1], [], []>, precision = #tpu.contract_precision<fp32>} : vector<2x128xf32>, vector<128x128xf32>, vector<2x128xf32> -> vector<2x128xf32>
    %56 = arith.addf %54, %55 : vector<2x128xf32>
    %57 = math.tanh %56 : vector<2x128xf32>
    %c0_43 = arith.constant 0 : index
    %c6_44 = arith.constant 6 : index
    %c0_45 = arith.constant 0 : index
    %58 = vector.load %arg4[%c0_43, %c6_44, %c0_45] : memref<2x8x128xf32, #tpu.memory_space<vmem>>, vector<2x1x128xf32>
    %59 = vector.shape_cast %58 : vector<2x1x128xf32> to vector<2x128xf32>
    %60 = vector.shape_cast %57 : vector<2x128xf32> to vector<2x1x128xf32>
    tpu.vector_store %arg4[%c0_43, %c6_44, %c0_45], %60 {strides = array<i32>} : memref<2x8x128xf32, #tpu.memory_space<vmem>>, vector<2x1x128xf32>,
    %c0_46 = arith.constant 0 : index
    %c7 = arith.constant 7 : index
    %c0_47 = arith.constant 0 : index
    %61 = vector.load %arg2[%c0_46, %c7, %c0_47] : memref<2x8x128xf32, #tpu.memory_space<vmem>>, vector<2x1x128xf32>
    %62 = vector.shape_cast %61 : vector<2x1x128xf32> to vector<2x128xf32>
    %cst_48 = arith.constant dense<0.000000e+00> : vector<2x128xf32>
    %63 = tpu.matmul %57, %3, %cst_48 {dimension_numbers = #tpu.dot_dimension_numbers<[1], [0], [0], [1], [0, 0, 1, 1], [], []>, precision = #tpu.contract_precision<fp32>} : vector<2x128xf32>, vector<128x128xf32>, vector<2x128xf32> -> vector<2x128xf32>
    %64 = arith.addf %62, %63 : vector<2x128xf32>
    %65 = math.tanh %64 : vector<2x128xf32>
    %c0_49 = arith.constant 0 : index
    %c7_50 = arith.constant 7 : index
    %c0_51 = arith.constant 0 : index
    %66 = vector.load %arg4[%c0_49, %c7_50, %c0_51] : memref<2x8x128xf32, #tpu.memory_space<vmem>>, vector<2x1x128xf32>
    %67 = vector.shape_cast %66 : vector<2x1x128xf32> to vector<2x128xf32>
    %68 = vector.shape_cast %65 : vector<2x128xf32> to vector<2x1x128xf32>
    tpu.vector_store %arg4[%c0_49, %c7_50, %c0_51], %68 {strides = array<i32>} : memref<2x8x128xf32, #tpu.memory_space<vmem>>, vector<2x1x128xf32>,
    %c0_52 = arith.constant 0 : index
    %c0_53 = arith.constant 0 : index
    %69 = vector.load %arg5[%c0_52, %c0_53] : memref<2x128xf32, #tpu.memory_space<vmem>>, vector<2x128xf32>
    tpu.vector_store %arg5[%c0_52, %c0_53], %65 {strides = array<i32>} : memref<2x128xf32, #tpu.memory_space<vmem>>, vector<2x128xf32>,
    return
  }
  func.func @transform_0(%arg0: i32, %arg1: i32) -> (i32, i32, i32) {
    %c0_i32 = arith.constant 0 : i32
    %c0_i32_0 = arith.constant 0 : i32
    return %arg0, %arg1, %c0_i32 : i32, i32, i32
  }
  func.func @transform_1(%arg0: i32, %arg1: i32) -> (i32, i32) {
    %c0_i32 = arith.constant 0 : i32
    %c0_i32_0 = arith.constant 0 : i32
    %c0_i32_1 = arith.constant 0 : i32
    return %c0_i32, %c0_i32_0 : i32, i32
  }
  func.func @transform_2(%arg0: i32, %arg1: i32) -> (i32, i32, i32) {
    %c0_i32 = arith.constant 0 : i32
    %c0_i32_0 = arith.constant 0 : i32
    return %arg0, %arg1, %c0_i32 : i32, i32, i32
  }
}

</mosaic_0001>

<llo_original>
// kernel: tpu_custom_call.1
$region0: #{tpu_custom_call.1}
  #allocation0 [shape = 'u32[]', space=smem, size = 0x4, offset = 0x4, fixed_abs, tag = 'smem constant byte address 0x4 - core index']
  #allocation1 [shape = 'u32[144,128]{1,0:T(1,128)}', space=vmem, size = 0x12000, scoped, tag = 'internal scratch']
  #allocation2 [shape = 'f32[2,128]{1,0:T(2,128)}', space=vmem, size = 0x400, scoped, tag = 'scratch operand']
  %s0 = inlined_call_operand.hbm [shape: f32[2,16,128], index: 0, kind: input, shape index: {}]
  %s1 = inlined_call_operand.hbm [shape: f32[128,128], index: 1, kind: input, shape index: {}]
  %s2 = inlined_call_operand.hbm [shape: f32[2,16,128], index: 2, kind: output, shape index: {}]
  %s3 = sld [smem:[#allocation0]]
  $region53: #{tpu_custom_call.1} parent=0
    _
  %s5 = ssub.s32 1, %s3
  %s6 = scalar_select 0, %s5, %s3
  $region1: #{tpu_custom_call.1} parent=0
    #allocation3 [shape = 'u8[16384]{0}', space=vmem, size = 0x4000, scoped, tag = 'input window, operand 0']
    #allocation4 [shape = 's32[2]{0}', space=sflag, size = 0x8, scoped, tag = 'scoped memory for tpu_custom_call.1']
    #allocation5 [shape = 's32[2]{0}', space=sflag, size = 0x8, scoped, tag = 'scoped memory for tpu_custom_call.1']
    #allocation6 [shape = 'u8[65536]{0}', space=vmem, size = 0x10000, scoped, tag = 'input window, operand 1, single buffered']
    #allocation7 [shape = 's32[1]{0}', space=sflag, size = 0x4, scoped, tag = 'scoped memory for tpu_custom_call.1']
    #allocation8 [shape = 'u8[16384]{0}', space=vmem, size = 0x4000, scoped, tag = 'output window, operand 0']
    %7 = vsyncpa [#allocation4], 0
    %s8 = scalar_lea.sflag [#allocation4], 1
    %9 = vsyncpa %s8, 0
    %10 = vsyncpa [#allocation7], 0
    %11 = vsyncpa [#allocation5], 0
    %s12 = scalar_lea.sflag [#allocation5], 1
    %13 = vsyncpa %s12, 0
    loop: start=0, step=1, limit=4
    $region2: #{tpu_custom_call.1} parent=1 // loop_pre_header
      _
    $region3: #{tpu_custom_call.1} parent=1 // loop_header
      %s15 = sphi 0, %s19
      %p16 = scmp.ge.s32.totalorder %s15, 4
      %s22 = sphi 0, %s34
      %s23 = sphi 0, %s30
      %s24 = sphi 0, %s22
      %s25 = sphi 0, %s23
      %s26 = sphi 0, %s24
      %s27 = sphi 0, %s25
      %s39 = sphi 0, %s41
      %s42 = sphi 0, %s39
      %s43 = sphi 0, %s42
      %s59 = sphi 0, %s43
      %s63 = sphi 0, %s63
      %s65 = sphi 0, %s63
      %s66 = sphi 0, %s65
      %s80 = sphi 0, %s66
      %s88 = sphi 0, %s90
      %s91 = sphi 0, %s88
      %s92 = sphi 0, %s91
      %s108 = sphi 0, %s92
    $region4: #{tpu_custom_call.1} parent=1 // loop_header_branch
      %18 = sbr.rel (%p16) target = $region8
    $region5: #{tpu_custom_call.1} parent=1 // loop_body
      %s20 = ssub.s32 %s15, 1
      %s21 = ssub.s32 %s15, 2
      %s28 = sadd.s32 1, %s23
      %p29 = scmp.ge.s32.totalorder %s28, 2
      %s30 = scalar_select %p29, 0, %s28
      %s31 = sadd.s32 1, %s22
      %s32 = scalar_select %p29, %s31, %s22
      %p33 = scmp.ge.s32.totalorder %s32, 1
      %s34 = scalar_select %p33, 0, %s32
      %s35 = ssub.s32 %s22, %s34
      %s36 = ssub.s32 %s23, %s30
      %s37 = sor.u32 %s35, %s36
      %p38 = scmp.eq.s32.totalorder %s37, 0
      %s40 = sadd.s32 %s39, 1
      %s41 = scalar_select %p38, %s39, %s40
      %p44 = pneg %p38
      %p45 = scmp.eq.s32.totalorder %s15, 1
      %p46 = por %p44, %p45
      %p47 = scmp.ne.s32.totalorder %s39, %s42
      %p48 = scmp.eq.s32.totalorder %s15, 0
      %p49 = por %p47, %p48
      %p50 = scmp.ne.s32.totalorder %s39, %s42
      %p51 = scmp.eq.s32.totalorder %s20, 1
      %p52 = por %p50, %p51
      %p53 = scmp.ne.s32.totalorder %s42, %s43
      %p54 = scmp.eq.s32.totalorder %s20, 0
      %p55 = por %p53, %p54
      %p56 = scmp.ne.s32.totalorder %s42, %s43
      %p57 = scmp.eq.s32.totalorder %s21, 1
      %p58 = por %p56, %p57
      %p60 = scmp.ne.s32.totalorder %s43, %s59
      %p61 = scmp.eq.s32.totalorder %s21, 0
      %p62 = por %p60, %p61
      %s64 = sadd.s32 %s63, 1
      %p67 = scmp.eq.s32.totalorder %s15, 1
      %p68 = scmp.ne.s32.totalorder %s63, %s65
      %p69 = scmp.eq.s32.totalorder %s15, 0
      %p70 = por %p68, %p69
      %p71 = scmp.ne.s32.totalorder %s63, %s65
      %p72 = scmp.eq.s32.totalorder %s20, 1
      %p73 = por %p71, %p72
      %p74 = scmp.ne.s32.totalorder %s65, %s66
      %p75 = scmp.eq.s32.totalorder %s20, 0
      %p76 = por %p74, %p75
      %p77 = scmp.ne.s32.totalorder %s65, %s66
      %p78 = scmp.eq.s32.totalorder %s21, 1
      %p79 = por %p77, %p78
      %p81 = scmp.ne.s32.totalorder %s66, %s80
      %p82 = scmp.eq.s32.totalorder %s21, 0
      %p83 = por %p81, %p82
      %s84 = ssub.s32 %s22, %s34
      %s85 = ssub.s32 %s23, %s30
      %s86 = sor.u32 %s84, %s85
      %p87 = scmp.eq.s32.totalorder %s86, 0
      %s89 = sadd.s32 %s88, 1
      %s90 = scalar_select %p87, %s88, %s89
      %p93 = pneg %p87
      %p94 = scmp.eq.s32.totalorder %s15, 1
      %p95 = por %p93, %p94
      %p96 = scmp.ne.s32.totalorder %s88, %s91
      %p97 = scmp.eq.s32.totalorder %s15, 0
      %p98 = por %p96, %p97
      %p99 = scmp.ne.s32.totalorder %s88, %s91
      %p100 = scmp.eq.s32.totalorder %s20, 1
      %p101 = por %p99, %p100
      %p102 = scmp.ne.s32.totalorder %s91, %s92
      %p103 = scmp.eq.s32.totalorder %s20, 0
      %p104 = por %p102, %p103
      %p105 = scmp.ne.s32.totalorder %s91, %s92
      %p106 = scmp.eq.s32.totalorder %s21, 1
      %p107 = por %p105, %p106
      %p109 = scmp.ne.s32.totalorder %s92, %s108
      %p110 = scmp.eq.s32.totalorder %s21, 0
      %p111 = por %p109, %p110
      %p112 = scmp.le.s32.totalorder 1, %s15
      %p113 = scmp.lt.s32.totalorder %s15, 3
      %p114 = pnand %p112, %p113
      %p115 = pneg %p114
      // Predicated region
      $region9: #{tpu_custom_call.1} parent=5 // pred_check
        _
      $region10: #{tpu_custom_call.1} parent=5 // pred_check_branch
        %117 = sbr.rel (%p114) target = $region12
      $region11: #{tpu_custom_call.1} parent=5 // pred_region
        %s118 = ssub.s32 %s15, 1
        // Predicated region
        $region13: #{tpu_custom_call.1} parent=11 // pred_check
          %p119 = pneg %p76
        $region14: #{tpu_custom_call.1} parent=11 // pred_check_branch
          %121 = sbr.rel (%p119) target = $region16
        $region15: #{tpu_custom_call.1} parent=11 // pred_region
          %s123 = ssub.s32 2048, 2048
          %124 = vsyncadd [#allocation7], %s123
          %s125 = sshll.u32 [#allocation6], 4
          %s126 = int_to_ptr.vmem [resolvable:$true] %s125
          %131 = dma.hbm_to_vmem [thread:$0]  %s1, 2048, %s126, [#allocation7], 128, 128, 8
        $region16: #{tpu_custom_call.1} parent=11 // pred_fallthru
          _
      $region12: #{tpu_custom_call.1} parent=5 // pred_fallthru
        _
      %p132 = scmp.lt.s32.totalorder %s15, 2
      // Predicated region
      $region17: #{tpu_custom_call.1} parent=5 // pred_check
        %p133 = pneg %p132
      $region18: #{tpu_custom_call.1} parent=5 // pred_check_branch
        %135 = sbr.rel (%p133) target = $region20
      $region19: #{tpu_custom_call.1} parent=5 // pred_region
        // Predicated region
        $region21: #{tpu_custom_call.1} parent=19 // pred_check
          %p136 = pneg %p49
        $region22: #{tpu_custom_call.1} parent=19 // pred_check_branch
          %138 = sbr.rel (%p136) target = $region24
        $region23: #{tpu_custom_call.1} parent=19 // pred_region
          %s139 = sand.u32 %s39, 1
          %s140 = scalar_lea.sflag [#allocation4], %s139
          %s141 = sand.u32 %s39, 1
          %s142 = smul.addr %s141, 16
          %s143 = scalar_lea.vmem [#allocation3], %s142
          %s144 = smul.u32 2, %s22
          %s146 = ssub.s32 256, 256
          %147 = vsyncadd %s140, %s146
          %s148 = smul.addr %s144, 2
          %s149 = sadd.s32 %s23, %s148
          %s150 = smul.addr %s149, 128
          %s151 = scalar_lea.hbm %s0, %s150
          %s152 = sshll.u32 %s143, 4
          %s153 = int_to_ptr.vmem [resolvable:$true] %s152
          %158 = dma.hbm_to_vmem [thread:$0]  %s151, 256, %s153, %s140, 256, 128, 8
        $region24: #{tpu_custom_call.1} parent=19 // pred_fallthru
          _
      $region20: #{tpu_custom_call.1} parent=5 // pred_fallthru
        _
      %p159 = scmp.le.s32.totalorder 1, %s15
      %p160 = scmp.lt.s32.totalorder %s15, 3
      %p161 = pnand %p159, %p160
      %p162 = pneg %p161
      // Predicated region
      $region25: #{tpu_custom_call.1} parent=5 // pred_check
        _
      $region26: #{tpu_custom_call.1} parent=5 // pred_check_branch
        %164 = sbr.rel (%p161) target = $region28
      $region27: #{tpu_custom_call.1} parent=5 // pred_region
        %s165 = ssub.s32 %s15, 1
        %s166 = sand.u32 %s42, 1
        %s167 = scalar_lea.sflag [#allocation4], %s166
        %s168 = sand.u32 %s42, 1
        %s169 = smul.addr %s168, 16
        %s170 = scalar_lea.vmem [#allocation3], %s169
        // Predicated region
        $region29: #{tpu_custom_call.1} parent=27 // pred_check
          %p171 = pneg %p55
        $region30: #{tpu_custom_call.1} parent=27 // pred_check_branch
          %173 = sbr.rel (%p171) target = $region32
        $region31: #{tpu_custom_call.1} parent=27 // pred_region
          %174 = dma.done %s167, 256
        $region32: #{tpu_custom_call.1} parent=27 // pred_fallthru
          _
        // Predicated region
        $region33: #{tpu_custom_call.1} parent=27 // pred_check
          %p175 = pneg %p76
        $region34: #{tpu_custom_call.1} parent=27 // pred_check_branch
          %177 = sbr.rel (%p175) target = $region36
        $region35: #{tpu_custom_call.1} parent=27 // pred_region
          %178 = dma.done [#allocation7], 2048
        $region36: #{tpu_custom_call.1} parent=27 // pred_fallthru
          _
        %s179 = sand.u32 %s42, 1
        %s180 = scalar_lea.sflag [#allocation4], %s179
        %s181 = sand.u32 %s42, 1
        %s182 = smul.addr %s181, 16
        %s183 = scalar_lea.vmem [#allocation3], %s182
        %p184 = pneg %p55
        %p185 = pneg %p52
        %p186 = pneg %p76
        %p187 = pneg %p73
        %p188 = pneg %p104
        %p189 = pneg %p101
        %s190 = sand.u32 %s91, 1
        %s191 = scalar_lea.sflag [#allocation5], %s190
        %s192 = sand.u32 %s91, 1
        %s193 = smul.addr %s192, 16
        %s194 = scalar_lea.vmem [#allocation8], %s193
        %s195 = smul.u32 2, %s24
        %s196 = smul.u32 2, %s24
        %p197 = scmp.eq.s32.totalorder %s25, 0
        // Predicated region
        $region37: #{tpu_custom_call.1} parent=27 // pred_check
          %p198 = pneg %p197
        $region38: #{tpu_custom_call.1} parent=27 // pred_check_branch
          %200 = sbr.rel (%p198) target = $region40
        $region39: #{tpu_custom_call.1} parent=27 // pred_region
          %201 = vst [vmem:[#allocation2] sm:$0x3] 0.0
        $region40: #{tpu_custom_call.1} parent=27 // pred_fallthru
          _
        %v202 = vld [vmem:[#allocation6] sm:$0xff]
        %v203 = vld [vmem:[#allocation6 + $0x8] sm:$0xff]
        %v204 = vld [vmem:[#allocation6 + $0x10] sm:$0xff]
        %v205 = vld [vmem:[#allocation6 + $0x18] sm:$0xff]
        %v206 = vld [vmem:[#allocation6 + $0x20] sm:$0xff]
        %v207 = vld [vmem:[#allocation6 + $0x28] sm:$0xff]
        %v208 = vld [vmem:[#allocation6 + $0x30] sm:$0xff]
        %v209 = vld [vmem:[#allocation6 + $0x38] sm:$0xff]
        %v210 = vld [vmem:[#allocation6 + $0x40] sm:$0xff]
        %v211 = vld [vmem:[#allocation6 + $0x48] sm:$0xff]
        %v212 = vld [vmem:[#allocation6 + $0x50] sm:$0xff]
        %v213 = vld [vmem:[#allocation6 + $0x58] sm:$0xff]
        %v214 = vld [vmem:[#allocation6 + $0x60] sm:$0xff]
        %v215 = vld [vmem:[#allocation6 + $0x68] sm:$0xff]
        %v216 = vld [vmem:[#allocation6 + $0x70] sm:$0xff]
        %v217 = vld [vmem:[#allocation6 + $0x78] sm:$0xff]
        %v218 = vld [vmem:[#allocation2] sm:$0x3]
        %v219 = vld [vmem:[%s170] sm:$0x1]
        %v220 = vld [vmem:[%s170 + $0x8] sm:$0x1]
        %221 = vmatprep.subr.mxu0 0.0
        %v222 = vand.u32 %v217, 4294901760
        %223 = vmatpush1.msra.mxu0 %v222
        %224 = vmatprep.subr.mxu0 0.0
        %v225 = vand.u32 %v216, 4294901760
        %226 = vmatpush1.msra.mxu0 %v225
        %227 = vmatprep.subr.mxu0 0.0
        %v228 = vand.u32 %v215, 4294901760
        %229 = vmatpush1.msra.mxu0 %v228
        %230 = vmatprep.subr.mxu0 0.0
        %v231 = vand.u32 %v214, 4294901760
        %232 = vmatpush1.msra.mxu0 %v231
        %233 = vmatprep.subr.mxu0 0.0
        %v234 = vand.u32 %v213, 4294901760
        %235 = vmatpush1.msra.mxu0 %v234
        %236 = vmatprep.subr.mxu0 0.0
        %v237 = vand.u32 %v212, 4294901760
        %238 = vmatpush1.msra.mxu0 %v237
        %239 = vmatprep.subr.mxu0 0.0
        %v240 = vand.u32 %v211, 4294901760
        %241 = vmatpush1.msra.mxu0 %v240
        %242 = vmatprep.subr.mxu0 0.0
        %v243 = vand.u32 %v210, 4294901760
        %244 = vmatpush1.msra.mxu0 %v243
        %245 = vmatprep.subr.mxu0 0.0
        %v246 = vand.u32 %v209, 4294901760
        %247 = vmatpush1.msra.mxu0 %v246
        %248 = vmatprep.subr.mxu0 0.0
        %v249 = vand.u32 %v208, 4294901760
        %250 = vmatpush1.msra.mxu0 %v249
        %251 = vmatprep.subr.mxu0 0.0
        %v252 = vand.u32 %v207, 4294901760
        %253 = vmatpush1.msra.mxu0 %v252
        %254 = vmatprep.subr.mxu0 0.0
        %v255 = vand.u32 %v206, 4294901760
        %256 = vmatpush1.msra.mxu0 %v255
        %257 = vmatprep.subr.mxu0 0.0
        %v258 = vand.u32 %v205, 4294901760
        %259 = vmatpush1.msra.mxu0 %v258
        %260 = vmatprep.subr.mxu0 0.0
        %v261 = vand.u32 %v204, 4294901760
        %262 = vmatpush1.msra.mxu0 %v261
        %263 = vmatprep.subr.mxu0 0.0
        %v264 = vand.u32 %v203, 4294901760
        %265 = vmatpush1.msra.mxu0 %v264
        %266 = vmatprep.subr.mxu0 0.0
        %v267 = vand.u32 %v202, 4294901760
        %268 = vmatpush1.msra.mxu0 %v267
        %269 = vmatprep.subr.mxu0 0.0
        %270 = vmatpush2.msra.mxu0 0.0
        %271 = vmatprep.subr.mxu0 0.0
        %272 = vmatpush2.msra.mxu0 0.0
        %273 = vmatprep.subr.mxu0 0.0
        %274 = vmatpush2.msra.mxu0 0.0
        %275 = vmatprep.subr.mxu0 0.0
        %276 = vmatpush2.msra.mxu0 0.0
        %277 = vmatprep.subr.mxu0 0.0
        %278 = vmatpush2.msra.mxu0 0.0
        %279 = vmatprep.subr.mxu0 0.0
        %280 = vmatpush2.msra.mxu0 0.0
        %281 = vmatprep.subr.mxu0 0.0
        %282 = vmatpush2.msra.mxu0 0.0
        %283 = vmatprep.subr.mxu0 0.0
        %284 = vmatpush2.msra.mxu0 0.0
        %285 = vmatprep.subr.mxu0 0.0
        %286 = vmatpush2.msra.mxu0 0.0
        %287 = vmatprep.subr.mxu0 0.0
        %288 = vmatpush2.msra.mxu0 0.0
        %289 = vmatprep.subr.mxu0 0.0
        %290 = vmatpush2.msra.mxu0 0.0
        %291 = vmatprep.subr.mxu0 0.0
        %292 = vmatpush2.msra.mxu0 0.0
        %293 = vmatprep.subr.mxu0 0.0
        %294 = vmatpush2.msra.mxu0 0.0
        %295 = vmatprep.subr.mxu0 0.0
        %296 = vmatpush2.msra.mxu0 0.0
        %297 = vmatprep.subr.mxu0 0.0
        %298 = vmatpush2.msra.mxu0 0.0
        %299 = vmatprep.subr.mxu0 0.0
        %300 = vmatpush2.msra.mxu0 0.0
        %301 = vmatprep.mubr.f32.mxu0 0.0
        %v302 = vand.u32 %v218, 4294901760
        %v303 = vsub.f32 %v218, %v302
        %v304 = vand.u32 %v303, 4294901760
        %v305 = vsub.f32 %v303, %v304
        %v306 = vand.u32 %v305, 4294901760
        %307 = vmatmul.mubr.f32.gmra.mxu0 %v306
        %v308 = vpop.f32.mrf.mxu0
        %v309 = vadd.f32 0.0, %v308
        %v310 = vpop.f32.mrf.mxu0
        %311 = vdwg.mxu0
        %312 = vmatprep.subr.mxu0 0.0
        %v313 = vand.u32 %v217, 4294901760
        %v314 = vsub.f32 %v217, %v313
        %v315 = vand.u32 %v314, 4294901760
        %v316 = vsub.f32 %v314, %v315
        %v317 = vand.u32 %v316, 4294901760
        %318 = vmatpush1.msra.mxu0 %v317
        %319 = vmatprep.subr.mxu0 0.0
        %v320 = vand.u32 %v216, 4294901760
        %v321 = vsub.f32 %v216, %v320
        %v322 = vand.u32 %v321, 4294901760
        %v323 = vsub.f32 %v321, %v322
        %v324 = vand.u32 %v323, 4294901760
        %325 = vmatpush1.msra.mxu0 %v324
        %326 = vmatprep.subr.mxu0 0.0
        %v327 = vand.u32 %v215, 4294901760
        %v328 = vsub.f32 %v215, %v327
        %v329 = vand.u32 %v328, 4294901760
        %v330 = vsub.f32 %v328, %v329
        %v331 = vand.u32 %v330, 4294901760
        %332 = vmatpush1.msra.mxu0 %v331
        %333 = vmatprep.subr.mxu0 0.0
        %v334 = vand.u32 %v214, 4294901760
        %v335 = vsub.f32 %v214, %v334
        %v336 = vand.u32 %v335, 4294901760
        %v337 = vsub.f32 %v335, %v336
        %v338 = vand.u32 %v337, 4294901760
        %339 = vmatpush1.msra.mxu0 %v338
        %340 = vmatprep.subr.mxu0 0.0
        %v341 = vand.u32 %v213, 4294901760
        %v342 = vsub.f32 %v213, %v341
        %v343 = vand.u32 %v342, 4294901760
        %v344 = vsub.f32 %v342, %v343
        %v345 = vand.u32 %v344, 4294901760
        %346 = vmatpush1.msra.mxu0 %v345
        %347 = vmatprep.subr.mxu0 0.0
        %v348 = vand.u32 %v212, 4294901760
        %v349 = vsub.f32 %v212, %v348
        %v350 = vand.u32 %v349, 4294901760
        %v351 = vsub.f32 %v349, %v350
        %v352 = vand.u32 %v351, 4294901760
        %353 = vmatpush1.msra.mxu0 %v352
        %354 = vmatprep.subr.mxu0 0.0
        %v355 = vand.u32 %v211, 4294901760
        %v356 = vsub.f32 %v211, %v355
        %v357 = vand.u32 %v356, 4294901760
        %v358 = vsub.f32 %v356, %v357
        %v359 = vand.u32 %v358, 4294901760
        %360 = vmatpush1.msra.mxu0 %v359
        %361 = vmatprep.subr.mxu0 0.0
        %v362 = vand.u32 %v210, 4294901760
        %v363 = vsub.f32 %v210, %v362
        %v364 = vand.u32 %v363, 4294901760
        %v365 = vsub.f32 %v363, %v364
        %v366 = vand.u32 %v365, 4294901760
        %367 = vmatpush1.msra.mxu0 %v366
        %368 = vmatprep.subr.mxu0 0.0
        %v369 = vand.u32 %v209, 4294901760
        %v370 = vsub.f32 %v209, %v369
        %v371 = vand.u32 %v370, 4294901760
        %v372 = vsub.f32 %v370, %v371
        %v373 = vand.u32 %v372, 4294901760
        %374 = vmatpush1.msra.mxu0 %v373
        %375 = vmatprep.subr.mxu0 0.0
        %v376 = vand.u32 %v208, 4294901760
        %v377 = vsub.f32 %v208, %v376
        %v378 = vand.u32 %v377, 4294901760
        %v379 = vsub.f32 %v377, %v378
        %v380 = vand.u32 %v379, 4294901760
        %381 = vmatpush1.msra.mxu0 %v380
        %382 = vmatprep.subr.mxu0 0.0
        %v383 = vand.u32 %v207, 4294901760
        %v384 = vsub.f32 %v207, %v383
        %v385 = vand.u32 %v384, 4294901760
        %v386 = vsub.f32 %v384, %v385
        %v387 = vand.u32 %v386, 4294901760
        %388 = vmatpush1.msra.mxu0 %v387
        %389 = vmatprep.subr.mxu0 0.0
        %v390 = vand.u32 %v206, 4294901760
        %v391 = vsub.f32 %v206, %v390
        %v392 = vand.u32 %v391, 4294901760
        %v393 = vsub.f32 %v391, %v392
        %v394 = vand.u32 %v393, 4294901760
        %395 = vmatpush1.msra.mxu0 %v394
        %396 = vmatprep.subr.mxu0 0.0
        %v397 = vand.u32 %v205, 4294901760
        %v398 = vsub.f32 %v205, %v397
        %v399 = vand.u32 %v398, 4294901760
        %v400 = vsub.f32 %v398, %v399
        %v401 = vand.u32 %v400, 4294901760
        %402 = vmatpush1.msra.mxu0 %v401
        %403 = vmatprep.subr.mxu0 0.0
        %v404 = vand.u32 %v204, 4294901760
        %v405 = vsub.f32 %v204, %v404
        %v406 = vand.u32 %v405, 4294901760
        %v407 = vsub.f32 %v405, %v406
        %v408 = vand.u32 %v407, 4294901760
        %409 = vmatpush1.msra.mxu0 %v408
        %410 = vmatprep.subr.mxu0 0.0
        %v411 = vand.u32 %v203, 4294901760
        %v412 = vsub.f32 %v203, %v411
        %v413 = vand.u32 %v412, 4294901760
        %v414 = vsub.f32 %v412, %v413
        %v415 = vand.u32 %v414, 4294901760
        %416 = vmatpush1.msra.mxu0 %v415
        %417 = vmatprep.subr.mxu0 0.0
        %v418 = vand.u32 %v202, 4294901760
        %v419 = vsub.f32 %v202, %v418
        %v420 = vand.u32 %v419, 4294901760
        %v421 = vsub.f32 %v419, %v420
        %v422 = vand.u32 %v421, 4294901760
        %423 = vmatpush1.msra.mxu0 %v422
        %424 = vmatprep.subr.mxu0 0.0
        %425 = vmatpush2.msra.mxu0 0.0
        %426 = vmatprep.subr.mxu0 0.0
        %427 = vmatpush2.msra.mxu0 0.0
        %428 = vmatprep.subr.mxu0 0.0
        %429 = vmatpush2.msra.mxu0 0.0
        %430 = vmatprep.subr.mxu0 0.0
        %431 = vmatpush2.msra.mxu0 0.0
        %432 = vmatprep.subr.mxu0 0.0
        %433 = vmatpush2.msra.mxu0 0.0
        %434 = vmatprep.subr.mxu0 0.0
        %435 = vmatpush2.msra.mxu0 0.0
        %436 = vmatprep.subr.mxu0 0.0
        %437 = vmatpush2.msra.mxu0 0.0
        %438 = vmatprep.subr.mxu0 0.0
        %439 = vmatpush2.msra.mxu0 0.0
        %440 = vmatprep.subr.mxu0 0.0
        %441 = vmatpush2.msra.mxu0 0.0
        %442 = vmatprep.subr.mxu0 0.0
        %443 = vmatpush2.msra.mxu0 0.0
        %444 = vmatprep.subr.mxu0 0.0
        %445 = vmatpush2.msra.mxu0 0.0
        %446 = vmatprep.subr.mxu0 0.0
        %447 = vmatpush2.msra.mxu0 0.0
        %448 = vmatprep.subr.mxu0 0.0
        %449 = vmatpush2.msra.mxu0 0.0
        %450 = vmatprep.subr.mxu0 0.0
        %451 = vmatpush2.msra.mxu0 0.0
        %452 = vmatprep.subr.mxu0 0.0
        %453 = vmatpush2.msra.mxu0 0.0
        %454 = vmatprep.subr.mxu0 0.0
        %455 = vmatpush2.msra.mxu0 0.0
        %456 = vmatprep.mubr.f32.mxu0 0.0
        %v457 = vand.u32 %v218, 4294901760
        %458 = vmatmul.mubr.f32.gmra.mxu0 %v457
        %v459 = vpop.f32.mrf.mxu0
        %v460 = vadd.f32 %v309, %v459
        %v461 = vpop.f32.mrf.mxu0
        %462 = vdwg.mxu0
        %463 = vmatprep.subr.mxu0 0.0
        %v464 = vand.u32 %v217, 4294901760
        %v465 = vsub.f32 %v217, %v464
        %466 = vmatpush1.msra.mxu0 %v465
        %467 = vmatprep.subr.mxu0 0.0
        %v468 = vand.u32 %v216, 4294901760
        %v469 = vsub.f32 %v216, %v468
        %470 = vmatpush1.msra.mxu0 %v469
        %471 = vmatprep.subr.mxu0 0.0
        %v472 = vand.u32 %v215, 4294901760
        %v473 = vsub.f32 %v215, %v472
        %474 = vmatpush1.msra.mxu0 %v473
        %475 = vmatprep.subr.mxu0 0.0
        %v476 = vand.u32 %v214, 4294901760
        %v477 = vsub.f32 %v214, %v476
        %478 = vmatpush1.msra.mxu0 %v477
        %479 = vmatprep.subr.mxu0 0.0
        %v480 = vand.u32 %v213, 4294901760
        %v481 = vsub.f32 %v213, %v480
        %482 = vmatpush1.msra.mxu0 %v481
        %483 = vmatprep.subr.mxu0 0.0
        %v484 = vand.u32 %v212, 4294901760
        %v485 = vsub.f32 %v212, %v484
        %486 = vmatpush1.msra.mxu0 %v485
        %487 = vmatprep.subr.mxu0 0.0
        %v488 = vand.u32 %v211, 4294901760
        %v489 = vsub.f32 %v211, %v488
        %490 = vmatpush1.msra.mxu0 %v489
        %491 = vmatprep.subr.mxu0 0.0
        %v492 = vand.u32 %v210, 4294901760
        %v493 = vsub.f32 %v210, %v492
        %494 = vmatpush1.msra.mxu0 %v493
        %495 = vmatprep.subr.mxu0 0.0
        %v496 = vand.u32 %v209, 4294901760
        %v497 = vsub.f32 %v209, %v496
        %498 = vmatpush1.msra.mxu0 %v497
        %499 = vmatprep.subr.mxu0 0.0
        %v500 = vand.u32 %v208, 4294901760
        %v501 = vsub.f32 %v208, %v500
        %502 = vmatpush1.msra.mxu0 %v501
        %503 = vmatprep.subr.mxu0 0.0
        %v504 = vand.u32 %v207, 4294901760
        %v505 = vsub.f32 %v207, %v504
        %506 = vmatpush1.msra.mxu0 %v505
        %507 = vmatprep.subr.mxu0 0.0
        %v508 = vand.u32 %v206, 4294901760
        %v509 = vsub.f32 %v206, %v508
        %510 = vmatpush1.msra.mxu0 %v509
        %511 = vmatprep.subr.mxu0 0.0
        %v512 = vand.u32 %v205, 4294901760
        %v513 = vsub.f32 %v205, %v512
        %514 = vmatpush1.msra.mxu0 %v513
        %515 = vmatprep.subr.mxu0 0.0
        %v516 = vand.u32 %v204, 4294901760
        %v517 = vsub.f32 %v204, %v516
        %518 = vmatpush1.msra.mxu0 %v517
        %519 = vmatprep.subr.mxu0 0.0
        %v520 = vand.u32 %v203, 4294901760
        %v521 = vsub.f32 %v203, %v520
        %522 = vmatpush1.msra.mxu0 %v521
        %523 = vmatprep.subr.mxu0 0.0
        %v524 = vand.u32 %v202, 4294901760
        %v525 = vsub.f32 %v202, %v524
        %526 = vmatpush1.msra.mxu0 %v525
        %527 = vmatprep.subr.mxu0 0.0
        %528 = vmatpush2.msra.mxu0 0.0
        %529 = vmatprep.subr.mxu0 0.0
        %530 = vmatpush2.msra.mxu0 0.0
        %531 = vmatprep.subr.mxu0 0.0
        %532 = vmatpush2.msra.mxu0 0.0
        %533 = vmatprep.subr.mxu0 0.0
        %534 = vmatpush2.msra.mxu0 0.0
        %535 = vmatprep.subr.mxu0 0.0
        %536 = vmatpush2.msra.mxu0 0.0
        %537 = vmatprep.subr.mxu0 0.0
        %538 = vmatpush2.msra.mxu0 0.0
        %539 = vmatprep.subr.mxu0 0.0
        %540 = vmatpush2.msra.mxu0 0.0
        %541 = vmatprep.subr.mxu0 0.0
        %542 = vmatpush2.msra.mxu0 0.0
        %543 = vmatprep.subr.mxu0 0.0
        %544 = vmatpush2.msra.mxu0 0.0
        %545 = vmatprep.subr.mxu0 0.0
        %546 = vmatpush2.msra.mxu0 0.0
        %547 = vmatprep.subr.mxu0 0.0
        %548 = vmatpush2.msra.mxu0 0.0
        %549 = vmatprep.subr.mxu0 0.0
        %550 = vmatpush2.msra.mxu0 0.0
        %551 = vmatprep.subr.mxu0 0.0
        %552 = vmatpush2.msra.mxu0 0.0
        %553 = vmatprep.subr.mxu0 0.0
        %554 = vmatpush2.msra.mxu0 0.0
        %555 = vmatprep.subr.mxu0 0.0
        %556 = vmatpush2.msra.mxu0 0.0
        %557 = vmatprep.subr.mxu0 0.0
        %558 = vmatpush2.msra.mxu0 0.0
        %559 = vmatprep.mubr.f32.mxu0 0.0
        %v560 = vand.u32 %v218, 4294901760
        %v561 = vsub.f32 %v218, %v560
        %562 = vmatmul.mubr.f32.gmra.mxu0 %v561
        %v563 = vpop.f32.mrf.mxu0
        %v564 = vadd.f32 %v460, %v563
        %v565 = vpop.f32.mrf.mxu0
        %566 = vdwg.mxu0
        %567 = vmatprep.subr.mxu0 0.0
        %v568 = vand.u32 %v217, 4294901760
        %569 = vmatpush1.msra.mxu0 %v568
        %570 = vmatprep.subr.mxu0 0.0
        %v571 = vand.u32 %v216, 4294901760
        %572 = vmatpush1.msra.mxu0 %v571
        %573 = vmatprep.subr.mxu0 0.0
        %v574 = vand.u32 %v215, 4294901760
        %575 = vmatpush1.msra.mxu0 %v574
        %576 = vmatprep.subr.mxu0 0.0
        %v577 = vand.u32 %v214, 4294901760
        %578 = vmatpush1.msra.mxu0 %v577
        %579 = vmatprep.subr.mxu0 0.0
        %v580 = vand.u32 %v213, 4294901760
        %581 = vmatpush1.msra.mxu0 %v580
        %582 = vmatprep.subr.mxu0 0.0
        %v583 = vand.u32 %v212, 4294901760
        %584 = vmatpush1.msra.mxu0 %v583
        %585 = vmatprep.subr.mxu0 0.0
        %v586 = vand.u32 %v211, 4294901760
        %587 = vmatpush1.msra.mxu0 %v586
        %588 = vmatprep.subr.mxu0 0.0
        %v589 = vand.u32 %v210, 4294901760
        %590 = vmatpush1.msra.mxu0 %v589
        %591 = vmatprep.subr.mxu0 0.0
        %v592 = vand.u32 %v209, 4294901760
        %593 = vmatpush1.msra.mxu0 %v592
        %594 = vmatprep.subr.mxu0 0.0
        %v595 = vand.u32 %v208, 4294901760
        %596 = vmatpush1.msra.mxu0 %v595
        %597 = vmatprep.subr.mxu0 0.0
        %v598 = vand.u32 %v207, 4294901760
        %599 = vmatpush1.msra.mxu0 %v598
        %600 = vmatprep.subr.mxu0 0.0
        %v601 = vand.u32 %v206, 4294901760
        %602 = vmatpush1.msra.mxu0 %v601
        %603 = vmatprep.subr.mxu0 0.0
        %v604 = vand.u32 %v205, 4294901760
        %605 = vmatpush1.msra.mxu0 %v604
        %606 = vmatprep.subr.mxu0 0.0
        %v607 = vand.u32 %v204, 4294901760
        %608 = vmatpush1.msra.mxu0 %v607
        %609 = vmatprep.subr.mxu0 0.0
        %v610 = vand.u32 %v203, 4294901760
        %611 = vmatpush1.msra.mxu0 %v610
        %612 = vmatprep.subr.mxu0 0.0
        %v613 = vand.u32 %v202, 4294901760
        %614 = vmatpush1.msra.mxu0 %v613
        %615 = vmatprep.subr.mxu0 0.0
        %616 = vmatpush2.msra.mxu0 0.0
        %617 = vmatprep.subr.mxu0 0.0
        %618 = vmatpush2.msra.mxu0 0.0
        %619 = vmatprep.subr.mxu0 0.0
        %620 = vmatpush2.msra.mxu0 0.0
        %621 = vmatprep.subr.mxu0 0.0
        %622 = vmatpush2.msra.mxu0 0.0
        %623 = vmatprep.subr.mxu0 0.0
        %624 = vmatpush2.msra.mxu0 0.0
        %625 = vmatprep.subr.mxu0 0.0
        %626 = vmatpush2.msra.mxu0 0.0
        %627 = vmatprep.subr.mxu0 0.0
        %628 = vmatpush2.msra.mxu0 0.0
        %629 = vmatprep.subr.mxu0 0.0
        %630 = vmatpush2.msra.mxu0 0.0
        %631 = vmatprep.subr.mxu0 0.0
        %632 = vmatpush2.msra.mxu0 0.0
        %633 = vmatprep.subr.mxu0 0.0
        %634 = vmatpush2.msra.mxu0 0.0
        %635 = vmatprep.subr.mxu0 0.0
        %636 = vmatpush2.msra.mxu0 0.0
        %637 = vmatprep.subr.mxu0 0.0
        %638 = vmatpush2.msra.mxu0 0.0
        %639 = vmatprep.subr.mxu0 0.0
        %640 = vmatpush2.msra.mxu0 0.0
        %641 = vmatprep.subr.mxu0 0.0
        %642 = vmatpush2.msra.mxu0 0.0
        %643 = vmatprep.subr.mxu0 0.0
        %644 = vmatpush2.msra.mxu0 0.0
        %645 = vmatprep.subr.mxu0 0.0
        %646 = vmatpush2.msra.mxu0 0.0
        %647 = vmatprep.mubr.f32.mxu0 0.0
        %v648 = vand.u32 %v218, 4294901760
        %v649 = vsub.f32 %v218, %v648
        %v650 = vand.u32 %v649, 4294901760
        %651 = vmatmul.mubr.f32.gmra.mxu0 %v650
        %v652 = vpop.f32.mrf.mxu0
        %v653 = vadd.f32 %v564, %v652
        %v654 = vpop.f32.mrf.mxu0
        %655 = vdwg.mxu0
        %656 = vmatprep.subr.mxu0 0.0
        %v657 = vand.u32 %v217, 4294901760
        %v658 = vsub.f32 %v217, %v657
        %v659 = vand.u32 %v658, 4294901760
        %660 = vmatpush1.msra.mxu0 %v659
        %661 = vmatprep.subr.mxu0 0.0
        %v662 = vand.u32 %v216, 4294901760
        %v663 = vsub.f32 %v216, %v662
        %v664 = vand.u32 %v663, 4294901760
        %665 = vmatpush1.msra.mxu0 %v664
        %666 = vmatprep.subr.mxu0 0.0
        %v667 = vand.u32 %v215, 4294901760
        %v668 = vsub.f32 %v215, %v667
        %v669 = vand.u32 %v668, 4294901760
        %670 = vmatpush1.msra.mxu0 %v669
        %671 = vmatprep.subr.mxu0 0.0
        %v672 = vand.u32 %v214, 4294901760
        %v673 = vsub.f32 %v214, %v672
        %v674 = vand.u32 %v673, 4294901760
        %675 = vmatpush1.msra.mxu0 %v674
        %676 = vmatprep.subr.mxu0 0.0
        %v677 = vand.u32 %v213, 4294901760
        %v678 = vsub.f32 %v213, %v677
        %v679 = vand.u32 %v678, 4294901760
        %680 = vmatpush1.msra.mxu0 %v679
        %681 = vmatprep.subr.mxu0 0.0
        %v682 = vand.u32 %v212, 4294901760
        %v683 = vsub.f32 %v212, %v682
        %v684 = vand.u32 %v683, 4294901760
        %685 = vmatpush1.msra.mxu0 %v684
        %686 = vmatprep.subr.mxu0 0.0
        %v687 = vand.u32 %v211, 4294901760
        %v688 = vsub.f32 %v211, %v687
        %v689 = vand.u32 %v688, 4294901760
        %690 = vmatpush1.msra.mxu0 %v689
        %691 = vmatprep.subr.mxu0 0.0
        %v692 = vand.u32 %v210, 4294901760
        %v693 = vsub.f32 %v210, %v692
        %v694 = vand.u32 %v693, 4294901760
        %695 = vmatpush1.msra.mxu0 %v694
        %696 = vmatprep.subr.mxu0 0.0
        %v697 = vand.u32 %v209, 4294901760
        %v698 = vsub.f32 %v209, %v697
        %v699 = vand.u32 %v698, 4294901760
        %700 = vmatpush1.msra.mxu0 %v699
        %701 = vmatprep.subr.mxu0 0.0
        %v702 = vand.u32 %v208, 4294901760
        %v703 = vsub.f32 %v208, %v702
        %v704 = vand.u32 %v703, 4294901760
        %705 = vmatpush1.msra.mxu0 %v704
        %706 = vmatprep.subr.mxu0 0.0
        %v707 = vand.u32 %v207, 4294901760
        %v708 = vsub.f32 %v207, %v707
        %v709 = vand.u32 %v708, 4294901760
        %710 = vmatpush1.msra.mxu0 %v709
        %711 = vmatprep.subr.mxu0 0.0
        %v712 = vand.u32 %v206, 4294901760
        %v713 = vsub.f32 %v206, %v712
        %v714 = vand.u32 %v713, 4294901760
        %715 = vmatpush1.msra.mxu0 %v714
        %716 = vmatprep.subr.mxu0 0.0
        %v717 = vand.u32 %v205, 4294901760
        %v718 = vsub.f32 %v205, %v717
        %v719 = vand.u32 %v718, 4294901760
        %720 = vmatpush1.msra.mxu0 %v719
        %721 = vmatprep.subr.mxu0 0.0
        %v722 = vand.u32 %v204, 4294901760
        %v723 = vsub.f32 %v204, %v722
        %v724 = vand.u32 %v723, 4294901760
        %725 = vmatpush1.msra.mxu0 %v724
        %726 = vmatprep.subr.mxu0 0.0
        %v727 = vand.u32 %v203, 4294901760
        %v728 = vsub.f32 %v203, %v727
        %v729 = vand.u32 %v728, 4294901760
        %730 = vmatpush1.msra.mxu0 %v729
        %731 = vmatprep.subr.mxu0 0.0
        %v732 = vand.u32 %v202, 4294901760
        %v733 = vsub.f32 %v202, %v732
        %v734 = vand.u32 %v733, 4294901760
        %735 = vmatpush1.msra.mxu0 %v734
        %736 = vmatprep.subr.mxu0 0.0
        %737 = vmatpush2.msra.mxu0 0.0
        %738 = vmatprep.subr.mxu0 0.0
        %739 = vmatpush2.msra.mxu0 0.0
        %740 = vmatprep.subr.mxu0 0.0
        %741 = vmatpush2.msra.mxu0 0.0
        %742 = vmatprep.subr.mxu0 0.0
        %743 = vmatpush2.msra.mxu0 0.0
        %744 = vmatprep.subr.mxu0 0.0
        %745 = vmatpush2.msra.mxu0 0.0
        %746 = vmatprep.subr.mxu0 0.0
        %747 = vmatpush2.msra.mxu0 0.0
        %748 = vmatprep.subr.mxu0 0.0
        %749 = vmatpush2.msra.mxu0 0.0
        %750 = vmatprep.subr.mxu0 0.0
        %751 = vmatpush2.msra.mxu0 0.0
        %752 = vmatprep.subr.mxu0 0.0
        %753 = vmatpush2.msra.mxu0 0.0
        %754 = vmatprep.subr.mxu0 0.0
        %755 = vmatpush2.msra.mxu0 0.0
        %756 = vmatprep.subr.mxu0 0.0
        %757 = vmatpush2.msra.mxu0 0.0
        %758 = vmatprep.subr.mxu0 0.0
        %759 = vmatpush2.msra.mxu0 0.0
        %760 = vmatprep.subr.mxu0 0.0
        %761 = vmatpush2.msra.mxu0 0.0
        %762 = vmatprep.subr.mxu0 0.0
        %763 = vmatpush2.msra.mxu0 0.0
        %764 = vmatprep.subr.mxu0 0.0
        %765 = vmatpush2.msra.mxu0 0.0
        %766 = vmatprep.subr.mxu0 0.0
        %767 = vmatpush2.msra.mxu0 0.0
        %768 = vmatprep.mubr.f32.mxu0 0.0
        %v769 = vand.u32 %v218, 4294901760
        %770 = vmatmul.mubr.f32.gmra.mxu0 %v769
        %v771 = vpop.f32.mrf.mxu0
        %v772 = vadd.f32 %v653, %v771
        %v773 = vpop.f32.mrf.mxu0
        %774 = vdwg.mxu0
        %775 = vmatprep.subr.mxu0 0.0
        %v776 = vand.u32 %v217, 4294901760
        %777 = vmatpush1.msra.mxu0 %v776
        %778 = vmatprep.subr.mxu0 0.0
        %v779 = vand.u32 %v216, 4294901760
        %780 = vmatpush1.msra.mxu0 %v779
        %781 = vmatprep.subr.mxu0 0.0
        %v782 = vand.u32 %v215, 4294901760
        %783 = vmatpush1.msra.mxu0 %v782
        %784 = vmatprep.subr.mxu0 0.0
        %v785 = vand.u32 %v214, 4294901760
        %786 = vmatpush1.msra.mxu0 %v785
        %787 = vmatprep.subr.mxu0 0.0
        %v788 = vand.u32 %v213, 4294901760
        %789 = vmatpush1.msra.mxu0 %v788
        %790 = vmatprep.subr.mxu0 0.0
        %v791 = vand.u32 %v212, 4294901760
        %792 = vmatpush1.msra.mxu0 %v791
        %793 = vmatprep.subr.mxu0 0.0
        %v794 = vand.u32 %v211, 4294901760
        %795 = vmatpush1.msra.mxu0 %v794
        %796 = vmatprep.subr.mxu0 0.0
        %v797 = vand.u32 %v210, 4294901760
        %798 = vmatpush1.msra.mxu0 %v797
        %799 = vmatprep.subr.mxu0 0.0
        %v800 = vand.u32 %v209, 4294901760
        %801 = vmatpush1.msra.mxu0 %v800
        %802 = vmatprep.subr.mxu0 0.0
        %v803 = vand.u32 %v208, 4294901760
        %804 = vmatpush1.msra.mxu0 %v803
        %805 = vmatprep.subr.mxu0 0.0
        %v806 = vand.u32 %v207, 4294901760
        %807 = vmatpush1.msra.mxu0 %v806
        %808 = vmatprep.subr.mxu0 0.0
        %v809 = vand.u32 %v206, 4294901760
        %810 = vmatpush1.msra.mxu0 %v809
        %811 = vmatprep.subr.mxu0 0.0
        %v812 = vand.u32 %v205, 4294901760
        %813 = vmatpush1.msra.mxu0 %v812
        %814 = vmatprep.subr.mxu0 0.0
        %v815 = vand.u32 %v204, 4294901760
        %816 = vmatpush1.msra.mxu0 %v815
        %817 = vmatprep.subr.mxu0 0.0
        %v818 = vand.u32 %v203, 4294901760
        %819 = vmatpush1.msra.mxu0 %v818
        %820 = vmatprep.subr.mxu0 0.0
        %v821 = vand.u32 %v202, 4294901760
        %822 = vmatpush1.msra.mxu0 %v821
        %823 = vmatprep.subr.mxu0 0.0
        %824 = vmatpush2.msra.mxu0 0.0
        %825 = vmatprep.subr.mxu0 0.0
        %826 = vmatpush2.msra.mxu0 0.0
        %827 = vmatprep.subr.mxu0 0.0
        %828 = vmatpush2.msra.mxu0 0.0
        %829 = vmatprep.subr.mxu0 0.0
        %830 = vmatpush2.msra.mxu0 0.0
        %831 = vmatprep.subr.mxu0 0.0
        %832 = vmatpush2.msra.mxu0 0.0
        %833 = vmatprep.subr.mxu0 0.0
        %834 = vmatpush2.msra.mxu0 0.0
        %835 = vmatprep.subr.mxu0 0.0
        %836 = vmatpush2.msra.mxu0 0.0
        %837 = vmatprep.subr.mxu0 0.0
        %838 = vmatpush2.msra.mxu0 0.0
        %839 = vmatprep.subr.mxu0 0.0
        %840 = vmatpush2.msra.mxu0 0.0
        %841 = vmatprep.subr.mxu0 0.0
        %842 = vmatpush2.msra.mxu0 0.0
        %843 = vmatprep.subr.mxu0 0.0
        %844 = vmatpush2.msra.mxu0 0.0
        %845 = vmatprep.subr.mxu0 0.0
        %846 = vmatpush2.msra.mxu0 0.0
        %847 = vmatprep.subr.mxu0 0.0
        %848 = vmatpush2.msra.mxu0 0.0
        %849 = vmatprep.subr.mxu0 0.0
        %850 = vmatpush2.msra.mxu0 0.0
        %851 = vmatprep.subr.mxu0 0.0
        %852 = vmatpush2.msra.mxu0 0.0
        %853 = vmatprep.subr.mxu0 0.0
        %854 = vmatpush2.msra.mxu0 0.0
        %855 = vmatprep.mubr.f32.mxu0 0.0
        %v856 = vand.u32 %v218, 4294901760
        %857 = vmatmul.mubr.f32.gmra.mxu0 %v856
        %v858 = vpop.f32.mrf.mxu0
        %v859 = vadd.f32 %v772, %v858
        %v860 = vpop.f32.mrf.mxu0
        %861 = vdwg.mxu0
        %v863 = vrot.slane %v859, 1
        %v866 = vadd.f32 %v219, %v859
        %v867 = vadd.f32 %v220, %v863
        %v868 = vtanh.pop %v866
        %v869 = vtanh.pop %v867
        %870 = vst [vmem:[%s194] sm:$0x1] %v868
        %871 = vst [vmem:[%s194 + $0x8] sm:$0x1] %v869
        %v872 = vld [vmem:[%s170 + $0x1] sm:$0x1]
        %v873 = vld [vmem:[%s170 + $0x9] sm:$0x1]
        %v876 = vrot.slane %v869, 7
        %vm877 = vcmask 1041409
        %v878 = vsel %vm877, %v876, %v868
        %880 = vmatprep.subr.mxu0 0.0
        %v881 = vand.u32 %v217, 4294901760
        %882 = vmatpush1.msra.mxu0 %v881
        %883 = vmatprep.subr.mxu0 0.0
        %v884 = vand.u32 %v216, 4294901760
        %885 = vmatpush1.msra.mxu0 %v884
        %886 = vmatprep.subr.mxu0 0.0
        %v887 = vand.u32 %v215, 4294901760
        %888 = vmatpush1.msra.mxu0 %v887
        %889 = vmatprep.subr.mxu0 0.0
        %v890 = vand.u32 %v214, 4294901760
        %891 = vmatpush1.msra.mxu0 %v890
        %892 = vmatprep.subr.mxu0 0.0
        %v893 = vand.u32 %v213, 4294901760
        %894 = vmatpush1.msra.mxu0 %v893
        %895 = vmatprep.subr.mxu0 0.0
        %v896 = vand.u32 %v212, 4294901760
        %897 = vmatpush1.msra.mxu0 %v896
        %898 = vmatprep.subr.mxu0 0.0
        %v899 = vand.u32 %v211, 4294901760
        %900 = vmatpush1.msra.mxu0 %v899
        %901 = vmatprep.subr.mxu0 0.0
        %v902 = vand.u32 %v210, 4294901760
        %903 = vmatpush1.msra.mxu0 %v902
        %904 = vmatprep.subr.mxu0 0.0
        %v905 = vand.u32 %v209, 4294901760
        %906 = vmatpush1.msra.mxu0 %v905
        %907 = vmatprep.subr.mxu0 0.0
        %v908 = vand.u32 %v208, 4294901760
        %909 = vmatpush1.msra.mxu0 %v908
        %910 = vmatprep.subr.mxu0 0.0
        %v911 = vand.u32 %v207, 4294901760
        %912 = vmatpush1.msra.mxu0 %v911
        %913 = vmatprep.subr.mxu0 0.0
        %v914 = vand.u32 %v206, 4294901760
        %915 = vmatpush1.msra.mxu0 %v914
        %916 = vmatprep.subr.mxu0 0.0
        %v917 = vand.u32 %v205, 4294901760
        %918 = vmatpush1.msra.mxu0 %v917
        %919 = vmatprep.subr.mxu0 0.0
        %v920 = vand.u32 %v204, 4294901760
        %921 = vmatpush1.msra.mxu0 %v920
        %922 = vmatprep.subr.mxu0 0.0
        %v923 = vand.u32 %v203, 4294901760
        %924 = vmatpush1.msra.mxu0 %v923
        %925 = vmatprep.subr.mxu0 0.0
        %v926 = vand.u32 %v202, 4294901760
        %927 = vmatpush1.msra.mxu0 %v926
        %928 = vmatprep.subr.mxu0 0.0
        %929 = vmatpush2.msra.mxu0 0.0
        %930 = vmatprep.subr.mxu0 0.0
        %931 = vmatpush2.msra.mxu0 0.0
        %932 = vmatprep.subr.mxu0 0.0
        %933 = vmatpush2.msra.mxu0 0.0
        %934 = vmatprep.subr.mxu0 0.0
        %935 = vmatpush2.msra.mxu0 0.0
        %936 = vmatprep.subr.mxu0 0.0
        %937 = vmatpush2.msra.mxu0 0.0
        %938 = vmatprep.subr.mxu0 0.0
        %939 = vmatpush2.msra.mxu0 0.0
        %940 = vmatprep.subr.mxu0 0.0
        %941 = vmatpush2.msra.mxu0 0.0
        %942 = vmatprep.subr.mxu0 0.0
        %943 = vmatpush2.msra.mxu0 0.0
        %944 = vmatprep.subr.mxu0 0.0
        %945 = vmatpush2.msra.mxu0 0.0
        %946 = vmatprep.subr.mxu0 0.0
        %947 = vmatpush2.msra.mxu0 0.0
        %948 = vmatprep.subr.mxu0 0.0
        %949 = vmatpush2.msra.mxu0 0.0
        %950 = vmatprep.subr.mxu0 0.0
        %951 = vmatpush2.msra.mxu0 0.0
        %952 = vmatprep.subr.mxu0 0.0
        %953 = vmatpush2.msra.mxu0 0.0
        %954 = vmatprep.subr.mxu0 0.0
        %955 = vmatpush2.msra.mxu0 0.0
        %956 = vmatprep.subr.mxu0 0.0
        %957 = vmatpush2.msra.mxu0 0.0
        %958 = vmatprep.subr.mxu0 0.0
        %959 = vmatpush2.msra.mxu0 0.0
        %960 = vmatprep.mubr.f32.mxu0 0.0
        %v961 = vand.u32 %v878, 4294901760
        %v962 = vsub.f32 %v878, %v961
        %v963 = vand.u32 %v962, 4294901760
        %v964 = vsub.f32 %v962, %v963
        %v965 = vand.u32 %v964, 4294901760
        %966 = vmatmul.mubr.f32.gmra.mxu0 %v965
        %v967 = vpop.f32.mrf.mxu0
        %v968 = vadd.f32 0.0, %v967
        %v969 = vpop.f32.mrf.mxu0
        %970 = vdwg.mxu0
        %971 = vmatprep.subr.mxu0 0.0
        %v972 = vand.u32 %v217, 4294901760
        %v973 = vsub.f32 %v217, %v972
        %v974 = vand.u32 %v973, 4294901760
        %v975 = vsub.f32 %v973, %v974
        %v976 = vand.u32 %v975, 4294901760
        %977 = vmatpush1.msra.mxu0 %v976
        %978 = vmatprep.subr.mxu0 0.0
        %v979 = vand.u32 %v216, 4294901760
        %v980 = vsub.f32 %v216, %v979
        %v981 = vand.u32 %v980, 4294901760
        %v982 = vsub.f32 %v980, %v981
        %v983 = vand.u32 %v982, 4294901760
        %984 = vmatpush1.msra.mxu0 %v983
        %985 = vmatprep.subr.mxu0 0.0
        %v986 = vand.u32 %v215, 4294901760
        %v987 = vsub.f32 %v215, %v986
        %v988 = vand.u32 %v987, 4294901760
        %v989 = vsub.f32 %v987, %v988
        %v990 = vand.u32 %v989, 4294901760
        %991 = vmatpush1.msra.mxu0 %v990
        %992 = vmatprep.subr.mxu0 0.0
        %v993 = vand.u32 %v214, 4294901760
        %v994 = vsub.f32 %v214, %v993
        %v995 = vand.u32 %v994, 4294901760
        %v996 = vsub.f32 %v994, %v995
        %v997 = vand.u32 %v996, 4294901760
        %998 = vmatpush1.msra.mxu0 %v997
        %999 = vmatprep.subr.mxu0 0.0
        %v1000 = vand.u32 %v213, 4294901760
        %v1001 = vsub.f32 %v213, %v1000
        %v1002 = vand.u32 %v1001, 4294901760
        %v1003 = vsub.f32 %v1001, %v1002
        %v1004 = vand.u32 %v1003, 4294901760
        %1005 = vmatpush1.msra.mxu0 %v1004
        %1006 = vmatprep.subr.mxu0 0.0
        %v1007 = vand.u32 %v212, 4294901760
        %v1008 = vsub.f32 %v212, %v1007
        %v1009 = vand.u32 %v1008, 4294901760
        %v1010 = vsub.f32 %v1008, %v1009
        %v1011 = vand.u32 %v1010, 4294901760
        %1012 = vmatpush1.msra.mxu0 %v1011
        %1013 = vmatprep.subr.mxu0 0.0
        %v1014 = vand.u32 %v211, 4294901760
        %v1015 = vsub.f32 %v211, %v1014
        %v1016 = vand.u32 %v1015, 4294901760
        %v1017 = vsub.f32 %v1015, %v1016
        %v1018 = vand.u32 %v1017, 4294901760
        %1019 = vmatpush1.msra.mxu0 %v1018
        %1020 = vmatprep.subr.mxu0 0.0
        %v1021 = vand.u32 %v210, 4294901760
        %v1022 = vsub.f32 %v210, %v1021
        %v1023 = vand.u32 %v1022, 4294901760
        %v1024 = vsub.f32 %v1022, %v1023
        %v1025 = vand.u32 %v1024, 4294901760
        %1026 = vmatpush1.msra.mxu0 %v1025
        %1027 = vmatprep.subr.mxu0 0.0
        %v1028 = vand.u32 %v209, 4294901760
        %v1029 = vsub.f32 %v209, %v1028
        %v1030 = vand.u32 %v1029, 4294901760
        %v1031 = vsub.f32 %v1029, %v1030
        %v1032 = vand.u32 %v1031, 4294901760
        %1033 = vmatpush1.msra.mxu0 %v1032
        %1034 = vmatprep.subr.mxu0 0.0
        %v1035 = vand.u32 %v208, 4294901760
        %v1036 = vsub.f32 %v208, %v1035
        %v1037 = vand.u32 %v1036, 4294901760
        %v1038 = vsub.f32 %v1036, %v1037
        %v1039 = vand.u32 %v1038, 4294901760
        %1040 = vmatpush1.msra.mxu0 %v1039
        %1041 = vmatprep.subr.mxu0 0.0
        %v1042 = vand.u32 %v207, 4294901760
        %v1043 = vsub.f32 %v207, %v1042
        %v1044 = vand.u32 %v1043, 4294901760
        %v1045 = vsub.f32 %v1043, %v1044
        %v1046 = vand.u32 %v1045, 4294901760
        %1047 = vmatpush1.msra.mxu0 %v1046
        %1048 = vmatprep.subr.mxu0 0.0
        %v1049 = vand.u32 %v206, 4294901760
        %v1050 = vsub.f32 %v206, %v1049
        %v1051 = vand.u32 %v1050, 4294901760
        %v1052 = vsub.f32 %v1050, %v1051
        %v1053 = vand.u32 %v1052, 4294901760
        %1054 = vmatpush1.msra.mxu0 %v1053
        %1055 = vmatprep.subr.mxu0 0.0
        %v1056 = vand.u32 %v205, 4294901760
        %v1057 = vsub.f32 %v205, %v1056
        %v1058 = vand.u32 %v1057, 4294901760
        %v1059 = vsub.f32 %v1057, %v1058
        %v1060 = vand.u32 %v1059, 4294901760
        %1061 = vmatpush1.msra.mxu0 %v1060
        %1062 = vmatprep.subr.mxu0 0.0
        %v1063 = vand.u32 %v204, 4294901760
        %v1064 = vsub.f32 %v204, %v1063
        %v1065 = vand.u32 %v1064, 4294901760
        %v1066 = vsub.f32 %v1064, %v1065
        %v1067 = vand.u32 %v1066, 4294901760
        %1068 = vmatpush1.msra.mxu0 %v1067
        %1069 = vmatprep.subr.mxu0 0.0
        %v1070 = vand.u32 %v203, 4294901760
        %v1071 = vsub.f32 %v203, %v1070
        %v1072 = vand.u32 %v1071, 4294901760
        %v1073 = vsub.f32 %v1071, %v1072
        %v1074 = vand.u32 %v1073, 4294901760
        %1075 = vmatpush1.msra.mxu0 %v1074
        %1076 = vmatprep.subr.mxu0 0.0
        %v1077 = vand.u32 %v202, 4294901760
        %v1078 = vsub.f32 %v202, %v1077
        %v1079 = vand.u32 %v1078, 4294901760
        %v1080 = vsub.f32 %v1078, %v1079
        %v1081 = vand.u32 %v1080, 4294901760
        %1082 = vmatpush1.msra.mxu0 %v1081
        %1083 = vmatprep.subr.mxu0 0.0
        %1084 = vmatpush2.msra.mxu0 0.0
        %1085 = vmatprep.subr.mxu0 0.0
        %1086 = vmatpush2.msra.mxu0 0.0
        %1087 = vmatprep.subr.mxu0 0.0
        %1088 = vmatpush2.msra.mxu0 0.0
        %1089 = vmatprep.subr.mxu0 0.0
        %1090 = vmatpush2.msra.mxu0 0.0
        %1091 = vmatprep.subr.mxu0 0.0
        %1092 = vmatpush2.msra.mxu0 0.0
        %1093 = vmatprep.subr.mxu0 0.0
        %1094 = vmatpush2.msra.mxu0 0.0
        %1095 = vmatprep.subr.mxu0 0.0
        %1096 = vmatpush2.msra.mxu0 0.0
        %1097 = vmatprep.subr.mxu0 0.0
        %1098 = vmatpush2.msra.mxu0 0.0
        %1099 = vmatprep.subr.mxu0 0.0
        %1100 = vmatpush2.msra.mxu0 0.0
        %1101 = vmatprep.subr.mxu0 0.0
        %1102 = vmatpush2.msra.mxu0 0.0
        %1103 = vmatprep.subr.mxu0 0.0
        %1104 = vmatpush2.msra.mxu0 0.0
        %1105 = vmatprep.subr.mxu0 0.0
        %1106 = vmatpush2.msra.mxu0 0.0
        %1107 = vmatprep.subr.mxu0 0.0
        %1108 = vmatpush2.msra.mxu0 0.0
        %1109 = vmatprep.subr.mxu0 0.0
        %1110 = vmatpush2.msra.mxu0 0.0
        %1111 = vmatprep.subr.mxu0 0.0
        %1112 = vmatpush2.msra.mxu0 0.0
        %1113 = vmatprep.subr.mxu0 0.0
        %1114 = vmatpush2.msra.mxu0 0.0
        %1115 = vmatprep.mubr.f32.mxu0 0.0
        %v1116 = vand.u32 %v878, 4294901760
        %1117 = vmatmul.mubr.f32.gmra.mxu0 %v1116
        %v1118 = vpop.f32.mrf.mxu0
        %v1119 = vadd.f32 %v968, %v1118
        %v1120 = vpop.f32.mrf.mxu0
        %1121 = vdwg.mxu0
        %1122 = vmatprep.subr.mxu0 0.0
        %v1123 = vand.u32 %v217, 4294901760
        %v1124 = vsub.f32 %v217, %v1123
        %1125 = vmatpush1.msra.mxu0 %v1124
        %1126 = vmatprep.subr.mxu0 0.0
        %v1127 = vand.u32 %v216, 4294901760
        %v1128 = vsub.f32 %v216, %v1127
        %1129 = vmatpush1.msra.mxu0 %v1128
        %1130 = vmatprep.subr.mxu0 0.0
        %v1131 = vand.u32 %v215, 4294901760
        %v1132 = vsub.f32 %v215, %v1131
        %1133 = vmatpush1.msra.mxu0 %v1132
        %1134 = vmatprep.subr.mxu0 0.0
        %v1135 = vand.u32 %v214, 4294901760
        %v1136 = vsub.f32 %v214, %v1135
        %1137 = vmatpush1.msra.mxu0 %v1136
        %1138 = vmatprep.subr.mxu0 0.0
        %v1139 = vand.u32 %v213, 4294901760
        %v1140 = vsub.f32 %v213, %v1139
        %1141 = vmatpush1.msra.mxu0 %v1140
        %1142 = vmatprep.subr.mxu0 0.0
        %v1143 = vand.u32 %v212, 4294901760
        %v1144 = vsub.f32 %v212, %v1143
        %1145 = vmatpush1.msra.mxu0 %v1144
        %1146 = vmatprep.subr.mxu0 0.0
        %v1147 = vand.u32 %v211, 4294901760
        %v1148 = vsub.f32 %v211, %v1147
        %1149 = vmatpush1.msra.mxu0 %v1148
        %1150 = vmatprep.subr.mxu0 0.0
        %v1151 = vand.u32 %v210, 4294901760
        %v1152 = vsub.f32 %v210, %v1151
        %1153 = vmatpush1.msra.mxu0 %v1152
        %1154 = vmatprep.subr.mxu0 0.0
        %v1155 = vand.u32 %v209, 4294901760
        %v1156 = vsub.f32 %v209, %v1155
        %1157 = vmatpush1.msra.mxu0 %v1156
        %1158 = vmatprep.subr.mxu0 0.0
        %v1159 = vand.u32 %v208, 4294901760
        %v1160 = vsub.f32 %v208, %v1159
        %1161 = vmatpush1.msra.mxu0 %v1160
        %1162 = vmatprep.subr.mxu0 0.0
        %v1163 = vand.u32 %v207, 4294901760
        %v1164 = vsub.f32 %v207, %v1163
        %1165 = vmatpush1.msra.mxu0 %v1164
        %1166 = vmatprep.subr.mxu0 0.0
        %v1167 = vand.u32 %v206, 4294901760
        %v1168 = vsub.f32 %v206, %v1167
        %1169 = vmatpush1.msra.mxu0 %v1168
        %1170 = vmatprep.subr.mxu0 0.0
        %v1171 = vand.u32 %v205, 4294901760
        %v1172 = vsub.f32 %v205, %v1171
        %1173 = vmatpush1.msra.mxu0 %v1172
        %1174 = vmatprep.subr.mxu0 0.0
        %v1175 = vand.u32 %v204, 4294901760
        %v1176 = vsub.f32 %v204, %v1175
        %1177 = vmatpush1.msra.mxu0 %v1176
        %1178 = vmatprep.subr.mxu0 0.0
        %v1179 = vand.u32 %v203, 4294901760
        %v1180 = vsub.f32 %v203, %v1179
        %1181 = vmatpush1.msra.mxu0 %v1180
        %1182 = vmatprep.subr.mxu0 0.0
        %v1183 = vand.u32 %v202, 4294901760
        %v1184 = vsub.f32 %v202, %v1183
        %1185 = vmatpush1.msra.mxu0 %v1184
        %1186 = vmatprep.subr.mxu0 0.0
        %1187 = vmatpush2.msra.mxu0 0.0
        %1188 = vmatprep.subr.mxu0 0.0
        %1189 = vmatpush2.msra.mxu0 0.0
        %1190 = vmatprep.subr.mxu0 0.0
        %1191 = vmatpush2.msra.mxu0 0.0
        %1192 = vmatprep.subr.mxu0 0.0
        %1193 = vmatpush2.msra.mxu0 0.0
        %1194 = vmatprep.subr.mxu0 0.0
        %1195 = vmatpush2.msra.mxu0 0.0
        %1196 = vmatprep.subr.mxu0 0.0
        %1197 = vmatpush2.msra.mxu0 0.0
        %1198 = vmatprep.subr.mxu0 0.0
        %1199 = vmatpush2.msra.mxu0 0.0
        %1200 = vmatprep.subr.mxu0 0.0
        %1201 = vmatpush2.msra.mxu0 0.0
        %1202 = vmatprep.subr.mxu0 0.0
        %1203 = vmatpush2.msra.mxu0 0.0
        %1204 = vmatprep.subr.mxu0 0.0
        %1205 = vmatpush2.msra.mxu0 0.0
        %1206 = vmatprep.subr.mxu0 0.0
        %1207 = vmatpush2.msra.mxu0 0.0
        %1208 = vmatprep.subr.mxu0 0.0
        %1209 = vmatpush2.msra.mxu0 0.0
        %1210 = vmatprep.subr.mxu0 0.0
        %1211 = vmatpush2.msra.mxu0 0.0
        %1212 = vmatprep.subr.mxu0 0.0
        %1213 = vmatpush2.msra.mxu0 0.0
        %1214 = vmatprep.subr.mxu0 0.0
        %1215 = vmatpush2.msra.mxu0 0.0
        %1216 = vmatprep.subr.mxu0 0.0
        %1217 = vmatpush2.msra.mxu0 0.0
        %1218 = vmatprep.mubr.f32.mxu0 0.0
        %v1219 = vand.u32 %v878, 4294901760
        %v1220 = vsub.f32 %v878, %v1219
        %1221 = vmatmul.mubr.f32.gmra.mxu0 %v1220
        %v1222 = vpop.f32.mrf.mxu0
        %v1223 = vadd.f32 %v1119, %v1222
        %v1224 = vpop.f32.mrf.mxu0
        %1225 = vdwg.mxu0
        %1226 = vmatprep.subr.mxu0 0.0
        %v1227 = vand.u32 %v217, 4294901760
        %1228 = vmatpush1.msra.mxu0 %v1227
        %1229 = vmatprep.subr.mxu0 0.0
        %v1230 = vand.u32 %v216, 4294901760
        %1231 = vmatpush1.msra.mxu0 %v1230
        %1232 = vmatprep.subr.mxu0 0.0
        %v1233 = vand.u32 %v215, 4294901760
        %1234 = vmatpush1.msra.mxu0 %v1233
        %1235 = vmatprep.subr.mxu0 0.0
        %v1236 = vand.u32 %v214, 4294901760
        %1237 = vmatpush1.msra.mxu0 %v1236
        %1238 = vmatprep.subr.mxu0 0.0
        %v1239 = vand.u32 %v213, 4294901760
        %1240 = vmatpush1.msra.mxu0 %v1239
        %1241 = vmatprep.subr.mxu0 0.0
        %v1242 = vand.u32 %v212, 4294901760
        %1243 = vmatpush1.msra.mxu0 %v1242
        %1244 = vmatprep.subr.mxu0 0.0
        %v1245 = vand.u32 %v211, 4294901760
        %1246 = vmatpush1.msra.mxu0 %v1245
        %1247 = vmatprep.subr.mxu0 0.0
        %v1248 = vand.u32 %v210, 4294901760
        %1249 = vmatpush1.msra.mxu0 %v1248
        %1250 = vmatprep.subr.mxu0 0.0
        %v1251 = vand.u32 %v209, 4294901760
        %1252 = vmatpush1.msra.mxu0 %v1251
        %1253 = vmatprep.subr.mxu0 0.0
        %v1254 = vand.u32 %v208, 4294901760
        %1255 = vmatpush1.msra.mxu0 %v1254
        %1256 = vmatprep.subr.mxu0 0.0
        %v1257 = vand.u32 %v207, 4294901760
        %1258 = vmatpush1.msra.mxu0 %v1257
        %1259 = vmatprep.subr.mxu0 0.0
        %v1260 = vand.u32 %v206, 4294901760
        %1261 = vmatpush1.msra.mxu0 %v1260
        %1262 = vmatprep.subr.mxu0 0.0
        %v1263 = vand.u32 %v205, 4294901760
        %1264 = vmatpush1.msra.mxu0 %v1263
        %1265 = vmatprep.subr.mxu0 0.0
        %v1266 = vand.u32 %v204, 4294901760
        %1267 = vmatpush1.msra.mxu0 %v1266
        %1268 = vmatprep.subr.mxu0 0.0
        %v1269 = vand.u32 %v203, 4294901760
        %1270 = vmatpush1.msra.mxu0 %v1269
        %1271 = vmatprep.subr.mxu0 0.0
        %v1272 = vand.u32 %v202, 4294901760
        %1273 = vmatpush1.msra.mxu0 %v1272
        %1274 = vmatprep.subr.mxu0 0.0
        %1275 = vmatpush2.msra.mxu0 0.0
        %1276 = vmatprep.subr.mxu0 0.0
        %1277 = vmatpush2.msra.mxu0 0.0
        %1278 = vmatprep.subr.mxu0 0.0
        %1279 = vmatpush2.msra.mxu0 0.0
        %1280 = vmatprep.subr.mxu0 0.0
        %1281 = vmatpush2.msra.mxu0 0.0
        %1282 = vmatprep.subr.mxu0 0.0
        %1283 = vmatpush2.msra.mxu0 0.0
        %1284 = vmatprep.subr.mxu0 0.0
        %1285 = vmatpush2.msra.mxu0 0.0
        %1286 = vmatprep.subr.mxu0 0.0
        %1287 = vmatpush2.msra.mxu0 0.0
        %1288 = vmatprep.subr.mxu0 0.0
        %1289 = vmatpush2.msra.mxu0 0.0
        %1290 = vmatprep.subr.mxu0 0.0
        %1291 = vmatpush2.msra.mxu0 0.0
        %1292 = vmatprep.subr.mxu0 0.0
        %1293 = vmatpush2.msra.mxu0 0.0
        %1294 = vmatprep.subr.mxu0 0.0
        %1295 = vmatpush2.msra.mxu0 0.0
        %1296 = vmatprep.subr.mxu0 0.0
        %1297 = vmatpush2.msra.mxu0 0.0
        %1298 = vmatprep.subr.mxu0 0.0
        %1299 = vmatpush2.msra.mxu0 0.0
        %1300 = vmatprep.subr.mxu0 0.0
        %1301 = vmatpush2.msra.mxu0 0.0
        %1302 = vmatprep.subr.mxu0 0.0
        %1303 = vmatpush2.msra.mxu0 0.0
        %1304 = vmatprep.subr.mxu0 0.0
        %1305 = vmatpush2.msra.mxu0 0.0
        %1306 = vmatprep.mubr.f32.mxu0 0.0
        %v1307 = vand.u32 %v878, 4294901760
        %v1308 = vsub.f32 %v878, %v1307
        %v1309 = vand.u32 %v1308, 4294901760
        %1310 = vmatmul.mubr.f32.gmra.mxu0 %v1309
        %v1311 = vpop.f32.mrf.mxu0
        %v1312 = vadd.f32 %v1223, %v1311
        %v1313 = vpop.f32.mrf.mxu0
        %1314 = vdwg.mxu0
        %1315 = vmatprep.subr.mxu0 0.0
        %v1316 = vand.u32 %v217, 4294901760
        %v1317 = vsub.f32 %v217, %v1316
        %v1318 = vand.u32 %v1317, 4294901760
        %1319 = vmatpush1.msra.mxu0 %v1318
        %1320 = vmatprep.subr.mxu0 0.0
        %v1321 = vand.u32 %v216, 4294901760
        %v1322 = vsub.f32 %v216, %v1321
        %v1323 = vand.u32 %v1322, 4294901760
        %1324 = vmatpush1.msra.mxu0 %v1323
        %1325 = vmatprep.subr.mxu0 0.0
        %v1326 = vand.u32 %v215, 4294901760
        %v1327 = vsub.f32 %v215, %v1326
        %v1328 = vand.u32 %v1327, 4294901760
        %1329 = vmatpush1.msra.mxu0 %v1328
        %1330 = vmatprep.subr.mxu0 0.0
        %v1331 = vand.u32 %v214, 4294901760
        %v1332 = vsub.f32 %v214, %v1331
        %v1333 = vand.u32 %v1332, 4294901760
        %1334 = vmatpush1.msra.mxu0 %v1333
        %1335 = vmatprep.subr.mxu0 0.0
        %v1336 = vand.u32 %v213, 4294901760
        %v1337 = vsub.f32 %v213, %v1336
        %v1338 = vand.u32 %v1337, 4294901760
        %1339 = vmatpush1.msra.mxu0 %v1338
        %1340 = vmatprep.subr.mxu0 0.0
        %v1341 = vand.u32 %v212, 4294901760
        %v1342 = vsub.f32 %v212, %v1341
        %v1343 = vand.u32 %v1342, 4294901760
        %1344 = vmatpush1.msra.mxu0 %v1343
        %1345 = vmatprep.subr.mxu0 0.0
        %v1346 = vand.u32 %v211, 4294901760
        %v1347 = vsub.f32 %v211, %v1346
        %v1348 = vand.u32 %v1347, 4294901760
        %1349 = vmatpush1.msra.mxu0 %v1348
        %1350 = vmatprep.subr.mxu0 0.0
        %v1351 = vand.u32 %v210, 4294901760
        %v1352 = vsub.f32 %v210, %v1351
        %v1353 = vand.u32 %v1352, 4294901760
        %1354 = vmatpush1.msra.mxu0 %v1353
        %1355 = vmatprep.subr.mxu0 0.0
        %v1356 = vand.u32 %v209, 4294901760
        %v1357 = vsub.f32 %v209, %v1356
        %v1358 = vand.u32 %v1357, 4294901760
        %1359 = vmatpush1.msra.mxu0 %v1358
        %1360 = vmatprep.subr.mxu0 0.0
        %v1361 = vand.u32 %v208, 4294901760
        %v1362 = vsub.f32 %v208, %v1361
        %v1363 = vand.u32 %v1362, 4294901760
        %1364 = vmatpush1.msra.mxu0 %v1363
        %1365 = vmatprep.subr.mxu0 0.0
        %v1366 = vand.u32 %v207, 4294901760
        %v1367 = vsub.f32 %v207, %v1366
        %v1368 = vand.u32 %v1367, 4294901760
        %1369 = vmatpush1.msra.mxu0 %v1368
        %1370 = vmatprep.subr.mxu0 0.0
        %v1371 = vand.u32 %v206, 4294901760
        %v1372 = vsub.f32 %v206, %v1371
        %v1373 = vand.u32 %v1372, 4294901760
        %1374 = vmatpush1.msra.mxu0 %v1373
        %1375 = vmatprep.subr.mxu0 0.0
        %v1376 = vand.u32 %v205, 4294901760
        %v1377 = vsub.f32 %v205, %v1376
        %v1378 = vand.u32 %v1377, 4294901760
        %1379 = vmatpush1.msra.mxu0 %v1378
        %1380 = vmatprep.subr.mxu0 0.0
        %v1381 = vand.u32 %v204, 4294901760
        %v1382 = vsub.f32 %v204, %v1381
        %v1383 = vand.u32 %v1382, 4294901760
        %1384 = vmatpush1.msra.mxu0 %v1383
        %1385 = vmatprep.subr.mxu0 0.0
        %v1386 = vand.u32 %v203, 4294901760
        %v1387 = vsub.f32 %v203, %v1386
        %v1388 = vand.u32 %v1387, 4294901760
        %1389 = vmatpush1.msra.mxu0 %v1388
        %1390 = vmatprep.subr.mxu0 0.0
        %v1391 = vand.u32 %v202, 4294901760
        %v1392 = vsub.f32 %v202, %v1391
        %v1393 = vand.u32 %v1392, 4294901760
        %1394 = vmatpush1.msra.mxu0 %v1393
        %1395 = vmatprep.subr.mxu0 0.0
        %1396 = vmatpush2.msra.mxu0 0.0
        %1397 = vmatprep.subr.mxu0 0.0
        %1398 = vmatpush2.msra.mxu0 0.0
        %1399 = vmatprep.subr.mxu0 0.0
        %1400 = vmatpush2.msra.mxu0 0.0
        %1401 = vmatprep.subr.mxu0 0.0
        %1402 = vmatpush2.msra.mxu0 0.0
        %1403 = vmatprep.subr.mxu0 0.0
        %1404 = vmatpush2.msra.mxu0 0.0
        %1405 = vmatprep.subr.mxu0 0.0
        %1406 = vmatpush2.msra.mxu0 0.0
        %1407 = vmatprep.subr.mxu0 0.0
        %1408 = vmatpush2.msra.mxu0 0.0
        %1409 = vmatprep.subr.mxu0 0.0
        %1410 = vmatpush2.msra.mxu0 0.0
        %1411 = vmatprep.subr.mxu0 0.0
        %1412 = vmatpush2.msra.mxu0 0.0
        %1413 = vmatprep.subr.mxu0 0.0
        %1414 = vmatpush2.msra.mxu0 0.0
        %1415 = vmatprep.subr.mxu0 0.0
        %1416 = vmatpush2.msra.mxu0 0.0
        %1417 = vmatprep.subr.mxu0 0.0
        %1418 = vmatpush2.msra.mxu0 0.0
        %1419 = vmatprep.subr.mxu0 0.0
        %1420 = vmatpush2.msra.mxu0 0.0
        %1421 = vmatprep.subr.mxu0 0.0
        %1422 = vmatpush2.msra.mxu0 0.0
        %1423 = vmatprep.subr.mxu0 0.0
        %1424 = vmatpush2.msra.mxu0 0.0
        %1425 = vmatprep.subr.mxu0 0.0
        %1426 = vmatpush2.msra.mxu0 0.0
        %1427 = vmatprep.mubr.f32.mxu0 0.0
        %v1428 = vand.u32 %v878, 4294901760
        %1429 = vmatmul.mubr.f32.gmra.mxu0 %v1428
        %v1430 = vpop.f32.mrf.mxu0
        %v1431 = vadd.f32 %v1312, %v1430
        %v1432 = vpop.f32.mrf.mxu0
        %1433 = vdwg.mxu0
        %1434 = vmatprep.subr.mxu0 0.0
        %v1435 = vand.u32 %v217, 4294901760
        %1436 = vmatpush1.msra.mxu0 %v1435
        %1437 = vmatprep.subr.mxu0 0.0
        %v1438 = vand.u32 %v216, 4294901760
        %1439 = vmatpush1.msra.mxu0 %v1438
        %1440 = vmatprep.subr.mxu0 0.0
        %v1441 = vand.u32 %v215, 4294901760
        %1442 = vmatpush1.msra.mxu0 %v1441
        %1443 = vmatprep.subr.mxu0 0.0
        %v1444 = vand.u32 %v214, 4294901760
        %1445 = vmatpush1.msra.mxu0 %v1444
        %1446 = vmatprep.subr.mxu0 0.0
        %v1447 = vand.u32 %v213, 4294901760
        %1448 = vmatpush1.msra.mxu0 %v1447
        %1449 = vmatprep.subr.mxu0 0.0
        %v1450 = vand.u32 %v212, 4294901760
        %1451 = vmatpush1.msra.mxu0 %v1450
        %1452 = vmatprep.subr.mxu0 0.0
        %v1453 = vand.u32 %v211, 4294901760
        %1454 = vmatpush1.msra.mxu0 %v1453
        %1455 = vmatprep.subr.mxu0 0.0
        %v1456 = vand.u32 %v210, 4294901760
        %1457 = vmatpush1.msra.mxu0 %v1456
        %1458 = vmatprep.subr.mxu0 0.0
        %v1459 = vand.u32 %v209, 4294901760
        %1460 = vmatpush1.msra.mxu0 %v1459
        %1461 = vmatprep.subr.mxu0 0.0
        %v1462 = vand.u32 %v208, 4294901760
        %1463 = vmatpush1.msra.mxu0 %v1462
        %1464 = vmatprep.subr.mxu0 0.0
        %v1465 = vand.u32 %v207, 4294901760
        %1466 = vmatpush1.msra.mxu0 %v1465
        %1467 = vmatprep.subr.mxu0 0.0
        %v1468 = vand.u32 %v206, 4294901760
        %1469 = vmatpush1.msra.mxu0 %v1468
        %1470 = vmatprep.subr.mxu0 0.0
        %v1471 = vand.u32 %v205, 4294901760
        %1472 = vmatpush1.msra.mxu0 %v1471
        %1473 = vmatprep.subr.mxu0 0.0
        %v1474 = vand.u32 %v204, 4294901760
        %1475 = vmatpush1.msra.mxu0 %v1474
        %1476 = vmatprep.subr.mxu0 0.0
        %v1477 = vand.u32 %v203, 4294901760
        %1478 = vmatpush1.msra.mxu0 %v1477
        %1479 = vmatprep.subr.mxu0 0.0
        %v1480 = vand.u32 %v202, 4294901760
        %1481 = vmatpush1.msra.mxu0 %v1480
        %1482 = vmatprep.subr.mxu0 0.0
        %1483 = vmatpush2.msra.mxu0 0.0
        %1484 = vmatprep.subr.mxu0 0.0
        %1485 = vmatpush2.msra.mxu0 0.0
        %1486 = vmatprep.subr.mxu0 0.0
        %1487 = vmatpush2.msra.mxu0 0.0
        %1488 = vmatprep.subr.mxu0 0.0
        %1489 = vmatpush2.msra.mxu0 0.0
        %1490 = vmatprep.subr.mxu0 0.0
        %1491 = vmatpush2.msra.mxu0 0.0
        %1492 = vmatprep.subr.mxu0 0.0
        %1493 = vmatpush2.msra.mxu0 0.0
        %1494 = vmatprep.subr.mxu0 0.0
        %1495 = vmatpush2.msra.mxu0 0.0
        %1496 = vmatprep.subr.mxu0 0.0
        %1497 = vmatpush2.msra.mxu0 0.0
        %1498 = vmatprep.subr.mxu0 0.0
        %1499 = vmatpush2.msra.mxu0 0.0
        %1500 = vmatprep.subr.mxu0 0.0
        %1501 = vmatpush2.msra.mxu0 0.0
        %1502 = vmatprep.subr.mxu0 0.0
        %1503 = vmatpush2.msra.mxu0 0.0
        %1504 = vmatprep.subr.mxu0 0.0
        %1505 = vmatpush2.msra.mxu0 0.0
        %1506 = vmatprep.subr.mxu0 0.0
        %1507 = vmatpush2.msra.mxu0 0.0
        %1508 = vmatprep.subr.mxu0 0.0
        %1509 = vmatpush2.msra.mxu0 0.0
        %1510 = vmatprep.subr.mxu0 0.0
        %1511 = vmatpush2.msra.mxu0 0.0
        %1512 = vmatprep.subr.mxu0 0.0
        %1513 = vmatpush2.msra.mxu0 0.0
        %1514 = vmatprep.mubr.f32.mxu0 0.0
        %v1515 = vand.u32 %v878, 4294901760
        %1516 = vmatmul.mubr.f32.gmra.mxu0 %v1515
        %v1517 = vpop.f32.mrf.mxu0
        %v1518 = vadd.f32 %v1431, %v1517
        %v1519 = vpop.f32.mrf.mxu0
        %1520 = vdwg.mxu0
        %v1522 = vrot.slane %v1518, 1
        %v1525 = vadd.f32 %v872, %v1518
        %v1526 = vadd.f32 %v873, %v1522
        %v1527 = vtanh.pop %v1525
        %v1528 = vtanh.pop %v1526
        %1529 = vst [vmem:[%s194 + $0x1] sm:$0x1] %v1527
        %1530 = vst [vmem:[%s194 + $0x9] sm:$0x1] %v1528
        %v1531 = vld [vmem:[%s170 + $0x2] sm:$0x1]
        %v1532 = vld [vmem:[%s170 + $0xa] sm:$0x1]
        %v1535 = vrot.slane %v1528, 7
        %v1536 = vsel %vm877, %v1535, %v1527
        %1538 = vmatprep.subr.mxu0 0.0
        %v1539 = vand.u32 %v217, 4294901760
        %1540 = vmatpush1.msra.mxu0 %v1539
        %1541 = vmatprep.subr.mxu0 0.0
        %v1542 = vand.u32 %v216, 4294901760
        %1543 = vmatpush1.msra.mxu0 %v1542
        %1544 = vmatprep.subr.mxu0 0.0
        %v1545 = vand.u32 %v215, 4294901760
        %1546 = vmatpush1.msra.mxu0 %v1545
        %1547 = vmatprep.subr.mxu0 0.0
        %v1548 = vand.u32 %v214, 4294901760
        %1549 = vmatpush1.msra.mxu0 %v1548
        %1550 = vmatprep.subr.mxu0 0.0
        %v1551 = vand.u32 %v213, 4294901760
        %1552 = vmatpush1.msra.mxu0 %v1551
        %1553 = vmatprep.subr.mxu0 0.0
        %v1554 = vand.u32 %v212, 4294901760
        %1555 = vmatpush1.msra.mxu0 %v1554
        %1556 = vmatprep.subr.mxu0 0.0
        %v1557 = vand.u32 %v211, 4294901760
        %1558 = vmatpush1.msra.mxu0 %v1557
        %1559 = vmatprep.subr.mxu0 0.0
        %v1560 = vand.u32 %v210, 4294901760
        %1561 = vmatpush1.msra.mxu0 %v1560
        %1562 = vmatprep.subr.mxu0 0.0
        %v1563 = vand.u32 %v209, 4294901760
        %1564 = vmatpush1.msra.mxu0 %v1563
        %1565 = vmatprep.subr.mxu0 0.0
        %v1566 = vand.u32 %v208, 4294901760
        %1567 = vmatpush1.msra.mxu0 %v1566
        %1568 = vmatprep.subr.mxu0 0.0
        %v1569 = vand.u32 %v207, 4294901760
        %1570 = vmatpush1.msra.mxu0 %v1569
        %1571 = vmatprep.subr.mxu0 0.0
        %v1572 = vand.u32 %v206, 4294901760
        %1573 = vmatpush1.msra.mxu0 %v1572
        %1574 = vmatprep.subr.mxu0 0.0
        %v1575 = vand.u32 %v205, 4294901760
        %1576 = vmatpush1.msra.mxu0 %v1575
        %1577 = vmatprep.subr.mxu0 0.0
        %v1578 = vand.u32 %v204, 4294901760
        %1579 = vmatpush1.msra.mxu0 %v1578
        %1580 = vmatprep.subr.mxu0 0.0
        %v1581 = vand.u32 %v203, 4294901760
        %1582 = vmatpush1.msra.mxu0 %v1581
        %1583 = vmatprep.subr.mxu0 0.0
        %v1584 = vand.u32 %v202, 4294901760
        %1585 = vmatpush1.msra.mxu0 %v1584
        %1586 = vmatprep.subr.mxu0 0.0
        %1587 = vmatpush2.msra.mxu0 0.0
        %1588 = vmatprep.subr.mxu0 0.0
        %1589 = vmatpush2.msra.mxu0 0.0
        %1590 = vmatprep.subr.mxu0 0.0
        %1591 = vmatpush2.msra.mxu0 0.0
        %1592 = vmatprep.subr.mxu0 0.0
        %1593 = vmatpush2.msra.mxu0 0.0
        %1594 = vmatprep.subr.mxu0 0.0
        %1595 = vmatpush2.msra.mxu0 0.0
        %1596 = vmatprep.subr.mxu0 0.0
        %1597 = vmatpush2.msra.mxu0 0.0
        %1598 = vmatprep.subr.mxu0 0.0
        %1599 = vmatpush2.msra.mxu0 0.0
        %1600 = vmatprep.subr.mxu0 0.0
        %1601 = vmatpush2.msra.mxu0 0.0
        %1602 = vmatprep.subr.mxu0 0.0
        %1603 = vmatpush2.msra.mxu0 0.0
        %1604 = vmatprep.subr.mxu0 0.0
        %1605 = vmatpush2.msra.mxu0 0.0
        %1606 = vmatprep.subr.mxu0 0.0
        %1607 = vmatpush2.msra.mxu0 0.0
        %1608 = vmatprep.subr.mxu0 0.0
        %1609 = vmatpush2.msra.mxu0 0.0
        %1610 = vmatprep.subr.mxu0 0.0
        %1611 = vmatpush2.msra.mxu0 0.0
        %1612 = vmatprep.subr.mxu0 0.0
        %1613 = vmatpush2.msra.mxu0 0.0
        %1614 = vmatprep.subr.mxu0 0.0
        %1615 = vmatpush2.msra.mxu0 0.0
        %1616 = vmatprep.subr.mxu0 0.0
        %1617 = vmatpush2.msra.mxu0 0.0
        %1618 = vmatprep.mubr.f32.mxu0 0.0
        %v1619 = vand.u32 %v1536, 4294901760
        %v1620 = vsub.f32 %v1536, %v1619
        %v1621 = vand.u32 %v1620, 4294901760
        %v1622 = vsub.f32 %v1620, %v1621
        %v1623 = vand.u32 %v1622, 4294901760
        %1624 = vmatmul.mubr.f32.gmra.mxu0 %v1623
        %v1625 = vpop.f32.mrf.mxu0
        %v1626 = vadd.f32 0.0, %v1625
        %v1627 = vpop.f32.mrf.mxu0
        %1628 = vdwg.mxu0
        %1629 = vmatprep.subr.mxu0 0.0
        %v1630 = vand.u32 %v217, 4294901760
        %v1631 = vsub.f32 %v217, %v1630
        %v1632 = vand.u32 %v1631, 4294901760
        %v1633 = vsub.f32 %v1631, %v1632
        %v1634 = vand.u32 %v1633, 4294901760
        %1635 = vmatpush1.msra.mxu0 %v1634
        %1636 = vmatprep.subr.mxu0 0.0
        %v1637 = vand.u32 %v216, 4294901760
        %v1638 = vsub.f32 %v216, %v1637
        %v1639 = vand.u32 %v1638, 4294901760
        %v1640 = vsub.f32 %v1638, %v1639
        %v1641 = vand.u32 %v1640, 4294901760
        %1642 = vmatpush1.msra.mxu0 %v1641
        %1643 = vmatprep.subr.mxu0 0.0
        %v1644 = vand.u32 %v215, 4294901760
        %v1645 = vsub.f32 %v215, %v1644
        %v1646 = vand.u32 %v1645, 4294901760
        %v1647 = vsub.f32 %v1645, %v1646
        %v1648 = vand.u32 %v1647, 4294901760
        %1649 = vmatpush1.msra.mxu0 %v1648
        %1650 = vmatprep.subr.mxu0 0.0
        %v1651 = vand.u32 %v214, 4294901760
        %v1652 = vsub.f32 %v214, %v1651
        %v1653 = vand.u32 %v1652, 4294901760
        %v1654 = vsub.f32 %v1652, %v1653
        %v1655 = vand.u32 %v1654, 4294901760
        %1656 = vmatpush1.msra.mxu0 %v1655
        %1657 = vmatprep.subr.mxu0 0.0
        %v1658 = vand.u32 %v213, 4294901760
        %v1659 = vsub.f32 %v213, %v1658
        %v1660 = vand.u32 %v1659, 4294901760
        %v1661 = vsub.f32 %v1659, %v1660
        %v1662 = vand.u32 %v1661, 4294901760
        %1663 = vmatpush1.msra.mxu0 %v1662
        %1664 = vmatprep.subr.mxu0 0.0
        %v1665 = vand.u32 %v212, 4294901760
        %v1666 = vsub.f32 %v212, %v1665
        %v1667 = vand.u32 %v1666, 4294901760
        %v1668 = vsub.f32 %v1666, %v1667
        %v1669 = vand.u32 %v1668, 4294901760
        %1670 = vmatpush1.msra.mxu0 %v1669
        %1671 = vmatprep.subr.mxu0 0.0
        %v1672 = vand.u32 %v211, 4294901760
        %v1673 = vsub.f32 %v211, %v1672
        %v1674 = vand.u32 %v1673, 4294901760
        %v1675 = vsub.f32 %v1673, %v1674
        %v1676 = vand.u32 %v1675, 4294901760
        %1677 = vmatpush1.msra.mxu0 %v1676
        %1678 = vmatprep.subr.mxu0 0.0
        %v1679 = vand.u32 %v210, 4294901760
        %v1680 = vsub.f32 %v210, %v1679
        %v1681 = vand.u32 %v1680, 4294901760
        %v1682 = vsub.f32 %v1680, %v1681
        %v1683 = vand.u32 %v1682, 4294901760
        %1684 = vmatpush1.msra.mxu0 %v1683
        %1685 = vmatprep.subr.mxu0 0.0
        %v1686 = vand.u32 %v209, 4294901760
        %v1687 = vsub.f32 %v209, %v1686
        %v1688 = vand.u32 %v1687, 4294901760
        %v1689 = vsub.f32 %v1687, %v1688
        %v1690 = vand.u32 %v1689, 4294901760
        %1691 = vmatpush1.msra.mxu0 %v1690
        %1692 = vmatprep.subr.mxu0 0.0
        %v1693 = vand.u32 %v208, 4294901760
        %v1694 = vsub.f32 %v208, %v1693
        %v1695 = vand.u32 %v1694, 4294901760
        %v1696 = vsub.f32 %v1694, %v1695
        %v1697 = vand.u32 %v1696, 4294901760
        %1698 = vmatpush1.msra.mxu0 %v1697
        %1699 = vmatprep.subr.mxu0 0.0
        %v1700 = vand.u32 %v207, 4294901760
        %v1701 = vsub.f32 %v207, %v1700
        %v1702 = vand.u32 %v1701, 4294901760
        %v1703 = vsub.f32 %v1701, %v1702
        %v1704 = vand.u32 %v1703, 4294901760
        %1705 = vmatpush1.msra.mxu0 %v1704
        %1706 = vmatprep.subr.mxu0 0.0
        %v1707 = vand.u32 %v206, 4294901760
        %v1708 = vsub.f32 %v206, %v1707
        %v1709 = vand.u32 %v1708, 4294901760
        %v1710 = vsub.f32 %v1708, %v1709
        %v1711 = vand.u32 %v1710, 4294901760
        %1712 = vmatpush1.msra.mxu0 %v1711
        %1713 = vmatprep.subr.mxu0 0.0
        %v1714 = vand.u32 %v205, 4294901760
        %v1715 = vsub.f32 %v205, %v1714
        %v1716 = vand.u32 %v1715, 4294901760
        %v1717 = vsub.f32 %v1715, %v1716
        %v1718 = vand.u32 %v1717, 4294901760
        %1719 = vmatpush1.msra.mxu0 %v1718
        %1720 = vmatprep.subr.mxu0 0.0
        %v1721 = vand.u32 %v204, 4294901760
        %v1722 = vsub.f32 %v204, %v1721
        %v1723 = vand.u32 %v1722, 4294901760
        %v1724 = vsub.f32 %v1722, %v1723
        %v1725 = vand.u32 %v1724, 4294901760
        %1726 = vmatpush1.msra.mxu0 %v1725
        %1727 = vmatprep.subr.mxu0 0.0
        %v1728 = vand.u32 %v203, 4294901760
        %v1729 = vsub.f32 %v203, %v1728
        %v1730 = vand.u32 %v1729, 4294901760
        %v1731 = vsub.f32 %v1729, %v1730
        %v1732 = vand.u32 %v1731, 4294901760
        %1733 = vmatpush1.msra.mxu0 %v1732
        %1734 = vmatprep.subr.mxu0 0.0
        %v1735 = vand.u32 %v202, 4294901760
        %v1736 = vsub.f32 %v202, %v1735
        %v1737 = vand.u32 %v1736, 4294901760
        %v1738 = vsub.f32 %v1736, %v1737
        %v1739 = vand.u32 %v1738, 4294901760
        %1740 = vmatpush1.msra.mxu0 %v1739
        %1741 = vmatprep.subr.mxu0 0.0
        %1742 = vmatpush2.msra.mxu0 0.0
        %1743 = vmatprep.subr.mxu0 0.0
        %1744 = vmatpush2.msra.mxu0 0.0
        %1745 = vmatprep.subr.mxu0 0.0
        %1746 = vmatpush2.msra.mxu0 0.0
        %1747 = vmatprep.subr.mxu0 0.0
        %1748 = vmatpush2.msra.mxu0 0.0
        %1749 = vmatprep.subr.mxu0 0.0
        %1750 = vmatpush2.msra.mxu0 0.0
        %1751 = vmatprep.subr.mxu0 0.0
        %1752 = vmatpush2.msra.mxu0 0.0
        %1753 = vmatprep.subr.mxu0 0.0
        %1754 = vmatpush2.msra.mxu0 0.0
        %1755 = vmatprep.subr.mxu0 0.0
        %1756 = vmatpush2.msra.mxu0 0.0
        %1757 = vmatprep.subr.mxu0 0.0
        %1758 = vmatpush2.msra.mxu0 0.0
        %1759 = vmatprep.subr.mxu0 0.0
        %1760 = vmatpush2.msra.mxu0 0.0
        %1761 = vmatprep.subr.mxu0 0.0
        %1762 = vmatpush2.msra.mxu0 0.0
        %1763 = vmatprep.subr.mxu0 0.0
        %1764 = vmatpush2.msra.mxu0 0.0
        %1765 = vmatprep.subr.mxu0 0.0
        %1766 = vmatpush2.msra.mxu0 0.0
        %1767 = vmatprep.subr.mxu0 0.0
        %1768 = vmatpush2.msra.mxu0 0.0
        %1769 = vmatprep.subr.mxu0 0.0
        %1770 = vmatpush2.msra.mxu0 0.0
        %1771 = vmatprep.subr.mxu0 0.0
        %1772 = vmatpush2.msra.mxu0 0.0
        %1773 = vmatprep.mubr.f32.mxu0 0.0
        %v1774 = vand.u32 %v1536, 4294901760
        %1775 = vmatmul.mubr.f32.gmra.mxu0 %v1774
        %v1776 = vpop.f32.mrf.mxu0
        %v1777 = vadd.f32 %v1626, %v1776
        %v1778 = vpop.f32.mrf.mxu0
        %1779 = vdwg.mxu0
        %1780 = vmatprep.subr.mxu0 0.0
        %v1781 = vand.u32 %v217, 4294901760
        %v1782 = vsub.f32 %v217, %v1781
        %1783 = vmatpush1.msra.mxu0 %v1782
        %1784 = vmatprep.subr.mxu0 0.0
        %v1785 = vand.u32 %v216, 4294901760
        %v1786 = vsub.f32 %v216, %v1785
        %1787 = vmatpush1.msra.mxu0 %v1786
        %1788 = vmatprep.subr.mxu0 0.0
        %v1789 = vand.u32 %v215, 4294901760
        %v1790 = vsub.f32 %v215, %v1789
        %1791 = vmatpush1.msra.mxu0 %v1790
        %1792 = vmatprep.subr.mxu0 0.0
        %v1793 = vand.u32 %v214, 4294901760
        %v1794 = vsub.f32 %v214, %v1793
        %1795 = vmatpush1.msra.mxu0 %v1794
        %1796 = vmatprep.subr.mxu0 0.0
        %v1797 = vand.u32 %v213, 4294901760
        %v1798 = vsub.f32 %v213, %v1797
        %1799 = vmatpush1.msra.mxu0 %v1798
        %1800 = vmatprep.subr.mxu0 0.0
        %v1801 = vand.u32 %v212, 4294901760
        %v1802 = vsub.f32 %v212, %v1801
        %1803 = vmatpush1.msra.mxu0 %v1802
        %1804 = vmatprep.subr.mxu0 0.0
        %v1805 = vand.u32 %v211, 4294901760
        %v1806 = vsub.f32 %v211, %v1805
        %1807 = vmatpush1.msra.mxu0 %v1806
        %1808 = vmatprep.subr.mxu0 0.0
        %v1809 = vand.u32 %v210, 4294901760
        %v1810 = vsub.f32 %v210, %v1809
        %1811 = vmatpush1.msra.mxu0 %v1810
        %1812 = vmatprep.subr.mxu0 0.0
        %v1813 = vand.u32 %v209, 4294901760
        %v1814 = vsub.f32 %v209, %v1813
        %1815 = vmatpush1.msra.mxu0 %v1814
        %1816 = vmatprep.subr.mxu0 0.0
        %v1817 = vand.u32 %v208, 4294901760
        %v1818 = vsub.f32 %v208, %v1817
        %1819 = vmatpush1.msra.mxu0 %v1818
        %1820 = vmatprep.subr.mxu0 0.0
        %v1821 = vand.u32 %v207, 4294901760
        %v1822 = vsub.f32 %v207, %v1821
        %1823 = vmatpush1.msra.mxu0 %v1822
        %1824 = vmatprep.subr.mxu0 0.0
        %v1825 = vand.u32 %v206, 4294901760
        %v1826 = vsub.f32 %v206, %v1825
        %1827 = vmatpush1.msra.mxu0 %v1826
        %1828 = vmatprep.subr.mxu0 0.0
        %v1829 = vand.u32 %v205, 4294901760
        %v1830 = vsub.f32 %v205, %v1829
        %1831 = vmatpush1.msra.mxu0 %v1830
        %1832 = vmatprep.subr.mxu0 0.0
        %v1833 = vand.u32 %v204, 4294901760
        %v1834 = vsub.f32 %v204, %v1833
        %1835 = vmatpush1.msra.mxu0 %v1834
        %1836 = vmatprep.subr.mxu0 0.0
        %v1837 = vand.u32 %v203, 4294901760
        %v1838 = vsub.f32 %v203, %v1837
        %1839 = vmatpush1.msra.mxu0 %v1838
        %1840 = vmatprep.subr.mxu0 0.0
        %v1841 = vand.u32 %v202, 4294901760
        %v1842 = vsub.f32 %v202, %v1841
        %1843 = vmatpush1.msra.mxu0 %v1842
        %1844 = vmatprep.subr.mxu0 0.0
        %1845 = vmatpush2.msra.mxu0 0.0
        %1846 = vmatprep.subr.mxu0 0.0
        %1847 = vmatpush2.msra.mxu0 0.0
        %1848 = vmatprep.subr.mxu0 0.0
        %1849 = vmatpush2.msra.mxu0 0.0
        %1850 = vmatprep.subr.mxu0 0.0
        %1851 = vmatpush2.msra.mxu0 0.0
        %1852 = vmatprep.subr.mxu0 0.0
        %1853 = vmatpush2.msra.mxu0 0.0
        %1854 = vmatprep.subr.mxu0 0.0
        %1855 = vmatpush2.msra.mxu0 0.0
        %1856 = vmatprep.subr.mxu0 0.0
        %1857 = vmatpush2.msra.mxu0 0.0
        %1858 = vmatprep.subr.mxu0 0.0
        %1859 = vmatpush2.msra.mxu0 0.0
        %1860 = vmatprep.subr.mxu0 0.0
        %1861 = vmatpush2.msra.mxu0 0.0
        %1862 = vmatprep.subr.mxu0 0.0
        %1863 = vmatpush2.msra.mxu0 0.0
        %1864 = vmatprep.subr.mxu0 0.0
        %1865 = vmatpush2.msra.mxu0 0.0
        %1866 = vmatprep.subr.mxu0 0.0
        %1867 = vmatpush2.msra.mxu0 0.0
        %1868 = vmatprep.subr.mxu0 0.0
        %1869 = vmatpush2.msra.mxu0 0.0
        %1870 = vmatprep.subr.mxu0 0.0
        %1871 = vmatpush2.msra.mxu0 0.0
        %1872 = vmatprep.subr.mxu0 0.0
        %1873 = vmatpush2.msra.mxu0 0.0
        %1874 = vmatprep.subr.mxu0 0.0
        %1875 = vmatpush2.msra.mxu0 0.0
        %1876 = vmatprep.mubr.f32.mxu0 0.0
        %v1877 = vand.u32 %v1536, 4294901760
        %v1878 = vsub.f32 %v1536, %v1877
        %1879 = vmatmul.mubr.f32.gmra.mxu0 %v1878
        %v1880 = vpop.f32.mrf.mxu0
        %v1881 = vadd.f32 %v1777, %v1880
        %v1882 = vpop.f32.mrf.mxu0
        %1883 = vdwg.mxu0
        %1884 = vmatprep.subr.mxu0 0.0
        %v1885 = vand.u32 %v217, 4294901760
        %1886 = vmatpush1.msra.mxu0 %v1885
        %1887 = vmatprep.subr.mxu0 0.0
        %v1888 = vand.u32 %v216, 4294901760
        %1889 = vmatpush1.msra.mxu0 %v1888
        %1890 = vmatprep.subr.mxu0 0.0
        %v1891 = vand.u32 %v215, 4294901760
        %1892 = vmatpush1.msra.mxu0 %v1891
        %1893 = vmatprep.subr.mxu0 0.0
        %v1894 = vand.u32 %v214, 4294901760
        %1895 = vmatpush1.msra.mxu0 %v1894
        %1896 = vmatprep.subr.mxu0 0.0
        %v1897 = vand.u32 %v213, 4294901760
        %1898 = vmatpush1.msra.mxu0 %v1897
        %1899 = vmatprep.subr.mxu0 0.0
        %v1900 = vand.u32 %v212, 4294901760
        %1901 = vmatpush1.msra.mxu0 %v1900
        %1902 = vmatprep.subr.mxu0 0.0
        %v1903 = vand.u32 %v211, 4294901760
        %1904 = vmatpush1.msra.mxu0 %v1903
        %1905 = vmatprep.subr.mxu0 0.0
        %v1906 = vand.u32 %v210, 4294901760
        %1907 = vmatpush1.msra.mxu0 %v1906
        %1908 = vmatprep.subr.mxu0 0.0
        %v1909 = vand.u32 %v209, 4294901760
        %1910 = vmatpush1.msra.mxu0 %v1909
        %1911 = vmatprep.subr.mxu0 0.0
        %v1912 = vand.u32 %v208, 4294901760
        %1913 = vmatpush1.msra.mxu0 %v1912
        %1914 = vmatprep.subr.mxu0 0.0
        %v1915 = vand.u32 %v207, 4294901760
        %1916 = vmatpush1.msra.mxu0 %v1915
        %1917 = vmatprep.subr.mxu0 0.0
        %v1918 = vand.u32 %v206, 4294901760
        %1919 = vmatpush1.msra.mxu0 %v1918
        %1920 = vmatprep.subr.mxu0 0.0
        %v1921 = vand.u32 %v205, 4294901760
        %1922 = vmatpush1.msra.mxu0 %v1921
        %1923 = vmatprep.subr.mxu0 0.0
        %v1924 = vand.u32 %v204, 4294901760
        %1925 = vmatpush1.msra.mxu0 %v1924
        %1926 = vmatprep.subr.mxu0 0.0
        %v1927 = vand.u32 %v203, 4294901760
        %1928 = vmatpush1.msra.mxu0 %v1927
        %1929 = vmatprep.subr.mxu0 0.0
        %v1930 = vand.u32 %v202, 4294901760
        %1931 = vmatpush1.msra.mxu0 %v1930
        %1932 = vmatprep.subr.mxu0 0.0
        %1933 = vmatpush2.msra.mxu0 0.0
        %1934 = vmatprep.subr.mxu0 0.0
        %1935 = vmatpush2.msra.mxu0 0.0
        %1936 = vmatprep.subr.mxu0 0.0
        %1937 = vmatpush2.msra.mxu0 0.0
        %1938 = vmatprep.subr.mxu0 0.0
        %1939 = vmatpush2.msra.mxu0 0.0
        %1940 = vmatprep.subr.mxu0 0.0
        %1941 = vmatpush2.msra.mxu0 0.0
        %1942 = vmatprep.subr.mxu0 0.0
        %1943 = vmatpush2.msra.mxu0 0.0
        %1944 = vmatprep.subr.mxu0 0.0
        %1945 = vmatpush2.msra.mxu0 0.0
        %1946 = vmatprep.subr.mxu0 0.0
        %1947 = vmatpush2.msra.mxu0 0.0
        %1948 = vmatprep.subr.mxu0 0.0
        %1949 = vmatpush2.msra.mxu0 0.0
        %1950 = vmatprep.subr.mxu0 0.0
        %1951 = vmatpush2.msra.mxu0 0.0
        %1952 = vmatprep.subr.mxu0 0.0
        %1953 = vmatpush2.msra.mxu0 0.0
        %1954 = vmatprep.subr.mxu0 0.0
        %1955 = vmatpush2.msra.mxu0 0.0
        %1956 = vmatprep.subr.mxu0 0.0
        %1957 = vmatpush2.msra.mxu0 0.0
        %1958 = vmatprep.subr.mxu0 0.0
        %1959 = vmatpush2.msra.mxu0 0.0
        %1960 = vmatprep.subr.mxu0 0.0
        %1961 = vmatpush2.msra.mxu0 0.0
        %1962 = vmatprep.subr.mxu0 0.0
        %1963 = vmatpush2.msra.mxu0 0.0
        %1964 = vmatprep.mubr.f32.mxu0 0.0
        %v1965 = vand.u32 %v1536, 4294901760
        %v1966 = vsub.f32 %v1536, %v1965
        %v1967 = vand.u32 %v1966, 4294901760
        %1968 = vmatmul.mubr.f32.gmra.mxu0 %v1967
        %v1969 = vpop.f32.mrf.mxu0
        %v1970 = vadd.f32 %v1881, %v1969
        %v1971 = vpop.f32.mrf.mxu0
        %1972 = vdwg.mxu0
        %1973 = vmatprep.subr.mxu0 0.0
        %v1974 = vand.u32 %v217, 4294901760
        %v1975 = vsub.f32 %v217, %v1974
        %v1976 = vand.u32 %v1975, 4294901760
        %1977 = vmatpush1.msra.mxu0 %v1976
        %1978 = vmatprep.subr.mxu0 0.0
        %v1979 = vand.u32 %v216, 4294901760
        %v1980 = vsub.f32 %v216, %v1979
        %v1981 = vand.u32 %v1980, 4294901760
        %1982 = vmatpush1.msra.mxu0 %v1981
        %1983 = vmatprep.subr.mxu0 0.0
        %v1984 = vand.u32 %v215, 4294901760
        %v1985 = vsub.f32 %v215, %v1984
        %v1986 = vand.u32 %v1985, 4294901760
        %1987 = vmatpush1.msra.mxu0 %v1986
        %1988 = vmatprep.subr.mxu0 0.0
        %v1989 = vand.u32 %v214, 4294901760
        %v1990 = vsub.f32 %v214, %v1989
        %v1991 = vand.u32 %v1990, 4294901760
        %1992 = vmatpush1.msra.mxu0 %v1991
        %1993 = vmatprep.subr.mxu0 0.0
        %v1994 = vand.u32 %v213, 4294901760
        %v1995 = vsub.f32 %v213, %v1994
        %v1996 = vand.u32 %v1995, 4294901760
        %1997 = vmatpush1.msra.mxu0 %v1996
        %1998 = vmatprep.subr.mxu0 0.0
        %v1999 = vand.u32 %v212, 4294901760
        %v2000 = vsub.f32 %v212, %v1999
        %v2001 = vand.u32 %v2000, 4294901760
        %2002 = vmatpush1.msra.mxu0 %v2001
        %2003 = vmatprep.subr.mxu0 0.0
        %v2004 = vand.u32 %v211, 4294901760
        %v2005 = vsub.f32 %v211, %v2004
        %v2006 = vand.u32 %v2005, 4294901760
        %2007 = vmatpush1.msra.mxu0 %v2006
        %2008 = vmatprep.subr.mxu0 0.0
        %v2009 = vand.u32 %v210, 4294901760
        %v2010 = vsub.f32 %v210, %v2009
        %v2011 = vand.u32 %v2010, 4294901760
        %2012 = vmatpush1.msra.mxu0 %v2011
        %2013 = vmatprep.subr.mxu0 0.0
        %v2014 = vand.u32 %v209, 4294901760
        %v2015 = vsub.f32 %v209, %v2014
        %v2016 = vand.u32 %v2015, 4294901760
        %2017 = vmatpush1.msra.mxu0 %v2016
        %2018 = vmatprep.subr.mxu0 0.0
        %v2019 = vand.u32 %v208, 4294901760
        %v2020 = vsub.f32 %v208, %v2019
        %v2021 = vand.u32 %v2020, 4294901760
        %2022 = vmatpush1.msra.mxu0 %v2021
        %2023 = vmatprep.subr.mxu0 0.0
        %v2024 = vand.u32 %v207, 4294901760
        %v2025 = vsub.f32 %v207, %v2024
        %v2026 = vand.u32 %v2025, 4294901760
        %2027 = vmatpush1.msra.mxu0 %v2026
        %2028 = vmatprep.subr.mxu0 0.0
        %v2029 = vand.u32 %v206, 4294901760
        %v2030 = vsub.f32 %v206, %v2029
        %v2031 = vand.u32 %v2030, 4294901760
        %2032 = vmatpush1.msra.mxu0 %v2031
        %2033 = vmatprep.subr.mxu0 0.0
        %v2034 = vand.u32 %v205, 4294901760
        %v2035 = vsub.f32 %v205, %v2034
        %v2036 = vand.u32 %v2035, 4294901760
        %2037 = vmatpush1.msra.mxu0 %v2036
        %2038 = vmatprep.subr.mxu0 0.0
        %v2039 = vand.u32 %v204, 4294901760
        %v2040 = vsub.f32 %v204, %v2039
        %v2041 = vand.u32 %v2040, 4294901760
        %2042 = vmatpush1.msra.mxu0 %v2041
        %2043 = vmatprep.subr.mxu0 0.0
        %v2044 = vand.u32 %v203, 4294901760
        %v2045 = vsub.f32 %v203, %v2044
        %v2046 = vand.u32 %v2045, 4294901760
        %2047 = vmatpush1.msra.mxu0 %v2046
        %2048 = vmatprep.subr.mxu0 0.0
        %v2049 = vand.u32 %v202, 4294901760
        %v2050 = vsub.f32 %v202, %v2049
        %v2051 = vand.u32 %v2050, 4294901760
        %2052 = vmatpush1.msra.mxu0 %v2051
        %2053 = vmatprep.subr.mxu0 0.0
        %2054 = vmatpush2.msra.mxu0 0.0
        %2055 = vmatprep.subr.mxu0 0.0
        %2056 = vmatpush2.msra.mxu0 0.0
        %2057 = vmatprep.subr.mxu0 0.0
        %2058 = vmatpush2.msra.mxu0 0.0
        %2059 = vmatprep.subr.mxu0 0.0
        %2060 = vmatpush2.msra.mxu0 0.0
        %2061 = vmatprep.subr.mxu0 0.0
        %2062 = vmatpush2.msra.mxu0 0.0
        %2063 = vmatprep.subr.mxu0 0.0
        %2064 = vmatpush2.msra.mxu0 0.0
        %2065 = vmatprep.subr.mxu0 0.0
        %2066 = vmatpush2.msra.mxu0 0.0
        %2067 = vmatprep.subr.mxu0 0.0
        %2068 = vmatpush2.msra.mxu0 0.0
        %2069 = vmatprep.subr.mxu0 0.0
        %2070 = vmatpush2.msra.mxu0 0.0
        %2071 = vmatprep.subr.mxu0 0.0
        %2072 = vmatpush2.msra.mxu0 0.0
        %2073 = vmatprep.subr.mxu0 0.0
        %2074 = vmatpush2.msra.mxu0 0.0
        %2075 = vmatprep.subr.mxu0 0.0
        %2076 = vmatpush2.msra.mxu0 0.0
        %2077 = vmatprep.subr.mxu0 0.0
        %2078 = vmatpush2.msra.mxu0 0.0
        %2079 = vmatprep.subr.mxu0 0.0
        %2080 = vmatpush2.msra.mxu0 0.0
        %2081 = vmatprep.subr.mxu0 0.0
        %2082 = vmatpush2.msra.mxu0 0.0
        %2083 = vmatprep.subr.mxu0 0.0
        %2084 = vmatpush2.msra.mxu0 0.0
        %2085 = vmatprep.mubr.f32.mxu0 0.0
        %v2086 = vand.u32 %v1536, 4294901760
        %2087 = vmatmul.mubr.f32.gmra.mxu0 %v2086
        %v2088 = vpop.f32.mrf.mxu0
        %v2089 = vadd.f32 %v1970, %v2088
        %v2090 = vpop.f32.mrf.mxu0
        %2091 = vdwg.mxu0
        %2092 = vmatprep.subr.mxu0 0.0
        %v2093 = vand.u32 %v217, 4294901760
        %2094 = vmatpush1.msra.mxu0 %v2093
        %2095 = vmatprep.subr.mxu0 0.0
        %v2096 = vand.u32 %v216, 4294901760
        %2097 = vmatpush1.msra.mxu0 %v2096
        %2098 = vmatprep.subr.mxu0 0.0
        %v2099 = vand.u32 %v215, 4294901760
        %2100 = vmatpush1.msra.mxu0 %v2099
        %2101 = vmatprep.subr.mxu0 0.0
        %v2102 = vand.u32 %v214, 4294901760
        %2103 = vmatpush1.msra.mxu0 %v2102
        %2104 = vmatprep.subr.mxu0 0.0
        %v2105 = vand.u32 %v213, 4294901760
        %2106 = vmatpush1.msra.mxu0 %v2105
        %2107 = vmatprep.subr.mxu0 0.0
        %v2108 = vand.u32 %v212, 4294901760
        %2109 = vmatpush1.msra.mxu0 %v2108
        %2110 = vmatprep.subr.mxu0 0.0
        %v2111 = vand.u32 %v211, 4294901760
        %2112 = vmatpush1.msra.mxu0 %v2111
        %2113 = vmatprep.subr.mxu0 0.0
        %v2114 = vand.u32 %v210, 4294901760
        %2115 = vmatpush1.msra.mxu0 %v2114
        %2116 = vmatprep.subr.mxu0 0.0
        %v2117 = vand.u32 %v209, 4294901760
        %2118 = vmatpush1.msra.mxu0 %v2117
        %2119 = vmatprep.subr.mxu0 0.0
        %v2120 = vand.u32 %v208, 4294901760
        %2121 = vmatpush1.msra.mxu0 %v2120
        %2122 = vmatprep.subr.mxu0 0.0
        %v2123 = vand.u32 %v207, 4294901760
        %2124 = vmatpush1.msra.mxu0 %v2123
        %2125 = vmatprep.subr.mxu0 0.0
        %v2126 = vand.u32 %v206, 4294901760
        %2127 = vmatpush1.msra.mxu0 %v2126
        %2128 = vmatprep.subr.mxu0 0.0
        %v2129 = vand.u32 %v205, 4294901760
        %2130 = vmatpush1.msra.mxu0 %v2129
        %2131 = vmatprep.subr.mxu0 0.0
        %v2132 = vand.u32 %v204, 4294901760
        %2133 = vmatpush1.msra.mxu0 %v2132
        %2134 = vmatprep.subr.mxu0 0.0
        %v2135 = vand.u32 %v203, 4294901760
        %2136 = vmatpush1.msra.mxu0 %v2135
        %2137 = vmatprep.subr.mxu0 0.0
        %v2138 = vand.u32 %v202, 4294901760
        %2139 = vmatpush1.msra.mxu0 %v2138
        %2140 = vmatprep.subr.mxu0 0.0
        %2141 = vmatpush2.msra.mxu0 0.0
        %2142 = vmatprep.subr.mxu0 0.0
        %2143 = vmatpush2.msra.mxu0 0.0
        %2144 = vmatprep.subr.mxu0 0.0
        %2145 = vmatpush2.msra.mxu0 0.0
        %2146 = vmatprep.subr.mxu0 0.0
        %2147 = vmatpush2.msra.mxu0 0.0
        %2148 = vmatprep.subr.mxu0 0.0
        %2149 = vmatpush2.msra.mxu0 0.0
        %2150 = vmatprep.subr.mxu0 0.0
        %2151 = vmatpush2.msra.mxu0 0.0
        %2152 = vmatprep.subr.mxu0 0.0
        %2153 = vmatpush2.msra.mxu0 0.0
        %2154 = vmatprep.subr.mxu0 0.0
        %2155 = vmatpush2.msra.mxu0 0.0
        %2156 = vmatprep.subr.mxu0 0.0
        %2157 = vmatpush2.msra.mxu0 0.0
        %2158 = vmatprep.subr.mxu0 0.0
        %2159 = vmatpush2.msra.mxu0 0.0
        %2160 = vmatprep.subr.mxu0 0.0
        %2161 = vmatpush2.msra.mxu0 0.0
        %2162 = vmatprep.subr.mxu0 0.0
        %2163 = vmatpush2.msra.mxu0 0.0
        %2164 = vmatprep.subr.mxu0 0.0
        %2165 = vmatpush2.msra.mxu0 0.0
        %2166 = vmatprep.subr.mxu0 0.0
        %2167 = vmatpush2.msra.mxu0 0.0
        %2168 = vmatprep.subr.mxu0 0.0
        %2169 = vmatpush2.msra.mxu0 0.0
        %2170 = vmatprep.subr.mxu0 0.0
        %2171 = vmatpush2.msra.mxu0 0.0
        %2172 = vmatprep.mubr.f32.mxu0 0.0
        %v2173 = vand.u32 %v1536, 4294901760
        %2174 = vmatmul.mubr.f32.gmra.mxu0 %v2173
        %v2175 = vpop.f32.mrf.mxu0
        %v2176 = vadd.f32 %v2089, %v2175
        %v2177 = vpop.f32.mrf.mxu0
        %2178 = vdwg.mxu0
        %v2180 = vrot.slane %v2176, 1
        %v2183 = vadd.f32 %v1531, %v2176
        %v2184 = vadd.f32 %v1532, %v2180
        %v2185 = vtanh.pop %v2183
        %v2186 = vtanh.pop %v2184
        %2187 = vst [vmem:[%s194 + $0x2] sm:$0x1] %v2185
        %2188 = vst [vmem:[%s194 + $0xa] sm:$0x1] %v2186
        %v2189 = vld [vmem:[%s170 + $0x3] sm:$0x1]
        %v2190 = vld [vmem:[%s170 + $0xb] sm:$0x1]
        %v2193 = vrot.slane %v2186, 7
        %v2194 = vsel %vm877, %v2193, %v2185
        %2196 = vmatprep.subr.mxu0 0.0
        %v2197 = vand.u32 %v217, 4294901760
        %2198 = vmatpush1.msra.mxu0 %v2197
        %2199 = vmatprep.subr.mxu0 0.0
        %v2200 = vand.u32 %v216, 4294901760
        %2201 = vmatpush1.msra.mxu0 %v2200
        %2202 = vmatprep.subr.mxu0 0.0
        %v2203 = vand.u32 %v215, 4294901760
        %2204 = vmatpush1.msra.mxu0 %v2203
        %2205 = vmatprep.subr.mxu0 0.0
        %v2206 = vand.u32 %v214, 4294901760
        %2207 = vmatpush1.msra.mxu0 %v2206
        %2208 = vmatprep.subr.mxu0 0.0
        %v2209 = vand.u32 %v213, 4294901760
        %2210 = vmatpush1.msra.mxu0 %v2209
        %2211 = vmatprep.subr.mxu0 0.0
        %v2212 = vand.u32 %v212, 4294901760
        %2213 = vmatpush1.msra.mxu0 %v2212
        %2214 = vmatprep.subr.mxu0 0.0
        %v2215 = vand.u32 %v211, 4294901760
        %2216 = vmatpush1.msra.mxu0 %v2215
        %2217 = vmatprep.subr.mxu0 0.0
        %v2218 = vand.u32 %v210, 4294901760
        %2219 = vmatpush1.msra.mxu0 %v2218
        %2220 = vmatprep.subr.mxu0 0.0
        %v2221 = vand.u32 %v209, 4294901760
        %2222 = vmatpush1.msra.mxu0 %v2221
        %2223 = vmatprep.subr.mxu0 0.0
        %v2224 = vand.u32 %v208, 4294901760
        %2225 = vmatpush1.msra.mxu0 %v2224
        %2226 = vmatprep.subr.mxu0 0.0
        %v2227 = vand.u32 %v207, 4294901760
        %2228 = vmatpush1.msra.mxu0 %v2227
        %2229 = vmatprep.subr.mxu0 0.0
        %v2230 = vand.u32 %v206, 4294901760
        %2231 = vmatpush1.msra.mxu0 %v2230
        %2232 = vmatprep.subr.mxu0 0.0
        %v2233 = vand.u32 %v205, 4294901760
        %2234 = vmatpush1.msra.mxu0 %v2233
        %2235 = vmatprep.subr.mxu0 0.0
        %v2236 = vand.u32 %v204, 4294901760
        %2237 = vmatpush1.msra.mxu0 %v2236
        %2238 = vmatprep.subr.mxu0 0.0
        %v2239 = vand.u32 %v203, 4294901760
        %2240 = vmatpush1.msra.mxu0 %v2239
        %2241 = vmatprep.subr.mxu0 0.0
        %v2242 = vand.u32 %v202, 4294901760
        %2243 = vmatpush1.msra.mxu0 %v2242
        %2244 = vmatprep.subr.mxu0 0.0
        %2245 = vmatpush2.msra.mxu0 0.0
        %2246 = vmatprep.subr.mxu0 0.0
        %2247 = vmatpush2.msra.mxu0 0.0
        %2248 = vmatprep.subr.mxu0 0.0
        %2249 = vmatpush2.msra.mxu0 0.0
        %2250 = vmatprep.subr.mxu0 0.0
        %2251 = vmatpush2.msra.mxu0 0.0
        %2252 = vmatprep.subr.mxu0 0.0
        %2253 = vmatpush2.msra.mxu0 0.0
        %2254 = vmatprep.subr.mxu0 0.0
        %2255 = vmatpush2.msra.mxu0 0.0
        %2256 = vmatprep.subr.mxu0 0.0
        %2257 = vmatpush2.msra.mxu0 0.0
        %2258 = vmatprep.subr.mxu0 0.0
        %2259 = vmatpush2.msra.mxu0 0.0
        %2260 = vmatprep.subr.mxu0 0.0
        %2261 = vmatpush2.msra.mxu0 0.0
        %2262 = vmatprep.subr.mxu0 0.0
        %2263 = vmatpush2.msra.mxu0 0.0
        %2264 = vmatprep.subr.mxu0 0.0
        %2265 = vmatpush2.msra.mxu0 0.0
        %2266 = vmatprep.subr.mxu0 0.0
        %2267 = vmatpush2.msra.mxu0 0.0
        %2268 = vmatprep.subr.mxu0 0.0
        %2269 = vmatpush2.msra.mxu0 0.0
        %2270 = vmatprep.subr.mxu0 0.0
        %2271 = vmatpush2.msra.mxu0 0.0
        %2272 = vmatprep.subr.mxu0 0.0
        %2273 = vmatpush2.msra.mxu0 0.0
        %2274 = vmatprep.subr.mxu0 0.0
        %2275 = vmatpush2.msra.mxu0 0.0
        %2276 = vmatprep.mubr.f32.mxu0 0.0
        %v2277 = vand.u32 %v2194, 4294901760
        %v2278 = vsub.f32 %v2194, %v2277
        %v2279 = vand.u32 %v2278, 4294901760
        %v2280 = vsub.f32 %v2278, %v2279
        %v2281 = vand.u32 %v2280, 4294901760
        %2282 = vmatmul.mubr.f32.gmra.mxu0 %v2281
        %v2283 = vpop.f32.mrf.mxu0
        %v2284 = vadd.f32 0.0, %v2283
        %v2285 = vpop.f32.mrf.mxu0
        %2286 = vdwg.mxu0
        %2287 = vmatprep.subr.mxu0 0.0
        %v2288 = vand.u32 %v217, 4294901760
        %v2289 = vsub.f32 %v217, %v2288
        %v2290 = vand.u32 %v2289, 4294901760
        %v2291 = vsub.f32 %v2289, %v2290
        %v2292 = vand.u32 %v2291, 4294901760
        %2293 = vmatpush1.msra.mxu0 %v2292
        %2294 = vmatprep.subr.mxu0 0.0
        %v2295 = vand.u32 %v216, 4294901760
        %v2296 = vsub.f32 %v216, %v2295
        %v2297 = vand.u32 %v2296, 4294901760
        %v2298 = vsub.f32 %v2296, %v2297
        %v2299 = vand.u32 %v2298, 4294901760
        %2300 = vmatpush1.msra.mxu0 %v2299
        %2301 = vmatprep.subr.mxu0 0.0
        %v2302 = vand.u32 %v215, 4294901760
        %v2303 = vsub.f32 %v215, %v2302
        %v2304 = vand.u32 %v2303, 4294901760
        %v2305 = vsub.f32 %v2303, %v2304
        %v2306 = vand.u32 %v2305, 4294901760
        %2307 = vmatpush1.msra.mxu0 %v2306
        %2308 = vmatprep.subr.mxu0 0.0
        %v2309 = vand.u32 %v214, 4294901760
        %v2310 = vsub.f32 %v214, %v2309
        %v2311 = vand.u32 %v2310, 4294901760
        %v2312 = vsub.f32 %v2310, %v2311
        %v2313 = vand.u32 %v2312, 4294901760
        %2314 = vmatpush1.msra.mxu0 %v2313
        %2315 = vmatprep.subr.mxu0 0.0
        %v2316 = vand.u32 %v213, 4294901760
        %v2317 = vsub.f32 %v213, %v2316
        %v2318 = vand.u32 %v2317, 4294901760
        %v2319 = vsub.f32 %v2317, %v2318
        %v2320 = vand.u32 %v2319, 4294901760
        %2321 = vmatpush1.msra.mxu0 %v2320
        %2322 = vmatprep.subr.mxu0 0.0
        %v2323 = vand.u32 %v212, 4294901760
        %v2324 = vsub.f32 %v212, %v2323
        %v2325 = vand.u32 %v2324, 4294901760
        %v2326 = vsub.f32 %v2324, %v2325
        %v2327 = vand.u32 %v2326, 4294901760
        %2328 = vmatpush1.msra.mxu0 %v2327
        %2329 = vmatprep.subr.mxu0 0.0
        %v2330 = vand.u32 %v211, 4294901760
        %v2331 = vsub.f32 %v211, %v2330
        %v2332 = vand.u32 %v2331, 4294901760
        %v2333 = vsub.f32 %v2331, %v2332
        %v2334 = vand.u32 %v2333, 4294901760
        %2335 = vmatpush1.msra.mxu0 %v2334
        %2336 = vmatprep.subr.mxu0 0.0
        %v2337 = vand.u32 %v210, 4294901760
        %v2338 = vsub.f32 %v210, %v2337
        %v2339 = vand.u32 %v2338, 4294901760
        %v2340 = vsub.f32 %v2338, %v2339
        %v2341 = vand.u32 %v2340, 4294901760
        %2342 = vmatpush1.msra.mxu0 %v2341
        %2343 = vmatprep.subr.mxu0 0.0
        %v2344 = vand.u32 %v209, 4294901760
        %v2345 = vsub.f32 %v209, %v2344
        %v2346 = vand.u32 %v2345, 4294901760
        %v2347 = vsub.f32 %v2345, %v2346
        %v2348 = vand.u32 %v2347, 4294901760
        %2349 = vmatpush1.msra.mxu0 %v2348
        %2350 = vmatprep.subr.mxu0 0.0
        %v2351 = vand.u32 %v208, 4294901760
        %v2352 = vsub.f32 %v208, %v2351
        %v2353 = vand.u32 %v2352, 4294901760
        %v2354 = vsub.f32 %v2352, %v2353
        %v2355 = vand.u32 %v2354, 4294901760
        %2356 = vmatpush1.msra.mxu0 %v2355
        %2357 = vmatprep.subr.mxu0 0.0
        %v2358 = vand.u32 %v207, 4294901760
        %v2359 = vsub.f32 %v207, %v2358
        %v2360 = vand.u32 %v2359, 4294901760
        %v2361 = vsub.f32 %v2359, %v2360
        %v2362 = vand.u32 %v2361, 4294901760
        %2363 = vmatpush1.msra.mxu0 %v2362
        %2364 = vmatprep.subr.mxu0 0.0
        %v2365 = vand.u32 %v206, 4294901760
        %v2366 = vsub.f32 %v206, %v2365
        %v2367 = vand.u32 %v2366, 4294901760
        %v2368 = vsub.f32 %v2366, %v2367
        %v2369 = vand.u32 %v2368, 4294901760
        %2370 = vmatpush1.msra.mxu0 %v2369
        %2371 = vmatprep.subr.mxu0 0.0
        %v2372 = vand.u32 %v205, 4294901760
        %v2373 = vsub.f32 %v205, %v2372
        %v2374 = vand.u32 %v2373, 4294901760
        %v2375 = vsub.f32 %v2373, %v2374
        %v2376 = vand.u32 %v2375, 4294901760
        %2377 = vmatpush1.msra.mxu0 %v2376
        %2378 = vmatprep.subr.mxu0 0.0
        %v2379 = vand.u32 %v204, 4294901760
        %v2380 = vsub.f32 %v204, %v2379
        %v2381 = vand.u32 %v2380, 4294901760
        %v2382 = vsub.f32 %v2380, %v2381
        %v2383 = vand.u32 %v2382, 4294901760
        %2384 = vmatpush1.msra.mxu0 %v2383
        %2385 = vmatprep.subr.mxu0 0.0
        %v2386 = vand.u32 %v203, 4294901760
        %v2387 = vsub.f32 %v203, %v2386
        %v2388 = vand.u32 %v2387, 4294901760
        %v2389 = vsub.f32 %v2387, %v2388
        %v2390 = vand.u32 %v2389, 4294901760
        %2391 = vmatpush1.msra.mxu0 %v2390
        %2392 = vmatprep.subr.mxu0 0.0
        %v2393 = vand.u32 %v202, 4294901760
        %v2394 = vsub.f32 %v202, %v2393
        %v2395 = vand.u32 %v2394, 4294901760
        %v2396 = vsub.f32 %v2394, %v2395
        %v2397 = vand.u32 %v2396, 4294901760
        %2398 = vmatpush1.msra.mxu0 %v2397
        %2399 = vmatprep.subr.mxu0 0.0
        %2400 = vmatpush2.msra.mxu0 0.0
        %2401 = vmatprep.subr.mxu0 0.0
        %2402 = vmatpush2.msra.mxu0 0.0
        %2403 = vmatprep.subr.mxu0 0.0
        %2404 = vmatpush2.msra.mxu0 0.0
        %2405 = vmatprep.subr.mxu0 0.0
        %2406 = vmatpush2.msra.mxu0 0.0
        %2407 = vmatprep.subr.mxu0 0.0
        %2408 = vmatpush2.msra.mxu0 0.0
        %2409 = vmatprep.subr.mxu0 0.0
        %2410 = vmatpush2.msra.mxu0 0.0
        %2411 = vmatprep.subr.mxu0 0.0
        %2412 = vmatpush2.msra.mxu0 0.0
        %2413 = vmatprep.subr.mxu0 0.0
        %2414 = vmatpush2.msra.mxu0 0.0
        %2415 = vmatprep.subr.mxu0 0.0
        %2416 = vmatpush2.msra.mxu0 0.0
        %2417 = vmatprep.subr.mxu0 0.0
        %2418 = vmatpush2.msra.mxu0 0.0
        %2419 = vmatprep.subr.mxu0 0.0
        %2420 = vmatpush2.msra.mxu0 0.0
        %2421 = vmatprep.subr.mxu0 0.0
        %2422 = vmatpush2.msra.mxu0 0.0
        %2423 = vmatprep.subr.mxu0 0.0
        %2424 = vmatpush2.msra.mxu0 0.0
        %2425 = vmatprep.subr.mxu0 0.0
        %2426 = vmatpush2.msra.mxu0 0.0
        %2427 = vmatprep.subr.mxu0 0.0
        %2428 = vmatpush2.msra.mxu0 0.0
        %2429 = vmatprep.subr.mxu0 0.0
        %2430 = vmatpush2.msra.mxu0 0.0
        %2431 = vmatprep.mubr.f32.mxu0 0.0
        %v2432 = vand.u32 %v2194, 4294901760
        %2433 = vmatmul.mubr.f32.gmra.mxu0 %v2432
        %v2434 = vpop.f32.mrf.mxu0
        %v2435 = vadd.f32 %v2284, %v2434
        %v2436 = vpop.f32.mrf.mxu0
        %2437 = vdwg.mxu0
        %2438 = vmatprep.subr.mxu0 0.0
        %v2439 = vand.u32 %v217, 4294901760
        %v2440 = vsub.f32 %v217, %v2439
        %2441 = vmatpush1.msra.mxu0 %v2440
        %2442 = vmatprep.subr.mxu0 0.0
        %v2443 = vand.u32 %v216, 4294901760
        %v2444 = vsub.f32 %v216, %v2443
        %2445 = vmatpush1.msra.mxu0 %v2444
        %2446 = vmatprep.subr.mxu0 0.0
        %v2447 = vand.u32 %v215, 4294901760
        %v2448 = vsub.f32 %v215, %v2447
        %2449 = vmatpush1.msra.mxu0 %v2448
        %2450 = vmatprep.subr.mxu0 0.0
        %v2451 = vand.u32 %v214, 4294901760
        %v2452 = vsub.f32 %v214, %v2451
        %2453 = vmatpush1.msra.mxu0 %v2452
        %2454 = vmatprep.subr.mxu0 0.0
        %v2455 = vand.u32 %v213, 4294901760
        %v2456 = vsub.f32 %v213, %v2455
        %2457 = vmatpush1.msra.mxu0 %v2456
        %2458 = vmatprep.subr.mxu0 0.0
        %v2459 = vand.u32 %v212, 4294901760
        %v2460 = vsub.f32 %v212, %v2459
        %2461 = vmatpush1.msra.mxu0 %v2460
        %2462 = vmatprep.subr.mxu0 0.0
        %v2463 = vand.u32 %v211, 4294901760
        %v2464 = vsub.f32 %v211, %v2463
        %2465 = vmatpush1.msra.mxu0 %v2464
        %2466 = vmatprep.subr.mxu0 0.0
        %v2467 = vand.u32 %v210, 4294901760
        %v2468 = vsub.f32 %v210, %v2467
        %2469 = vmatpush1.msra.mxu0 %v2468
        %2470 = vmatprep.subr.mxu0 0.0
        %v2471 = vand.u32 %v209, 4294901760
        %v2472 = vsub.f32 %v209, %v2471
        %2473 = vmatpush1.msra.mxu0 %v2472
        %2474 = vmatprep.subr.mxu0 0.0
        %v2475 = vand.u32 %v208, 4294901760
        %v2476 = vsub.f32 %v208, %v2475
        %2477 = vmatpush1.msra.mxu0 %v2476
        %2478 = vmatprep.subr.mxu0 0.0
        %v2479 = vand.u32 %v207, 4294901760
        %v2480 = vsub.f32 %v207, %v2479
        %2481 = vmatpush1.msra.mxu0 %v2480
        %2482 = vmatprep.subr.mxu0 0.0
        %v2483 = vand.u32 %v206, 4294901760
        %v2484 = vsub.f32 %v206, %v2483
        %2485 = vmatpush1.msra.mxu0 %v2484
        %2486 = vmatprep.subr.mxu0 0.0
        %v2487 = vand.u32 %v205, 4294901760
        %v2488 = vsub.f32 %v205, %v2487
        %2489 = vmatpush1.msra.mxu0 %v2488
        %2490 = vmatprep.subr.mxu0 0.0
        %v2491 = vand.u32 %v204, 4294901760
        %v2492 = vsub.f32 %v204, %v2491
        %2493 = vmatpush1.msra.mxu0 %v2492
        %2494 = vmatprep.subr.mxu0 0.0
        %v2495 = vand.u32 %v203, 4294901760
        %v2496 = vsub.f32 %v203, %v2495
        %2497 = vmatpush1.msra.mxu0 %v2496
        %2498 = vmatprep.subr.mxu0 0.0
        %v2499 = vand.u32 %v202, 4294901760
        %v2500 = vsub.f32 %v202, %v2499
        %2501 = vmatpush1.msra.mxu0 %v2500
        %2502 = vmatprep.subr.mxu0 0.0
        %2503 = vmatpush2.msra.mxu0 0.0
        %2504 = vmatprep.subr.mxu0 0.0
        %2505 = vmatpush2.msra.mxu0 0.0
        %2506 = vmatprep.subr.mxu0 0.0
        %2507 = vmatpush2.msra.mxu0 0.0
        %2508 = vmatprep.subr.mxu0 0.0
        %2509 = vmatpush2.msra.mxu0 0.0
        %2510 = vmatprep.subr.mxu0 0.0
        %2511 = vmatpush2.msra.mxu0 0.0
        %2512 = vmatprep.subr.mxu0 0.0
        %2513 = vmatpush2.msra.mxu0 0.0
        %2514 = vmatprep.subr.mxu0 0.0
        %2515 = vmatpush2.msra.mxu0 0.0
        %2516 = vmatprep.subr.mxu0 0.0
        %2517 = vmatpush2.msra.mxu0 0.0
        %2518 = vmatprep.subr.mxu0 0.0
        %2519 = vmatpush2.msra.mxu0 0.0
        %2520 = vmatprep.subr.mxu0 0.0
        %2521 = vmatpush2.msra.mxu0 0.0
        %2522 = vmatprep.subr.mxu0 0.0
        %2523 = vmatpush2.msra.mxu0 0.0
        %2524 = vmatprep.subr.mxu0 0.0
        %2525 = vmatpush2.msra.mxu0 0.0
        %2526 = vmatprep.subr.mxu0 0.0
        %2527 = vmatpush2.msra.mxu0 0.0
        %2528 = vmatprep.subr.mxu0 0.0
        %2529 = vmatpush2.msra.mxu0 0.0
        %2530 = vmatprep.subr.mxu0 0.0
        %2531 = vmatpush2.msra.mxu0 0.0
        %2532 = vmatprep.subr.mxu0 0.0
        %2533 = vmatpush2.msra.mxu0 0.0
        %2534 = vmatprep.mubr.f32.mxu0 0.0
        %v2535 = vand.u32 %v2194, 4294901760
        %v2536 = vsub.f32 %v2194, %v2535
        %2537 = vmatmul.mubr.f32.gmra.mxu0 %v2536
        %v2538 = vpop.f32.mrf.mxu0
        %v2539 = vadd.f32 %v2435, %v2538
        %v2540 = vpop.f32.mrf.mxu0
        %2541 = vdwg.mxu0
        %2542 = vmatprep.subr.mxu0 0.0
        %v2543 = vand.u32 %v217, 4294901760
        %2544 = vmatpush1.msra.mxu0 %v2543
        %2545 = vmatprep.subr.mxu0 0.0
        %v2546 = vand.u32 %v216, 4294901760
        %2547 = vmatpush1.msra.mxu0 %v2546
        %2548 = vmatprep.subr.mxu0 0.0
        %v2549 = vand.u32 %v215, 4294901760
        %2550 = vmatpush1.msra.mxu0 %v2549
        %2551 = vmatprep.subr.mxu0 0.0
        %v2552 = vand.u32 %v214, 4294901760
        %2553 = vmatpush1.msra.mxu0 %v2552
        %2554 = vmatprep.subr.mxu0 0.0
        %v2555 = vand.u32 %v213, 4294901760
        %2556 = vmatpush1.msra.mxu0 %v2555
        %2557 = vmatprep.subr.mxu0 0.0
        %v2558 = vand.u32 %v212, 4294901760
        %2559 = vmatpush1.msra.mxu0 %v2558
        %2560 = vmatprep.subr.mxu0 0.0
        %v2561 = vand.u32 %v211, 4294901760
        %2562 = vmatpush1.msra.mxu0 %v2561
        %2563 = vmatprep.subr.mxu0 0.0
        %v2564 = vand.u32 %v210, 4294901760
        %2565 = vmatpush1.msra.mxu0 %v2564
        %2566 = vmatprep.subr.mxu0 0.0
        %v2567 = vand.u32 %v209, 4294901760
        %2568 = vmatpush1.msra.mxu0 %v2567
        %2569 = vmatprep.subr.mxu0 0.0
        %v2570 = vand.u32 %v208, 4294901760
        %2571 = vmatpush1.msra.mxu0 %v2570
        %2572 = vmatprep.subr.mxu0 0.0
        %v2573 = vand.u32 %v207, 4294901760
        %2574 = vmatpush1.msra.mxu0 %v2573
        %2575 = vmatprep.subr.mxu0 0.0
        %v2576 = vand.u32 %v206, 4294901760
        %2577 = vmatpush1.msra.mxu0 %v2576
        %2578 = vmatprep.subr.mxu0 0.0
        %v2579 = vand.u32 %v205, 4294901760
        %2580 = vmatpush1.msra.mxu0 %v2579
        %2581 = vmatprep.subr.mxu0 0.0
        %v2582 = vand.u32 %v204, 4294901760
        %2583 = vmatpush1.msra.mxu0 %v2582
        %2584 = vmatprep.subr.mxu0 0.0
        %v2585 = vand.u32 %v203, 4294901760
        %2586 = vmatpush1.msra.mxu0 %v2585
        %2587 = vmatprep.subr.mxu0 0.0
        %v2588 = vand.u32 %v202, 4294901760
        %2589 = vmatpush1.msra.mxu0 %v2588
        %2590 = vmatprep.subr.mxu0 0.0
        %2591 = vmatpush2.msra.mxu0 0.0
        %2592 = vmatprep.subr.mxu0 0.0
        %2593 = vmatpush2.msra.mxu0 0.0
        %2594 = vmatprep.subr.mxu0 0.0
        %2595 = vmatpush2.msra.mxu0 0.0
        %2596 = vmatprep.subr.mxu0 0.0
        %2597 = vmatpush2.msra.mxu0 0.0
        %2598 = vmatprep.subr.mxu0 0.0
        %2599 = vmatpush2.msra.mxu0 0.0
        %2600 = vmatprep.subr.mxu0 0.0
        %2601 = vmatpush2.msra.mxu0 0.0
        %2602 = vmatprep.subr.mxu0 0.0
        %2603 = vmatpush2.msra.mxu0 0.0
        %2604 = vmatprep.subr.mxu0 0.0
        %2605 = vmatpush2.msra.mxu0 0.0
        %2606 = vmatprep.subr.mxu0 0.0
        %2607 = vmatpush2.msra.mxu0 0.0
        %2608 = vmatprep.subr.mxu0 0.0
        %2609 = vmatpush2.msra.mxu0 0.0
        %2610 = vmatprep.subr.mxu0 0.0
        %2611 = vmatpush2.msra.mxu0 0.0
        %2612 = vmatprep.subr.mxu0 0.0
        %2613 = vmatpush2.msra.mxu0 0.0
        %2614 = vmatprep.subr.mxu0 0.0
        %2615 = vmatpush2.msra.mxu0 0.0
        %2616 = vmatprep.subr.mxu0 0.0
        %2617 = vmatpush2.msra.mxu0 0.0
        %2618 = vmatprep.subr.mxu0 0.0
        %2619 = vmatpush2.msra.mxu0 0.0
        %2620 = vmatprep.subr.mxu0 0.0
        %2621 = vmatpush2.msra.mxu0 0.0
        %2622 = vmatprep.mubr.f32.mxu0 0.0
        %v2623 = vand.u32 %v2194, 4294901760
        %v2624 = vsub.f32 %v2194, %v2623
        %v2625 = vand.u32 %v2624, 4294901760
        %2626 = vmatmul.mubr.f32.gmra.mxu0 %v2625
        %v2627 = vpop.f32.mrf.mxu0
        %v2628 = vadd.f32 %v2539, %v2627
        %v2629 = vpop.f32.mrf.mxu0
        %2630 = vdwg.mxu0
        %2631 = vmatprep.subr.mxu0 0.0
        %v2632 = vand.u32 %v217, 4294901760
        %v2633 = vsub.f32 %v217, %v2632
        %v2634 = vand.u32 %v2633, 4294901760
        %2635 = vmatpush1.msra.mxu0 %v2634
        %2636 = vmatprep.subr.mxu0 0.0
        %v2637 = vand.u32 %v216, 4294901760
        %v2638 = vsub.f32 %v216, %v2637
        %v2639 = vand.u32 %v2638, 4294901760
        %2640 = vmatpush1.msra.mxu0 %v2639
        %2641 = vmatprep.subr.mxu0 0.0
        %v2642 = vand.u32 %v215, 4294901760
        %v2643 = vsub.f32 %v215, %v2642
        %v2644 = vand.u32 %v2643, 4294901760
        %2645 = vmatpush1.msra.mxu0 %v2644
        %2646 = vmatprep.subr.mxu0 0.0
        %v2647 = vand.u32 %v214, 4294901760
        %v2648 = vsub.f32 %v214, %v2647
        %v2649 = vand.u32 %v2648, 4294901760
        %2650 = vmatpush1.msra.mxu0 %v2649
        %2651 = vmatprep.subr.mxu0 0.0
        %v2652 = vand.u32 %v213, 4294901760
        %v2653 = vsub.f32 %v213, %v2652
        %v2654 = vand.u32 %v2653, 4294901760
        %2655 = vmatpush1.msra.mxu0 %v2654
        %2656 = vmatprep.subr.mxu0 0.0
        %v2657 = vand.u32 %v212, 4294901760
        %v2658 = vsub.f32 %v212, %v2657
        %v2659 = vand.u32 %v2658, 4294901760
        %2660 = vmatpush1.msra.mxu0 %v2659
        %2661 = vmatprep.subr.mxu0 0.0
        %v2662 = vand.u32 %v211, 4294901760
        %v2663 = vsub.f32 %v211, %v2662
        %v2664 = vand.u32 %v2663, 4294901760
        %2665 = vmatpush1.msra.mxu0 %v2664
        %2666 = vmatprep.subr.mxu0 0.0
        %v2667 = vand.u32 %v210, 4294901760
        %v2668 = vsub.f32 %v210, %v2667
        %v2669 = vand.u32 %v2668, 4294901760
        %2670 = vmatpush1.msra.mxu0 %v2669
        %2671 = vmatprep.subr.mxu0 0.0
        %v2672 = vand.u32 %v209, 4294901760
        %v2673 = vsub.f32 %v209, %v2672
        %v2674 = vand.u32 %v2673, 4294901760
        %2675 = vmatpush1.msra.mxu0 %v2674
        %2676 = vmatprep.subr.mxu0 0.0
        %v2677 = vand.u32 %v208, 4294901760
        %v2678 = vsub.f32 %v208, %v2677
        %v2679 = vand.u32 %v2678, 4294901760
        %2680 = vmatpush1.msra.mxu0 %v2679
        %2681 = vmatprep.subr.mxu0 0.0
        %v2682 = vand.u32 %v207, 4294901760
        %v2683 = vsub.f32 %v207, %v2682
        %v2684 = vand.u32 %v2683, 4294901760
        %2685 = vmatpush1.msra.mxu0 %v2684
        %2686 = vmatprep.subr.mxu0 0.0
        %v2687 = vand.u32 %v206, 4294901760
        %v2688 = vsub.f32 %v206, %v2687
        %v2689 = vand.u32 %v2688, 4294901760
        %2690 = vmatpush1.msra.mxu0 %v2689
        %2691 = vmatprep.subr.mxu0 0.0
        %v2692 = vand.u32 %v205, 4294901760
        %v2693 = vsub.f32 %v205, %v2692
        %v2694 = vand.u32 %v2693, 4294901760
        %2695 = vmatpush1.msra.mxu0 %v2694
        %2696 = vmatprep.subr.mxu0 0.0
        %v2697 = vand.u32 %v204, 4294901760
        %v2698 = vsub.f32 %v204, %v2697
        %v2699 = vand.u32 %v2698, 4294901760
        %2700 = vmatpush1.msra.mxu0 %v2699
        %2701 = vmatprep.subr.mxu0 0.0
        %v2702 = vand.u32 %v203, 4294901760
        %v2703 = vsub.f32 %v203, %v2702
        %v2704 = vand.u32 %v2703, 4294901760
        %2705 = vmatpush1.msra.mxu0 %v2704
        %2706 = vmatprep.subr.mxu0 0.0
        %v2707 = vand.u32 %v202, 4294901760
        %v2708 = vsub.f32 %v202, %v2707
        %v2709 = vand.u32 %v2708, 4294901760
        %2710 = vmatpush1.msra.mxu0 %v2709
        %2711 = vmatprep.subr.mxu0 0.0
        %2712 = vmatpush2.msra.mxu0 0.0
        %2713 = vmatprep.subr.mxu0 0.0
        %2714 = vmatpush2.msra.mxu0 0.0
        %2715 = vmatprep.subr.mxu0 0.0
        %2716 = vmatpush2.msra.mxu0 0.0
        %2717 = vmatprep.subr.mxu0 0.0
        %2718 = vmatpush2.msra.mxu0 0.0
        %2719 = vmatprep.subr.mxu0 0.0
        %2720 = vmatpush2.msra.mxu0 0.0
        %2721 = vmatprep.subr.mxu0 0.0
        %2722 = vmatpush2.msra.mxu0 0.0
        %2723 = vmatprep.subr.mxu0 0.0
        %2724 = vmatpush2.msra.mxu0 0.0
        %2725 = vmatprep.subr.mxu0 0.0
        %2726 = vmatpush2.msra.mxu0 0.0
        %2727 = vmatprep.subr.mxu0 0.0
        %2728 = vmatpush2.msra.mxu0 0.0
        %2729 = vmatprep.subr.mxu0 0.0
        %2730 = vmatpush2.msra.mxu0 0.0
        %2731 = vmatprep.subr.mxu0 0.0
        %2732 = vmatpush2.msra.mxu0 0.0
        %2733 = vmatprep.subr.mxu0 0.0
        %2734 = vmatpush2.msra.mxu0 0.0
        %2735 = vmatprep.subr.mxu0 0.0
        %2736 = vmatpush2.msra.mxu0 0.0
        %2737 = vmatprep.subr.mxu0 0.0
        %2738 = vmatpush2.msra.mxu0 0.0
        %2739 = vmatprep.subr.mxu0 0.0
        %2740 = vmatpush2.msra.mxu0 0.0
        %2741 = vmatprep.subr.mxu0 0.0
        %2742 = vmatpush2.msra.mxu0 0.0
        %2743 = vmatprep.mubr.f32.mxu0 0.0
        %v2744 = vand.u32 %v2194, 4294901760
        %2745 = vmatmul.mubr.f32.gmra.mxu0 %v2744
        %v2746 = vpop.f32.mrf.mxu0
        %v2747 = vadd.f32 %v2628, %v2746
        %v2748 = vpop.f32.mrf.mxu0
        %2749 = vdwg.mxu0
        %2750 = vmatprep.subr.mxu0 0.0
        %v2751 = vand.u32 %v217, 4294901760
        %2752 = vmatpush1.msra.mxu0 %v2751
        %2753 = vmatprep.subr.mxu0 0.0
        %v2754 = vand.u32 %v216, 4294901760
        %2755 = vmatpush1.msra.mxu0 %v2754
        %2756 = vmatprep.subr.mxu0 0.0
        %v2757 = vand.u32 %v215, 4294901760
        %2758 = vmatpush1.msra.mxu0 %v2757
        %2759 = vmatprep.subr.mxu0 0.0
        %v2760 = vand.u32 %v214, 4294901760
        %2761 = vmatpush1.msra.mxu0 %v2760
        %2762 = vmatprep.subr.mxu0 0.0
        %v2763 = vand.u32 %v213, 4294901760
        %2764 = vmatpush1.msra.mxu0 %v2763
        %2765 = vmatprep.subr.mxu0 0.0
        %v2766 = vand.u32 %v212, 4294901760
        %2767 = vmatpush1.msra.mxu0 %v2766
        %2768 = vmatprep.subr.mxu0 0.0
        %v2769 = vand.u32 %v211, 4294901760
        %2770 = vmatpush1.msra.mxu0 %v2769
        %2771 = vmatprep.subr.mxu0 0.0
        %v2772 = vand.u32 %v210, 4294901760
        %2773 = vmatpush1.msra.mxu0 %v2772
        %2774 = vmatprep.subr.mxu0 0.0
        %v2775 = vand.u32 %v209, 4294901760
        %2776 = vmatpush1.msra.mxu0 %v2775
        %2777 = vmatprep.subr.mxu0 0.0
        %v2778 = vand.u32 %v208, 4294901760
        %2779 = vmatpush1.msra.mxu0 %v2778
        %2780 = vmatprep.subr.mxu0 0.0
        %v2781 = vand.u32 %v207, 4294901760
        %2782 = vmatpush1.msra.mxu0 %v2781
        %2783 = vmatprep.subr.mxu0 0.0
        %v2784 = vand.u32 %v206, 4294901760
        %2785 = vmatpush1.msra.mxu0 %v2784
        %2786 = vmatprep.subr.mxu0 0.0
        %v2787 = vand.u32 %v205, 4294901760
        %2788 = vmatpush1.msra.mxu0 %v2787
        %2789 = vmatprep.subr.mxu0 0.0
        %v2790 = vand.u32 %v204, 4294901760
        %2791 = vmatpush1.msra.mxu0 %v2790
        %2792 = vmatprep.subr.mxu0 0.0
        %v2793 = vand.u32 %v203, 4294901760
        %2794 = vmatpush1.msra.mxu0 %v2793
        %2795 = vmatprep.subr.mxu0 0.0
        %v2796 = vand.u32 %v202, 4294901760
        %2797 = vmatpush1.msra.mxu0 %v2796
        %2798 = vmatprep.subr.mxu0 0.0
        %2799 = vmatpush2.msra.mxu0 0.0
        %2800 = vmatprep.subr.mxu0 0.0
        %2801 = vmatpush2.msra.mxu0 0.0
        %2802 = vmatprep.subr.mxu0 0.0
        %2803 = vmatpush2.msra.mxu0 0.0
        %2804 = vmatprep.subr.mxu0 0.0
        %2805 = vmatpush2.msra.mxu0 0.0
        %2806 = vmatprep.subr.mxu0 0.0
        %2807 = vmatpush2.msra.mxu0 0.0
        %2808 = vmatprep.subr.mxu0 0.0
        %2809 = vmatpush2.msra.mxu0 0.0
        %2810 = vmatprep.subr.mxu0 0.0
        %2811 = vmatpush2.msra.mxu0 0.0
        %2812 = vmatprep.subr.mxu0 0.0
        %2813 = vmatpush2.msra.mxu0 0.0
        %2814 = vmatprep.subr.mxu0 0.0
        %2815 = vmatpush2.msra.mxu0 0.0
        %2816 = vmatprep.subr.mxu0 0.0
        %2817 = vmatpush2.msra.mxu0 0.0
        %2818 = vmatprep.subr.mxu0 0.0
        %2819 = vmatpush2.msra.mxu0 0.0
        %2820 = vmatprep.subr.mxu0 0.0
        %2821 = vmatpush2.msra.mxu0 0.0
        %2822 = vmatprep.subr.mxu0 0.0
        %2823 = vmatpush2.msra.mxu0 0.0
        %2824 = vmatprep.subr.mxu0 0.0
        %2825 = vmatpush2.msra.mxu0 0.0
        %2826 = vmatprep.subr.mxu0 0.0
        %2827 = vmatpush2.msra.mxu0 0.0
        %2828 = vmatprep.subr.mxu0 0.0
        %2829 = vmatpush2.msra.mxu0 0.0
        %2830 = vmatprep.mubr.f32.mxu0 0.0
        %v2831 = vand.u32 %v2194, 4294901760
        %2832 = vmatmul.mubr.f32.gmra.mxu0 %v2831
        %v2833 = vpop.f32.mrf.mxu0
        %v2834 = vadd.f32 %v2747, %v2833
        %v2835 = vpop.f32.mrf.mxu0
        %2836 = vdwg.mxu0
        %v2838 = vrot.slane %v2834, 1
        %v2841 = vadd.f32 %v2189, %v2834
        %v2842 = vadd.f32 %v2190, %v2838
        %v2843 = vtanh.pop %v2841
        %v2844 = vtanh.pop %v2842
        %2845 = vst [vmem:[%s194 + $0x3] sm:$0x1] %v2843
        %2846 = vst [vmem:[%s194 + $0xb] sm:$0x1] %v2844
        %v2847 = vld [vmem:[%s170 + $0x4] sm:$0x1]
        %v2848 = vld [vmem:[%s170 + $0xc] sm:$0x1]
        %v2851 = vrot.slane %v2844, 7
        %v2852 = vsel %vm877, %v2851, %v2843
        %2854 = vmatprep.subr.mxu0 0.0
        %v2855 = vand.u32 %v217, 4294901760
        %2856 = vmatpush1.msra.mxu0 %v2855
        %2857 = vmatprep.subr.mxu0 0.0
        %v2858 = vand.u32 %v216, 4294901760
        %2859 = vmatpush1.msra.mxu0 %v2858
        %2860 = vmatprep.subr.mxu0 0.0
        %v2861 = vand.u32 %v215, 4294901760
        %2862 = vmatpush1.msra.mxu0 %v2861
        %2863 = vmatprep.subr.mxu0 0.0
        %v2864 = vand.u32 %v214, 4294901760
        %2865 = vmatpush1.msra.mxu0 %v2864
        %2866 = vmatprep.subr.mxu0 0.0
        %v2867 = vand.u32 %v213, 4294901760
        %2868 = vmatpush1.msra.mxu0 %v2867
        %2869 = vmatprep.subr.mxu0 0.0
        %v2870 = vand.u32 %v212, 4294901760
        %2871 = vmatpush1.msra.mxu0 %v2870
        %2872 = vmatprep.subr.mxu0 0.0
        %v2873 = vand.u32 %v211, 4294901760
        %2874 = vmatpush1.msra.mxu0 %v2873
        %2875 = vmatprep.subr.mxu0 0.0
        %v2876 = vand.u32 %v210, 4294901760
        %2877 = vmatpush1.msra.mxu0 %v2876
        %2878 = vmatprep.subr.mxu0 0.0
        %v2879 = vand.u32 %v209, 4294901760
        %2880 = vmatpush1.msra.mxu0 %v2879
        %2881 = vmatprep.subr.mxu0 0.0
        %v2882 = vand.u32 %v208, 4294901760
        %2883 = vmatpush1.msra.mxu0 %v2882
        %2884 = vmatprep.subr.mxu0 0.0
        %v2885 = vand.u32 %v207, 4294901760
        %2886 = vmatpush1.msra.mxu0 %v2885
        %2887 = vmatprep.subr.mxu0 0.0
        %v2888 = vand.u32 %v206, 4294901760
        %2889 = vmatpush1.msra.mxu0 %v2888
        %2890 = vmatprep.subr.mxu0 0.0
        %v2891 = vand.u32 %v205, 4294901760
        %2892 = vmatpush1.msra.mxu0 %v2891
        %2893 = vmatprep.subr.mxu0 0.0
        %v2894 = vand.u32 %v204, 4294901760
        %2895 = vmatpush1.msra.mxu0 %v2894
        %2896 = vmatprep.subr.mxu0 0.0
        %v2897 = vand.u32 %v203, 4294901760
        %2898 = vmatpush1.msra.mxu0 %v2897
        %2899 = vmatprep.subr.mxu0 0.0
        %v2900 = vand.u32 %v202, 4294901760
        %2901 = vmatpush1.msra.mxu0 %v2900
        %2902 = vmatprep.subr.mxu0 0.0
        %2903 = vmatpush2.msra.mxu0 0.0
        %2904 = vmatprep.subr.mxu0 0.0
        %2905 = vmatpush2.msra.mxu0 0.0
        %2906 = vmatprep.subr.mxu0 0.0
        %2907 = vmatpush2.msra.mxu0 0.0
        %2908 = vmatprep.subr.mxu0 0.0
        %2909 = vmatpush2.msra.mxu0 0.0
        %2910 = vmatprep.subr.mxu0 0.0
        %2911 = vmatpush2.msra.mxu0 0.0
        %2912 = vmatprep.subr.mxu0 0.0
        %2913 = vmatpush2.msra.mxu0 0.0
        %2914 = vmatprep.subr.mxu0 0.0
        %2915 = vmatpush2.msra.mxu0 0.0
        %2916 = vmatprep.subr.mxu0 0.0
        %2917 = vmatpush2.msra.mxu0 0.0
        %2918 = vmatprep.subr.mxu0 0.0
        %2919 = vmatpush2.msra.mxu0 0.0
        %2920 = vmatprep.subr.mxu0 0.0
        %2921 = vmatpush2.msra.mxu0 0.0
        %2922 = vmatprep.subr.mxu0 0.0
        %2923 = vmatpush2.msra.mxu0 0.0
        %2924 = vmatprep.subr.mxu0 0.0
        %2925 = vmatpush2.msra.mxu0 0.0
        %2926 = vmatprep.subr.mxu0 0.0
        %2927 = vmatpush2.msra.mxu0 0.0
        %2928 = vmatprep.subr.mxu0 0.0
        %2929 = vmatpush2.msra.mxu0 0.0
        %2930 = vmatprep.subr.mxu0 0.0
        %2931 = vmatpush2.msra.mxu0 0.0
        %2932 = vmatprep.subr.mxu0 0.0
        %2933 = vmatpush2.msra.mxu0 0.0
        %2934 = vmatprep.mubr.f32.mxu0 0.0
        %v2935 = vand.u32 %v2852, 4294901760
        %v2936 = vsub.f32 %v2852, %v2935
        %v2937 = vand.u32 %v2936, 4294901760
        %v2938 = vsub.f32 %v2936, %v2937
        %v2939 = vand.u32 %v2938, 4294901760
        %2940 = vmatmul.mubr.f32.gmra.mxu0 %v2939
        %v2941 = vpop.f32.mrf.mxu0
        %v2942 = vadd.f32 0.0, %v2941
        %v2943 = vpop.f32.mrf.mxu0
        %2944 = vdwg.mxu0
        %2945 = vmatprep.subr.mxu0 0.0
        %v2946 = vand.u32 %v217, 4294901760
        %v2947 = vsub.f32 %v217, %v2946
        %v2948 = vand.u32 %v2947, 4294901760
        %v2949 = vsub.f32 %v2947, %v2948
        %v2950 = vand.u32 %v2949, 4294901760
        %2951 = vmatpush1.msra.mxu0 %v2950
        %2952 = vmatprep.subr.mxu0 0.0
        %v2953 = vand.u32 %v216, 4294901760
        %v2954 = vsub.f32 %v216, %v2953
        %v2955 = vand.u32 %v2954, 4294901760
        %v2956 = vsub.f32 %v2954, %v2955
        %v2957 = vand.u32 %v2956, 4294901760
        %2958 = vmatpush1.msra.mxu0 %v2957
        %2959 = vmatprep.subr.mxu0 0.0
        %v2960 = vand.u32 %v215, 4294901760
        %v2961 = vsub.f32 %v215, %v2960
        %v2962 = vand.u32 %v2961, 4294901760
        %v2963 = vsub.f32 %v2961, %v2962
        %v2964 = vand.u32 %v2963, 4294901760
        %2965 = vmatpush1.msra.mxu0 %v2964
        %2966 = vmatprep.subr.mxu0 0.0
        %v2967 = vand.u32 %v214, 4294901760
        %v2968 = vsub.f32 %v214, %v2967
        %v2969 = vand.u32 %v2968, 4294901760
        %v2970 = vsub.f32 %v2968, %v2969
        %v2971 = vand.u32 %v2970, 4294901760
        %2972 = vmatpush1.msra.mxu0 %v2971
        %2973 = vmatprep.subr.mxu0 0.0
        %v2974 = vand.u32 %v213, 4294901760
        %v2975 = vsub.f32 %v213, %v2974
        %v2976 = vand.u32 %v2975, 4294901760
        %v2977 = vsub.f32 %v2975, %v2976
        %v2978 = vand.u32 %v2977, 4294901760
        %2979 = vmatpush1.msra.mxu0 %v2978
        %2980 = vmatprep.subr.mxu0 0.0
        %v2981 = vand.u32 %v212, 4294901760
        %v2982 = vsub.f32 %v212, %v2981
        %v2983 = vand.u32 %v2982, 4294901760
        %v2984 = vsub.f32 %v2982, %v2983
        %v2985 = vand.u32 %v2984, 4294901760
        %2986 = vmatpush1.msra.mxu0 %v2985
        %2987 = vmatprep.subr.mxu0 0.0
        %v2988 = vand.u32 %v211, 4294901760
        %v2989 = vsub.f32 %v211, %v2988
        %v2990 = vand.u32 %v2989, 4294901760
        %v2991 = vsub.f32 %v2989, %v2990
        %v2992 = vand.u32 %v2991, 4294901760
        %2993 = vmatpush1.msra.mxu0 %v2992
        %2994 = vmatprep.subr.mxu0 0.0
        %v2995 = vand.u32 %v210, 4294901760
        %v2996 = vsub.f32 %v210, %v2995
        %v2997 = vand.u32 %v2996, 4294901760
        %v2998 = vsub.f32 %v2996, %v2997
        %v2999 = vand.u32 %v2998, 4294901760
        %3000 = vmatpush1.msra.mxu0 %v2999
        %3001 = vmatprep.subr.mxu0 0.0
        %v3002 = vand.u32 %v209, 4294901760
        %v3003 = vsub.f32 %v209, %v3002
        %v3004 = vand.u32 %v3003, 4294901760
        %v3005 = vsub.f32 %v3003, %v3004
        %v3006 = vand.u32 %v3005, 4294901760
        %3007 = vmatpush1.msra.mxu0 %v3006
        %3008 = vmatprep.subr.mxu0 0.0
        %v3009 = vand.u32 %v208, 4294901760
        %v3010 = vsub.f32 %v208, %v3009
        %v3011 = vand.u32 %v3010, 4294901760
        %v3012 = vsub.f32 %v3010, %v3011
        %v3013 = vand.u32 %v3012, 4294901760
        %3014 = vmatpush1.msra.mxu0 %v3013
        %3015 = vmatprep.subr.mxu0 0.0
        %v3016 = vand.u32 %v207, 4294901760
        %v3017 = vsub.f32 %v207, %v3016
        %v3018 = vand.u32 %v3017, 4294901760
        %v3019 = vsub.f32 %v3017, %v3018
        %v3020 = vand.u32 %v3019, 4294901760
        %3021 = vmatpush1.msra.mxu0 %v3020
        %3022 = vmatprep.subr.mxu0 0.0
        %v3023 = vand.u32 %v206, 4294901760
        %v3024 = vsub.f32 %v206, %v3023
        %v3025 = vand.u32 %v3024, 4294901760
        %v3026 = vsub.f32 %v3024, %v3025
        %v3027 = vand.u32 %v3026, 4294901760
        %3028 = vmatpush1.msra.mxu0 %v3027
        %3029 = vmatprep.subr.mxu0 0.0
        %v3030 = vand.u32 %v205, 4294901760
        %v3031 = vsub.f32 %v205, %v3030
        %v3032 = vand.u32 %v3031, 4294901760
        %v3033 = vsub.f32 %v3031, %v3032
        %v3034 = vand.u32 %v3033, 4294901760
        %3035 = vmatpush1.msra.mxu0 %v3034
        %3036 = vmatprep.subr.mxu0 0.0
        %v3037 = vand.u32 %v204, 4294901760
        %v3038 = vsub.f32 %v204, %v3037
        %v3039 = vand.u32 %v3038, 4294901760
        %v3040 = vsub.f32 %v3038, %v3039
        %v3041 = vand.u32 %v3040, 4294901760
        %3042 = vmatpush1.msra.mxu0 %v3041
        %3043 = vmatprep.subr.mxu0 0.0
        %v3044 = vand.u32 %v203, 4294901760
        %v3045 = vsub.f32 %v203, %v3044
        %v3046 = vand.u32 %v3045, 4294901760
        %v3047 = vsub.f32 %v3045, %v3046
        %v3048 = vand.u32 %v3047, 4294901760
        %3049 = vmatpush1.msra.mxu0 %v3048
        %3050 = vmatprep.subr.mxu0 0.0
        %v3051 = vand.u32 %v202, 4294901760
        %v3052 = vsub.f32 %v202, %v3051
        %v3053 = vand.u32 %v3052, 4294901760
        %v3054 = vsub.f32 %v3052, %v3053
        %v3055 = vand.u32 %v3054, 4294901760
        %3056 = vmatpush1.msra.mxu0 %v3055
        %3057 = vmatprep.subr.mxu0 0.0
        %3058 = vmatpush2.msra.mxu0 0.0
        %3059 = vmatprep.subr.mxu0 0.0
        %3060 = vmatpush2.msra.mxu0 0.0
        %3061 = vmatprep.subr.mxu0 0.0
        %3062 = vmatpush2.msra.mxu0 0.0
        %3063 = vmatprep.subr.mxu0 0.0
        %3064 = vmatpush2.msra.mxu0 0.0
        %3065 = vmatprep.subr.mxu0 0.0
        %3066 = vmatpush2.msra.mxu0 0.0
        %3067 = vmatprep.subr.mxu0 0.0
        %3068 = vmatpush2.msra.mxu0 0.0
        %3069 = vmatprep.subr.mxu0 0.0
        %3070 = vmatpush2.msra.mxu0 0.0
        %3071 = vmatprep.subr.mxu0 0.0
        %3072 = vmatpush2.msra.mxu0 0.0
        %3073 = vmatprep.subr.mxu0 0.0
        %3074 = vmatpush2.msra.mxu0 0.0
        %3075 = vmatprep.subr.mxu0 0.0
        %3076 = vmatpush2.msra.mxu0 0.0
        %3077 = vmatprep.subr.mxu0 0.0
        %3078 = vmatpush2.msra.mxu0 0.0
        %3079 = vmatprep.subr.mxu0 0.0
        %3080 = vmatpush2.msra.mxu0 0.0
        %3081 = vmatprep.subr.mxu0 0.0
        %3082 = vmatpush2.msra.mxu0 0.0
        %3083 = vmatprep.subr.mxu0 0.0
        %3084 = vmatpush2.msra.mxu0 0.0
        %3085 = vmatprep.subr.mxu0 0.0
        %3086 = vmatpush2.msra.mxu0 0.0
        %3087 = vmatprep.subr.mxu0 0.0
        %3088 = vmatpush2.msra.mxu0 0.0
        %3089 = vmatprep.mubr.f32.mxu0 0.0
        %v3090 = vand.u32 %v2852, 4294901760
        %3091 = vmatmul.mubr.f32.gmra.mxu0 %v3090
        %v3092 = vpop.f32.mrf.mxu0
        %v3093 = vadd.f32 %v2942, %v3092
        %v3094 = vpop.f32.mrf.mxu0
        %3095 = vdwg.mxu0
        %3096 = vmatprep.subr.mxu0 0.0
        %v3097 = vand.u32 %v217, 4294901760
        %v3098 = vsub.f32 %v217, %v3097
        %3099 = vmatpush1.msra.mxu0 %v3098
        %3100 = vmatprep.subr.mxu0 0.0
        %v3101 = vand.u32 %v216, 4294901760
        %v3102 = vsub.f32 %v216, %v3101
        %3103 = vmatpush1.msra.mxu0 %v3102
        %3104 = vmatprep.subr.mxu0 0.0
        %v3105 = vand.u32 %v215, 4294901760
        %v3106 = vsub.f32 %v215, %v3105
        %3107 = vmatpush1.msra.mxu0 %v3106
        %3108 = vmatprep.subr.mxu0 0.0
        %v3109 = vand.u32 %v214, 4294901760
        %v3110 = vsub.f32 %v214, %v3109
        %3111 = vmatpush1.msra.mxu0 %v3110
        %3112 = vmatprep.subr.mxu0 0.0
        %v3113 = vand.u32 %v213, 4294901760
        %v3114 = vsub.f32 %v213, %v3113
        %3115 = vmatpush1.msra.mxu0 %v3114
        %3116 = vmatprep.subr.mxu0 0.0
        %v3117 = vand.u32 %v212, 4294901760
        %v3118 = vsub.f32 %v212, %v3117
        %3119 = vmatpush1.msra.mxu0 %v3118
        %3120 = vmatprep.subr.mxu0 0.0
        %v3121 = vand.u32 %v211, 4294901760
        %v3122 = vsub.f32 %v211, %v3121
        %3123 = vmatpush1.msra.mxu0 %v3122
        %3124 = vmatprep.subr.mxu0 0.0
        %v3125 = vand.u32 %v210, 4294901760
        %v3126 = vsub.f32 %v210, %v3125
        %3127 = vmatpush1.msra.mxu0 %v3126
        %3128 = vmatprep.subr.mxu0 0.0
        %v3129 = vand.u32 %v209, 4294901760
        %v3130 = vsub.f32 %v209, %v3129
        %3131 = vmatpush1.msra.mxu0 %v3130
        %3132 = vmatprep.subr.mxu0 0.0
        %v3133 = vand.u32 %v208, 4294901760
        %v3134 = vsub.f32 %v208, %v3133
        %3135 = vmatpush1.msra.mxu0 %v3134
        %3136 = vmatprep.subr.mxu0 0.0
        %v3137 = vand.u32 %v207, 4294901760
        %v3138 = vsub.f32 %v207, %v3137
        %3139 = vmatpush1.msra.mxu0 %v3138
        %3140 = vmatprep.subr.mxu0 0.0
        %v3141 = vand.u32 %v206, 4294901760
        %v3142 = vsub.f32 %v206, %v3141
        %3143 = vmatpush1.msra.mxu0 %v3142
        %3144 = vmatprep.subr.mxu0 0.0
        %v3145 = vand.u32 %v205, 4294901760
        %v3146 = vsub.f32 %v205, %v3145
        %3147 = vmatpush1.msra.mxu0 %v3146
        %3148 = vmatprep.subr.mxu0 0.0
        %v3149 = vand.u32 %v204, 4294901760
        %v3150 = vsub.f32 %v204, %v3149
        %3151 = vmatpush1.msra.mxu0 %v3150
        %3152 = vmatprep.subr.mxu0 0.0
        %v3153 = vand.u32 %v203, 4294901760
        %v3154 = vsub.f32 %v203, %v3153
        %3155 = vmatpush1.msra.mxu0 %v3154
        %3156 = vmatprep.subr.mxu0 0.0
        %v3157 = vand.u32 %v202, 4294901760
        %v3158 = vsub.f32 %v202, %v3157
        %3159 = vmatpush1.msra.mxu0 %v3158
        %3160 = vmatprep.subr.mxu0 0.0
        %3161 = vmatpush2.msra.mxu0 0.0
        %3162 = vmatprep.subr.mxu0 0.0
        %3163 = vmatpush2.msra.mxu0 0.0
        %3164 = vmatprep.subr.mxu0 0.0
        %3165 = vmatpush2.msra.mxu0 0.0
        %3166 = vmatprep.subr.mxu0 0.0
        %3167 = vmatpush2.msra.mxu0 0.0
        %3168 = vmatprep.subr.mxu0 0.0
        %3169 = vmatpush2.msra.mxu0 0.0
        %3170 = vmatprep.subr.mxu0 0.0
        %3171 = vmatpush2.msra.mxu0 0.0
        %3172 = vmatprep.subr.mxu0 0.0
        %3173 = vmatpush2.msra.mxu0 0.0
        %3174 = vmatprep.subr.mxu0 0.0
        %3175 = vmatpush2.msra.mxu0 0.0
        %3176 = vmatprep.subr.mxu0 0.0
        %3177 = vmatpush2.msra.mxu0 0.0
        %3178 = vmatprep.subr.mxu0 0.0
        %3179 = vmatpush2.msra.mxu0 0.0
        %3180 = vmatprep.subr.mxu0 0.0
        %3181 = vmatpush2.msra.mxu0 0.0
        %3182 = vmatprep.subr.mxu0 0.0
        %3183 = vmatpush2.msra.mxu0 0.0
        %3184 = vmatprep.subr.mxu0 0.0
        %3185 = vmatpush2.msra.mxu0 0.0
        %3186 = vmatprep.subr.mxu0 0.0
        %3187 = vmatpush2.msra.mxu0 0.0
        %3188 = vmatprep.subr.mxu0 0.0
        %3189 = vmatpush2.msra.mxu0 0.0
        %3190 = vmatprep.subr.mxu0 0.0
        %3191 = vmatpush2.msra.mxu0 0.0
        %3192 = vmatprep.mubr.f32.mxu0 0.0
        %v3193 = vand.u32 %v2852, 4294901760
        %v3194 = vsub.f32 %v2852, %v3193
        %3195 = vmatmul.mubr.f32.gmra.mxu0 %v3194
        %v3196 = vpop.f32.mrf.mxu0
        %v3197 = vadd.f32 %v3093, %v3196
        %v3198 = vpop.f32.mrf.mxu0
        %3199 = vdwg.mxu0
        %3200 = vmatprep.subr.mxu0 0.0
        %v3201 = vand.u32 %v217, 4294901760
        %3202 = vmatpush1.msra.mxu0 %v3201
        %3203 = vmatprep.subr.mxu0 0.0
        %v3204 = vand.u32 %v216, 4294901760
        %3205 = vmatpush1.msra.mxu0 %v3204
        %3206 = vmatprep.subr.mxu0 0.0
        %v3207 = vand.u32 %v215, 4294901760
        %3208 = vmatpush1.msra.mxu0 %v3207
        %3209 = vmatprep.subr.mxu0 0.0
        %v3210 = vand.u32 %v214, 4294901760
        %3211 = vmatpush1.msra.mxu0 %v3210
        %3212 = vmatprep.subr.mxu0 0.0
        %v3213 = vand.u32 %v213, 4294901760
        %3214 = vmatpush1.msra.mxu0 %v3213
        %3215 = vmatprep.subr.mxu0 0.0
        %v3216 = vand.u32 %v212, 4294901760
        %3217 = vmatpush1.msra.mxu0 %v3216
        %3218 = vmatprep.subr.mxu0 0.0
        %v3219 = vand.u32 %v211, 4294901760
        %3220 = vmatpush1.msra.mxu0 %v3219
        %3221 = vmatprep.subr.mxu0 0.0
        %v3222 = vand.u32 %v210, 4294901760
        %3223 = vmatpush1.msra.mxu0 %v3222
        %3224 = vmatprep.subr.mxu0 0.0
        %v3225 = vand.u32 %v209, 4294901760
        %3226 = vmatpush1.msra.mxu0 %v3225
        %3227 = vmatprep.subr.mxu0 0.0
        %v3228 = vand.u32 %v208, 4294901760
        %3229 = vmatpush1.msra.mxu0 %v3228
        %3230 = vmatprep.subr.mxu0 0.0
        %v3231 = vand.u32 %v207, 4294901760
        %3232 = vmatpush1.msra.mxu0 %v3231
        %3233 = vmatprep.subr.mxu0 0.0
        %v3234 = vand.u32 %v206, 4294901760
        %3235 = vmatpush1.msra.mxu0 %v3234
        %3236 = vmatprep.subr.mxu0 0.0
        %v3237 = vand.u32 %v205, 4294901760
        %3238 = vmatpush1.msra.mxu0 %v3237
        %3239 = vmatprep.subr.mxu0 0.0
        %v3240 = vand.u32 %v204, 4294901760
        %3241 = vmatpush1.msra.mxu0 %v3240
        %3242 = vmatprep.subr.mxu0 0.0
        %v3243 = vand.u32 %v203, 4294901760
        %3244 = vmatpush1.msra.mxu0 %v3243
        %3245 = vmatprep.subr.mxu0 0.0
        %v3246 = vand.u32 %v202, 4294901760
        %3247 = vmatpush1.msra.mxu0 %v3246
        %3248 = vmatprep.subr.mxu0 0.0
        %3249 = vmatpush2.msra.mxu0 0.0
        %3250 = vmatprep.subr.mxu0 0.0
        %3251 = vmatpush2.msra.mxu0 0.0
        %3252 = vmatprep.subr.mxu0 0.0
        %3253 = vmatpush2.msra.mxu0 0.0
        %3254 = vmatprep.subr.mxu0 0.0
        %3255 = vmatpush2.msra.mxu0 0.0
        %3256 = vmatprep.subr.mxu0 0.0
        %3257 = vmatpush2.msra.mxu0 0.0
        %3258 = vmatprep.subr.mxu0 0.0
        %3259 = vmatpush2.msra.mxu0 0.0
        %3260 = vmatprep.subr.mxu0 0.0
        %3261 = vmatpush2.msra.mxu0 0.0
        %3262 = vmatprep.subr.mxu0 0.0
        %3263 = vmatpush2.msra.mxu0 0.0
        %3264 = vmatprep.subr.mxu0 0.0
        %3265 = vmatpush2.msra.mxu0 0.0
        %3266 = vmatprep.subr.mxu0 0.0
        %3267 = vmatpush2.msra.mxu0 0.0
        %3268 = vmatprep.subr.mxu0 0.0
        %3269 = vmatpush2.msra.mxu0 0.0
        %3270 = vmatprep.subr.mxu0 0.0
        %3271 = vmatpush2.msra.mxu0 0.0
        %3272 = vmatprep.subr.mxu0 0.0
        %3273 = vmatpush2.msra.mxu0 0.0
        %3274 = vmatprep.subr.mxu0 0.0
        %3275 = vmatpush2.msra.mxu0 0.0
        %3276 = vmatprep.subr.mxu0 0.0
        %3277 = vmatpush2.msra.mxu0 0.0
        %3278 = vmatprep.subr.mxu0 0.0
        %3279 = vmatpush2.msra.mxu0 0.0
        %3280 = vmatprep.mubr.f32.mxu0 0.0
        %v3281 = vand.u32 %v2852, 4294901760
        %v3282 = vsub.f32 %v2852, %v3281
        %v3283 = vand.u32 %v3282, 4294901760
        %3284 = vmatmul.mubr.f32.gmra.mxu0 %v3283
        %v3285 = vpop.f32.mrf.mxu0
        %v3286 = vadd.f32 %v3197, %v3285
        %v3287 = vpop.f32.mrf.mxu0
        %3288 = vdwg.mxu0
        %3289 = vmatprep.subr.mxu0 0.0
        %v3290 = vand.u32 %v217, 4294901760
        %v3291 = vsub.f32 %v217, %v3290
        %v3292 = vand.u32 %v3291, 4294901760
        %3293 = vmatpush1.msra.mxu0 %v3292
        %3294 = vmatprep.subr.mxu0 0.0
        %v3295 = vand.u32 %v216, 4294901760
        %v3296 = vsub.f32 %v216, %v3295
        %v3297 = vand.u32 %v3296, 4294901760
        %3298 = vmatpush1.msra.mxu0 %v3297
        %3299 = vmatprep.subr.mxu0 0.0
        %v3300 = vand.u32 %v215, 4294901760
        %v3301 = vsub.f32 %v215, %v3300
        %v3302 = vand.u32 %v3301, 4294901760
        %3303 = vmatpush1.msra.mxu0 %v3302
        %3304 = vmatprep.subr.mxu0 0.0
        %v3305 = vand.u32 %v214, 4294901760
        %v3306 = vsub.f32 %v214, %v3305
        %v3307 = vand.u32 %v3306, 4294901760
        %3308 = vmatpush1.msra.mxu0 %v3307
        %3309 = vmatprep.subr.mxu0 0.0
        %v3310 = vand.u32 %v213, 4294901760
        %v3311 = vsub.f32 %v213, %v3310
        %v3312 = vand.u32 %v3311, 4294901760
        %3313 = vmatpush1.msra.mxu0 %v3312
        %3314 = vmatprep.subr.mxu0 0.0
        %v3315 = vand.u32 %v212, 4294901760
        %v3316 = vsub.f32 %v212, %v3315
        %v3317 = vand.u32 %v3316, 4294901760
        %3318 = vmatpush1.msra.mxu0 %v3317
        %3319 = vmatprep.subr.mxu0 0.0
        %v3320 = vand.u32 %v211, 4294901760
        %v3321 = vsub.f32 %v211, %v3320
        %v3322 = vand.u32 %v3321, 4294901760
        %3323 = vmatpush1.msra.mxu0 %v3322
        %3324 = vmatprep.subr.mxu0 0.0
        %v3325 = vand.u32 %v210, 4294901760
        %v3326 = vsub.f32 %v210, %v3325
        %v3327 = vand.u32 %v3326, 4294901760
        %3328 = vmatpush1.msra.mxu0 %v3327
        %3329 = vmatprep.subr.mxu0 0.0
        %v3330 = vand.u32 %v209, 4294901760
        %v3331 = vsub.f32 %v209, %v3330
        %v3332 = vand.u32 %v3331, 4294901760
        %3333 = vmatpush1.msra.mxu0 %v3332
        %3334 = vmatprep.subr.mxu0 0.0
        %v3335 = vand.u32 %v208, 4294901760
        %v3336 = vsub.f32 %v208, %v3335
        %v3337 = vand.u32 %v3336, 4294901760
        %3338 = vmatpush1.msra.mxu0 %v3337
        %3339 = vmatprep.subr.mxu0 0.0
        %v3340 = vand.u32 %v207, 4294901760
        %v3341 = vsub.f32 %v207, %v3340
        %v3342 = vand.u32 %v3341, 4294901760
        %3343 = vmatpush1.msra.mxu0 %v3342
        %3344 = vmatprep.subr.mxu0 0.0
        %v3345 = vand.u32 %v206, 4294901760
        %v3346 = vsub.f32 %v206, %v3345
        %v3347 = vand.u32 %v3346, 4294901760
        %3348 = vmatpush1.msra.mxu0 %v3347
        %3349 = vmatprep.subr.mxu0 0.0
        %v3350 = vand.u32 %v205, 4294901760
        %v3351 = vsub.f32 %v205, %v3350
        %v3352 = vand.u32 %v3351, 4294901760
        %3353 = vmatpush1.msra.mxu0 %v3352
        %3354 = vmatprep.subr.mxu0 0.0
        %v3355 = vand.u32 %v204, 4294901760
        %v3356 = vsub.f32 %v204, %v3355
        %v3357 = vand.u32 %v3356, 4294901760
        %3358 = vmatpush1.msra.mxu0 %v3357
        %3359 = vmatprep.subr.mxu0 0.0
        %v3360 = vand.u32 %v203, 4294901760
        %v3361 = vsub.f32 %v203, %v3360
        %v3362 = vand.u32 %v3361, 4294901760
        %3363 = vmatpush1.msra.mxu0 %v3362
        %3364 = vmatprep.subr.mxu0 0.0
        %v3365 = vand.u32 %v202, 4294901760
        %v3366 = vsub.f32 %v202, %v3365
        %v3367 = vand.u32 %v3366, 4294901760
        %3368 = vmatpush1.msra.mxu0 %v3367
        %3369 = vmatprep.subr.mxu0 0.0
        %3370 = vmatpush2.msra.mxu0 0.0
        %3371 = vmatprep.subr.mxu0 0.0
        %3372 = vmatpush2.msra.mxu0 0.0
        %3373 = vmatprep.subr.mxu0 0.0
        %3374 = vmatpush2.msra.mxu0 0.0
        %3375 = vmatprep.subr.mxu0 0.0
        %3376 = vmatpush2.msra.mxu0 0.0
        %3377 = vmatprep.subr.mxu0 0.0
        %3378 = vmatpush2.msra.mxu0 0.0
        %3379 = vmatprep.subr.mxu0 0.0
        %3380 = vmatpush2.msra.mxu0 0.0
        %3381 = vmatprep.subr.mxu0 0.0
        %3382 = vmatpush2.msra.mxu0 0.0
        %3383 = vmatprep.subr.mxu0 0.0
        %3384 = vmatpush2.msra.mxu0 0.0
        %3385 = vmatprep.subr.mxu0 0.0
        %3386 = vmatpush2.msra.mxu0 0.0
        %3387 = vmatprep.subr.mxu0 0.0
        %3388 = vmatpush2.msra.mxu0 0.0
        %3389 = vmatprep.subr.mxu0 0.0
        %3390 = vmatpush2.msra.mxu0 0.0
        %3391 = vmatprep.subr.mxu0 0.0
        %3392 = vmatpush2.msra.mxu0 0.0
        %3393 = vmatprep.subr.mxu0 0.0
        %3394 = vmatpush2.msra.mxu0 0.0
        %3395 = vmatprep.subr.mxu0 0.0
        %3396 = vmatpush2.msra.mxu0 0.0
        %3397 = vmatprep.subr.mxu0 0.0
        %3398 = vmatpush2.msra.mxu0 0.0
        %3399 = vmatprep.subr.mxu0 0.0
        %3400 = vmatpush2.msra.mxu0 0.0
        %3401 = vmatprep.mubr.f32.mxu0 0.0
        %v3402 = vand.u32 %v2852, 4294901760
        %3403 = vmatmul.mubr.f32.gmra.mxu0 %v3402
        %v3404 = vpop.f32.mrf.mxu0
        %v3405 = vadd.f32 %v3286, %v3404
        %v3406 = vpop.f32.mrf.mxu0
        %3407 = vdwg.mxu0
        %3408 = vmatprep.subr.mxu0 0.0
        %v3409 = vand.u32 %v217, 4294901760
        %3410 = vmatpush1.msra.mxu0 %v3409
        %3411 = vmatprep.subr.mxu0 0.0
        %v3412 = vand.u32 %v216, 4294901760
        %3413 = vmatpush1.msra.mxu0 %v3412
        %3414 = vmatprep.subr.mxu0 0.0
        %v3415 = vand.u32 %v215, 4294901760
        %3416 = vmatpush1.msra.mxu0 %v3415
        %3417 = vmatprep.subr.mxu0 0.0
        %v3418 = vand.u32 %v214, 4294901760
        %3419 = vmatpush1.msra.mxu0 %v3418
        %3420 = vmatprep.subr.mxu0 0.0
        %v3421 = vand.u32 %v213, 4294901760
        %3422 = vmatpush1.msra.mxu0 %v3421
        %3423 = vmatprep.subr.mxu0 0.0
        %v3424 = vand.u32 %v212, 4294901760
        %3425 = vmatpush1.msra.mxu0 %v3424
        %3426 = vmatprep.subr.mxu0 0.0
        %v3427 = vand.u32 %v211, 4294901760
        %3428 = vmatpush1.msra.mxu0 %v3427
        %3429 = vmatprep.subr.mxu0 0.0
        %v3430 = vand.u32 %v210, 4294901760
        %3431 = vmatpush1.msra.mxu0 %v3430
        %3432 = vmatprep.subr.mxu0 0.0
        %v3433 = vand.u32 %v209, 4294901760
        %3434 = vmatpush1.msra.mxu0 %v3433
        %3435 = vmatprep.subr.mxu0 0.0
        %v3436 = vand.u32 %v208, 4294901760
        %3437 = vmatpush1.msra.mxu0 %v3436
        %3438 = vmatprep.subr.mxu0 0.0
        %v3439 = vand.u32 %v207, 4294901760
        %3440 = vmatpush1.msra.mxu0 %v3439
        %3441 = vmatprep.subr.mxu0 0.0
        %v3442 = vand.u32 %v206, 4294901760
        %3443 = vmatpush1.msra.mxu0 %v3442
        %3444 = vmatprep.subr.mxu0 0.0
        %v3445 = vand.u32 %v205, 4294901760
        %3446 = vmatpush1.msra.mxu0 %v3445
        %3447 = vmatprep.subr.mxu0 0.0
        %v3448 = vand.u32 %v204, 4294901760
        %3449 = vmatpush1.msra.mxu0 %v3448
        %3450 = vmatprep.subr.mxu0 0.0
        %v3451 = vand.u32 %v203, 4294901760
        %3452 = vmatpush1.msra.mxu0 %v3451
        %3453 = vmatprep.subr.mxu0 0.0
        %v3454 = vand.u32 %v202, 4294901760
        %3455 = vmatpush1.msra.mxu0 %v3454
        %3456 = vmatprep.subr.mxu0 0.0
        %3457 = vmatpush2.msra.mxu0 0.0
        %3458 = vmatprep.subr.mxu0 0.0
        %3459 = vmatpush2.msra.mxu0 0.0
        %3460 = vmatprep.subr.mxu0 0.0
        %3461 = vmatpush2.msra.mxu0 0.0
        %3462 = vmatprep.subr.mxu0 0.0
        %3463 = vmatpush2.msra.mxu0 0.0
        %3464 = vmatprep.subr.mxu0 0.0
        %3465 = vmatpush2.msra.mxu0 0.0
        %3466 = vmatprep.subr.mxu0 0.0
        %3467 = vmatpush2.msra.mxu0 0.0
        %3468 = vmatprep.subr.mxu0 0.0
        %3469 = vmatpush2.msra.mxu0 0.0
        %3470 = vmatprep.subr.mxu0 0.0
        %3471 = vmatpush2.msra.mxu0 0.0
        %3472 = vmatprep.subr.mxu0 0.0
        %3473 = vmatpush2.msra.mxu0 0.0
        %3474 = vmatprep.subr.mxu0 0.0
        %3475 = vmatpush2.msra.mxu0 0.0
        %3476 = vmatprep.subr.mxu0 0.0
        %3477 = vmatpush2.msra.mxu0 0.0
        %3478 = vmatprep.subr.mxu0 0.0
        %3479 = vmatpush2.msra.mxu0 0.0
        %3480 = vmatprep.subr.mxu0 0.0
        %3481 = vmatpush2.msra.mxu0 0.0
        %3482 = vmatprep.subr.mxu0 0.0
        %3483 = vmatpush2.msra.mxu0 0.0
        %3484 = vmatprep.subr.mxu0 0.0
        %3485 = vmatpush2.msra.mxu0 0.0
        %3486 = vmatprep.subr.mxu0 0.0
        %3487 = vmatpush2.msra.mxu0 0.0
        %3488 = vmatprep.mubr.f32.mxu0 0.0
        %v3489 = vand.u32 %v2852, 4294901760
        %3490 = vmatmul.mubr.f32.gmra.mxu0 %v3489
        %v3491 = vpop.f32.mrf.mxu0
        %v3492 = vadd.f32 %v3405, %v3491
        %v3493 = vpop.f32.mrf.mxu0
        %3494 = vdwg.mxu0
        %v3496 = vrot.slane %v3492, 1
        %v3499 = vadd.f32 %v2847, %v3492
        %v3500 = vadd.f32 %v2848, %v3496
        %v3501 = vtanh.pop %v3499
        %v3502 = vtanh.pop %v3500
        %3503 = vst [vmem:[%s194 + $0x4] sm:$0x1] %v3501
        %3504 = vst [vmem:[%s194 + $0xc] sm:$0x1] %v3502
        %v3505 = vld [vmem:[%s170 + $0x5] sm:$0x1]
        %v3506 = vld [vmem:[%s170 + $0xd] sm:$0x1]
        %v3509 = vrot.slane %v3502, 7
        %v3510 = vsel %vm877, %v3509, %v3501
        %3512 = vmatprep.subr.mxu0 0.0
        %v3513 = vand.u32 %v217, 4294901760
        %3514 = vmatpush1.msra.mxu0 %v3513
        %3515 = vmatprep.subr.mxu0 0.0
        %v3516 = vand.u32 %v216, 4294901760
        %3517 = vmatpush1.msra.mxu0 %v3516
        %3518 = vmatprep.subr.mxu0 0.0
        %v3519 = vand.u32 %v215, 4294901760
        %3520 = vmatpush1.msra.mxu0 %v3519
        %3521 = vmatprep.subr.mxu0 0.0
        %v3522 = vand.u32 %v214, 4294901760
        %3523 = vmatpush1.msra.mxu0 %v3522
        %3524 = vmatprep.subr.mxu0 0.0
        %v3525 = vand.u32 %v213, 4294901760
        %3526 = vmatpush1.msra.mxu0 %v3525
        %3527 = vmatprep.subr.mxu0 0.0
        %v3528 = vand.u32 %v212, 4294901760
        %3529 = vmatpush1.msra.mxu0 %v3528
        %3530 = vmatprep.subr.mxu0 0.0
        %v3531 = vand.u32 %v211, 4294901760
        %3532 = vmatpush1.msra.mxu0 %v3531
        %3533 = vmatprep.subr.mxu0 0.0
        %v3534 = vand.u32 %v210, 4294901760
        %3535 = vmatpush1.msra.mxu0 %v3534
        %3536 = vmatprep.subr.mxu0 0.0
        %v3537 = vand.u32 %v209, 4294901760
        %3538 = vmatpush1.msra.mxu0 %v3537
        %3539 = vmatprep.subr.mxu0 0.0
        %v3540 = vand.u32 %v208, 4294901760
        %3541 = vmatpush1.msra.mxu0 %v3540
        %3542 = vmatprep.subr.mxu0 0.0
        %v3543 = vand.u32 %v207, 4294901760
        %3544 = vmatpush1.msra.mxu0 %v3543
        %3545 = vmatprep.subr.mxu0 0.0
        %v3546 = vand.u32 %v206, 4294901760
        %3547 = vmatpush1.msra.mxu0 %v3546
        %3548 = vmatprep.subr.mxu0 0.0
        %v3549 = vand.u32 %v205, 4294901760
        %3550 = vmatpush1.msra.mxu0 %v3549
        %3551 = vmatprep.subr.mxu0 0.0
        %v3552 = vand.u32 %v204, 4294901760
        %3553 = vmatpush1.msra.mxu0 %v3552
        %3554 = vmatprep.subr.mxu0 0.0
        %v3555 = vand.u32 %v203, 4294901760
        %3556 = vmatpush1.msra.mxu0 %v3555
        %3557 = vmatprep.subr.mxu0 0.0
        %v3558 = vand.u32 %v202, 4294901760
        %3559 = vmatpush1.msra.mxu0 %v3558
        %3560 = vmatprep.subr.mxu0 0.0
        %3561 = vmatpush2.msra.mxu0 0.0
        %3562 = vmatprep.subr.mxu0 0.0
        %3563 = vmatpush2.msra.mxu0 0.0
        %3564 = vmatprep.subr.mxu0 0.0
        %3565 = vmatpush2.msra.mxu0 0.0
        %3566 = vmatprep.subr.mxu0 0.0
        %3567 = vmatpush2.msra.mxu0 0.0
        %3568 = vmatprep.subr.mxu0 0.0
        %3569 = vmatpush2.msra.mxu0 0.0
        %3570 = vmatprep.subr.mxu0 0.0
        %3571 = vmatpush2.msra.mxu0 0.0
        %3572 = vmatprep.subr.mxu0 0.0
        %3573 = vmatpush2.msra.mxu0 0.0
        %3574 = vmatprep.subr.mxu0 0.0
        %3575 = vmatpush2.msra.mxu0 0.0
        %3576 = vmatprep.subr.mxu0 0.0
        %3577 = vmatpush2.msra.mxu0 0.0
        %3578 = vmatprep.subr.mxu0 0.0
        %3579 = vmatpush2.msra.mxu0 0.0
        %3580 = vmatprep.subr.mxu0 0.0
        %3581 = vmatpush2.msra.mxu0 0.0
        %3582 = vmatprep.subr.mxu0 0.0
        %3583 = vmatpush2.msra.mxu0 0.0
        %3584 = vmatprep.subr.mxu0 0.0
        %3585 = vmatpush2.msra.mxu0 0.0
        %3586 = vmatprep.subr.mxu0 0.0
        %3587 = vmatpush2.msra.mxu0 0.0
        %3588 = vmatprep.subr.mxu0 0.0
        %3589 = vmatpush2.msra.mxu0 0.0
        %3590 = vmatprep.subr.mxu0 0.0
        %3591 = vmatpush2.msra.mxu0 0.0
        %3592 = vmatprep.mubr.f32.mxu0 0.0
        %v3593 = vand.u32 %v3510, 4294901760
        %v3594 = vsub.f32 %v3510, %v3593
        %v3595 = vand.u32 %v3594, 4294901760
        %v3596 = vsub.f32 %v3594, %v3595
        %v3597 = vand.u32 %v3596, 4294901760
        %3598 = vmatmul.mubr.f32.gmra.mxu0 %v3597
        %v3599 = vpop.f32.mrf.mxu0
        %v3600 = vadd.f32 0.0, %v3599
        %v3601 = vpop.f32.mrf.mxu0
        %3602 = vdwg.mxu0
        %3603 = vmatprep.subr.mxu0 0.0
        %v3604 = vand.u32 %v217, 4294901760
        %v3605 = vsub.f32 %v217, %v3604
        %v3606 = vand.u32 %v3605, 4294901760
        %v3607 = vsub.f32 %v3605, %v3606
        %v3608 = vand.u32 %v3607, 4294901760
        %3609 = vmatpush1.msra.mxu0 %v3608
        %3610 = vmatprep.subr.mxu0 0.0
        %v3611 = vand.u32 %v216, 4294901760
        %v3612 = vsub.f32 %v216, %v3611
        %v3613 = vand.u32 %v3612, 4294901760
        %v3614 = vsub.f32 %v3612, %v3613
        %v3615 = vand.u32 %v3614, 4294901760
        %3616 = vmatpush1.msra.mxu0 %v3615
        %3617 = vmatprep.subr.mxu0 0.0
        %v3618 = vand.u32 %v215, 4294901760
        %v3619 = vsub.f32 %v215, %v3618
        %v3620 = vand.u32 %v3619, 4294901760
        %v3621 = vsub.f32 %v3619, %v3620
        %v3622 = vand.u32 %v3621, 4294901760
        %3623 = vmatpush1.msra.mxu0 %v3622
        %3624 = vmatprep.subr.mxu0 0.0
        %v3625 = vand.u32 %v214, 4294901760
        %v3626 = vsub.f32 %v214, %v3625
        %v3627 = vand.u32 %v3626, 4294901760
        %v3628 = vsub.f32 %v3626, %v3627
        %v3629 = vand.u32 %v3628, 4294901760
        %3630 = vmatpush1.msra.mxu0 %v3629
        %3631 = vmatprep.subr.mxu0 0.0
        %v3632 = vand.u32 %v213, 4294901760
        %v3633 = vsub.f32 %v213, %v3632
        %v3634 = vand.u32 %v3633, 4294901760
        %v3635 = vsub.f32 %v3633, %v3634
        %v3636 = vand.u32 %v3635, 4294901760
        %3637 = vmatpush1.msra.mxu0 %v3636
        %3638 = vmatprep.subr.mxu0 0.0
        %v3639 = vand.u32 %v212, 4294901760
        %v3640 = vsub.f32 %v212, %v3639
        %v3641 = vand.u32 %v3640, 4294901760
        %v3642 = vsub.f32 %v3640, %v3641
        %v3643 = vand.u32 %v3642, 4294901760
        %3644 = vmatpush1.msra.mxu0 %v3643
        %3645 = vmatprep.subr.mxu0 0.0
        %v3646 = vand.u32 %v211, 4294901760
        %v3647 = vsub.f32 %v211, %v3646
        %v3648 = vand.u32 %v3647, 4294901760
        %v3649 = vsub.f32 %v3647, %v3648
        %v3650 = vand.u32 %v3649, 4294901760
        %3651 = vmatpush1.msra.mxu0 %v3650
        %3652 = vmatprep.subr.mxu0 0.0
        %v3653 = vand.u32 %v210, 4294901760
        %v3654 = vsub.f32 %v210, %v3653
        %v3655 = vand.u32 %v3654, 4294901760
        %v3656 = vsub.f32 %v3654, %v3655
        %v3657 = vand.u32 %v3656, 4294901760
        %3658 = vmatpush1.msra.mxu0 %v3657
        %3659 = vmatprep.subr.mxu0 0.0
        %v3660 = vand.u32 %v209, 4294901760
        %v3661 = vsub.f32 %v209, %v3660
        %v3662 = vand.u32 %v3661, 4294901760
        %v3663 = vsub.f32 %v3661, %v3662
        %v3664 = vand.u32 %v3663, 4294901760
        %3665 = vmatpush1.msra.mxu0 %v3664
        %3666 = vmatprep.subr.mxu0 0.0
        %v3667 = vand.u32 %v208, 4294901760
        %v3668 = vsub.f32 %v208, %v3667
        %v3669 = vand.u32 %v3668, 4294901760
        %v3670 = vsub.f32 %v3668, %v3669
        %v3671 = vand.u32 %v3670, 4294901760
        %3672 = vmatpush1.msra.mxu0 %v3671
        %3673 = vmatprep.subr.mxu0 0.0
        %v3674 = vand.u32 %v207, 4294901760
        %v3675 = vsub.f32 %v207, %v3674
        %v3676 = vand.u32 %v3675, 4294901760
        %v3677 = vsub.f32 %v3675, %v3676
        %v3678 = vand.u32 %v3677, 4294901760
        %3679 = vmatpush1.msra.mxu0 %v3678
        %3680 = vmatprep.subr.mxu0 0.0
        %v3681 = vand.u32 %v206, 4294901760
        %v3682 = vsub.f32 %v206, %v3681
        %v3683 = vand.u32 %v3682, 4294901760
        %v3684 = vsub.f32 %v3682, %v3683
        %v3685 = vand.u32 %v3684, 4294901760
        %3686 = vmatpush1.msra.mxu0 %v3685
        %3687 = vmatprep.subr.mxu0 0.0
        %v3688 = vand.u32 %v205, 4294901760
        %v3689 = vsub.f32 %v205, %v3688
        %v3690 = vand.u32 %v3689, 4294901760
        %v3691 = vsub.f32 %v3689, %v3690
        %v3692 = vand.u32 %v3691, 4294901760
        %3693 = vmatpush1.msra.mxu0 %v3692
        %3694 = vmatprep.subr.mxu0 0.0
        %v3695 = vand.u32 %v204, 4294901760
        %v3696 = vsub.f32 %v204, %v3695
        %v3697 = vand.u32 %v3696, 4294901760
        %v3698 = vsub.f32 %v3696, %v3697
        %v3699 = vand.u32 %v3698, 4294901760
        %3700 = vmatpush1.msra.mxu0 %v3699
        %3701 = vmatprep.subr.mxu0 0.0
        %v3702 = vand.u32 %v203, 4294901760
        %v3703 = vsub.f32 %v203, %v3702
        %v3704 = vand.u32 %v3703, 4294901760
        %v3705 = vsub.f32 %v3703, %v3704
        %v3706 = vand.u32 %v3705, 4294901760
        %3707 = vmatpush1.msra.mxu0 %v3706
        %3708 = vmatprep.subr.mxu0 0.0
        %v3709 = vand.u32 %v202, 4294901760
        %v3710 = vsub.f32 %v202, %v3709
        %v3711 = vand.u32 %v3710, 4294901760
        %v3712 = vsub.f32 %v3710, %v3711
        %v3713 = vand.u32 %v3712, 4294901760
        %3714 = vmatpush1.msra.mxu0 %v3713
        %3715 = vmatprep.subr.mxu0 0.0
        %3716 = vmatpush2.msra.mxu0 0.0
        %3717 = vmatprep.subr.mxu0 0.0
        %3718 = vmatpush2.msra.mxu0 0.0
        %3719 = vmatprep.subr.mxu0 0.0
        %3720 = vmatpush2.msra.mxu0 0.0
        %3721 = vmatprep.subr.mxu0 0.0
        %3722 = vmatpush2.msra.mxu0 0.0
        %3723 = vmatprep.subr.mxu0 0.0
        %3724 = vmatpush2.msra.mxu0 0.0
        %3725 = vmatprep.subr.mxu0 0.0
        %3726 = vmatpush2.msra.mxu0 0.0
        %3727 = vmatprep.subr.mxu0 0.0
        %3728 = vmatpush2.msra.mxu0 0.0
        %3729 = vmatprep.subr.mxu0 0.0
        %3730 = vmatpush2.msra.mxu0 0.0
        %3731 = vmatprep.subr.mxu0 0.0
        %3732 = vmatpush2.msra.mxu0 0.0
        %3733 = vmatprep.subr.mxu0 0.0
        %3734 = vmatpush2.msra.mxu0 0.0
        %3735 = vmatprep.subr.mxu0 0.0
        %3736 = vmatpush2.msra.mxu0 0.0
        %3737 = vmatprep.subr.mxu0 0.0
        %3738 = vmatpush2.msra.mxu0 0.0
        %3739 = vmatprep.subr.mxu0 0.0
        %3740 = vmatpush2.msra.mxu0 0.0
        %3741 = vmatprep.subr.mxu0 0.0
        %3742 = vmatpush2.msra.mxu0 0.0
        %3743 = vmatprep.subr.mxu0 0.0
        %3744 = vmatpush2.msra.mxu0 0.0
        %3745 = vmatprep.subr.mxu0 0.0
        %3746 = vmatpush2.msra.mxu0 0.0
        %3747 = vmatprep.mubr.f32.mxu0 0.0
        %v3748 = vand.u32 %v3510, 4294901760
        %3749 = vmatmul.mubr.f32.gmra.mxu0 %v3748
        %v3750 = vpop.f32.mrf.mxu0
        %v3751 = vadd.f32 %v3600, %v3750
        %v3752 = vpop.f32.mrf.mxu0
        %3753 = vdwg.mxu0
        %3754 = vmatprep.subr.mxu0 0.0
        %v3755 = vand.u32 %v217, 4294901760
        %v3756 = vsub.f32 %v217, %v3755
        %3757 = vmatpush1.msra.mxu0 %v3756
        %3758 = vmatprep.subr.mxu0 0.0
        %v3759 = vand.u32 %v216, 4294901760
        %v3760 = vsub.f32 %v216, %v3759
        %3761 = vmatpush1.msra.mxu0 %v3760
        %3762 = vmatprep.subr.mxu0 0.0
        %v3763 = vand.u32 %v215, 4294901760
        %v3764 = vsub.f32 %v215, %v3763
        %3765 = vmatpush1.msra.mxu0 %v3764
        %3766 = vmatprep.subr.mxu0 0.0
        %v3767 = vand.u32 %v214, 4294901760
        %v3768 = vsub.f32 %v214, %v3767
        %3769 = vmatpush1.msra.mxu0 %v3768
        %3770 = vmatprep.subr.mxu0 0.0
        %v3771 = vand.u32 %v213, 4294901760
        %v3772 = vsub.f32 %v213, %v3771
        %3773 = vmatpush1.msra.mxu0 %v3772
        %3774 = vmatprep.subr.mxu0 0.0
        %v3775 = vand.u32 %v212, 4294901760
        %v3776 = vsub.f32 %v212, %v3775
        %3777 = vmatpush1.msra.mxu0 %v3776
        %3778 = vmatprep.subr.mxu0 0.0
        %v3779 = vand.u32 %v211, 4294901760
        %v3780 = vsub.f32 %v211, %v3779
        %3781 = vmatpush1.msra.mxu0 %v3780
        %3782 = vmatprep.subr.mxu0 0.0
        %v3783 = vand.u32 %v210, 4294901760
        %v3784 = vsub.f32 %v210, %v3783
        %3785 = vmatpush1.msra.mxu0 %v3784
        %3786 = vmatprep.subr.mxu0 0.0
        %v3787 = vand.u32 %v209, 4294901760
        %v3788 = vsub.f32 %v209, %v3787
        %3789 = vmatpush1.msra.mxu0 %v3788
        %3790 = vmatprep.subr.mxu0 0.0
        %v3791 = vand.u32 %v208, 4294901760
        %v3792 = vsub.f32 %v208, %v3791
        %3793 = vmatpush1.msra.mxu0 %v3792
        %3794 = vmatprep.subr.mxu0 0.0
        %v3795 = vand.u32 %v207, 4294901760
        %v3796 = vsub.f32 %v207, %v3795
        %3797 = vmatpush1.msra.mxu0 %v3796
        %3798 = vmatprep.subr.mxu0 0.0
        %v3799 = vand.u32 %v206, 4294901760
        %v3800 = vsub.f32 %v206, %v3799
        %3801 = vmatpush1.msra.mxu0 %v3800
        %3802 = vmatprep.subr.mxu0 0.0
        %v3803 = vand.u32 %v205, 4294901760
        %v3804 = vsub.f32 %v205, %v3803
        %3805 = vmatpush1.msra.mxu0 %v3804
        %3806 = vmatprep.subr.mxu0 0.0
        %v3807 = vand.u32 %v204, 4294901760
        %v3808 = vsub.f32 %v204, %v3807
        %3809 = vmatpush1.msra.mxu0 %v3808
        %3810 = vmatprep.subr.mxu0 0.0
        %v3811 = vand.u32 %v203, 4294901760
        %v3812 = vsub.f32 %v203, %v3811
        %3813 = vmatpush1.msra.mxu0 %v3812
        %3814 = vmatprep.subr.mxu0 0.0
        %v3815 = vand.u32 %v202, 4294901760
        %v3816 = vsub.f32 %v202, %v3815
        %3817 = vmatpush1.msra.mxu0 %v3816
        %3818 = vmatprep.subr.mxu0 0.0
        %3819 = vmatpush2.msra.mxu0 0.0
        %3820 = vmatprep.subr.mxu0 0.0
        %3821 = vmatpush2.msra.mxu0 0.0
        %3822 = vmatprep.subr.mxu0 0.0
        %3823 = vmatpush2.msra.mxu0 0.0
        %3824 = vmatprep.subr.mxu0 0.0
        %3825 = vmatpush2.msra.mxu0 0.0
        %3826 = vmatprep.subr.mxu0 0.0
        %3827 = vmatpush2.msra.mxu0 0.0
        %3828 = vmatprep.subr.mxu0 0.0
        %3829 = vmatpush2.msra.mxu0 0.0
        %3830 = vmatprep.subr.mxu0 0.0
        %3831 = vmatpush2.msra.mxu0 0.0
        %3832 = vmatprep.subr.mxu0 0.0
        %3833 = vmatpush2.msra.mxu0 0.0
        %3834 = vmatprep.subr.mxu0 0.0
        %3835 = vmatpush2.msra.mxu0 0.0
        %3836 = vmatprep.subr.mxu0 0.0
        %3837 = vmatpush2.msra.mxu0 0.0
        %3838 = vmatprep.subr.mxu0 0.0
        %3839 = vmatpush2.msra.mxu0 0.0
        %3840 = vmatprep.subr.mxu0 0.0
        %3841 = vmatpush2.msra.mxu0 0.0
        %3842 = vmatprep.subr.mxu0 0.0
        %3843 = vmatpush2.msra.mxu0 0.0
        %3844 = vmatprep.subr.mxu0 0.0
        %3845 = vmatpush2.msra.mxu0 0.0
        %3846 = vmatprep.subr.mxu0 0.0
        %3847 = vmatpush2.msra.mxu0 0.0
        %3848 = vmatprep.subr.mxu0 0.0
        %3849 = vmatpush2.msra.mxu0 0.0
        %3850 = vmatprep.mubr.f32.mxu0 0.0
        %v3851 = vand.u32 %v3510, 4294901760
        %v3852 = vsub.f32 %v3510, %v3851
        %3853 = vmatmul.mubr.f32.gmra.mxu0 %v3852
        %v3854 = vpop.f32.mrf.mxu0
        %v3855 = vadd.f32 %v3751, %v3854
        %v3856 = vpop.f32.mrf.mxu0
        %3857 = vdwg.mxu0
        %3858 = vmatprep.subr.mxu0 0.0
        %v3859 = vand.u32 %v217, 4294901760
        %3860 = vmatpush1.msra.mxu0 %v3859
        %3861 = vmatprep.subr.mxu0 0.0
        %v3862 = vand.u32 %v216, 4294901760
        %3863 = vmatpush1.msra.mxu0 %v3862
        %3864 = vmatprep.subr.mxu0 0.0
        %v3865 = vand.u32 %v215, 4294901760
        %3866 = vmatpush1.msra.mxu0 %v3865
        %3867 = vmatprep.subr.mxu0 0.0
        %v3868 = vand.u32 %v214, 4294901760
        %3869 = vmatpush1.msra.mxu0 %v3868
        %3870 = vmatprep.subr.mxu0 0.0
        %v3871 = vand.u32 %v213, 4294901760
        %3872 = vmatpush1.msra.mxu0 %v3871
        %3873 = vmatprep.subr.mxu0 0.0
        %v3874 = vand.u32 %v212, 4294901760
        %3875 = vmatpush1.msra.mxu0 %v3874
        %3876 = vmatprep.subr.mxu0 0.0
        %v3877 = vand.u32 %v211, 4294901760
        %3878 = vmatpush1.msra.mxu0 %v3877
        %3879 = vmatprep.subr.mxu0 0.0
        %v3880 = vand.u32 %v210, 4294901760
        %3881 = vmatpush1.msra.mxu0 %v3880
        %3882 = vmatprep.subr.mxu0 0.0
        %v3883 = vand.u32 %v209, 4294901760
        %3884 = vmatpush1.msra.mxu0 %v3883
        %3885 = vmatprep.subr.mxu0 0.0
        %v3886 = vand.u32 %v208, 4294901760
        %3887 = vmatpush1.msra.mxu0 %v3886
        %3888 = vmatprep.subr.mxu0 0.0
        %v3889 = vand.u32 %v207, 4294901760
        %3890 = vmatpush1.msra.mxu0 %v3889
        %3891 = vmatprep.subr.mxu0 0.0
        %v3892 = vand.u32 %v206, 4294901760
        %3893 = vmatpush1.msra.mxu0 %v3892
        %3894 = vmatprep.subr.mxu0 0.0
        %v3895 = vand.u32 %v205, 4294901760
        %3896 = vmatpush1.msra.mxu0 %v3895
        %3897 = vmatprep.subr.mxu0 0.0
        %v3898 = vand.u32 %v204, 4294901760
        %3899 = vmatpush1.msra.mxu0 %v3898
        %3900 = vmatprep.subr.mxu0 0.0
        %v3901 = vand.u32 %v203, 4294901760
        %3902 = vmatpush1.msra.mxu0 %v3901
        %3903 = vmatprep.subr.mxu0 0.0
        %v3904 = vand.u32 %v202, 4294901760
        %3905 = vmatpush1.msra.mxu0 %v3904
        %3906 = vmatprep.subr.mxu0 0.0
        %3907 = vmatpush2.msra.mxu0 0.0
        %3908 = vmatprep.subr.mxu0 0.0
        %3909 = vmatpush2.msra.mxu0 0.0
        %3910 = vmatprep.subr.mxu0 0.0
        %3911 = vmatpush2.msra.mxu0 0.0
        %3912 = vmatprep.subr.mxu0 0.0
        %3913 = vmatpush2.msra.mxu0 0.0
        %3914 = vmatprep.subr.mxu0 0.0
        %3915 = vmatpush2.msra.mxu0 0.0
        %3916 = vmatprep.subr.mxu0 0.0
        %3917 = vmatpush2.msra.mxu0 0.0
        %3918 = vmatprep.subr.mxu0 0.0
        %3919 = vmatpush2.msra.mxu0 0.0
        %3920 = vmatprep.subr.mxu0 0.0
        %3921 = vmatpush2.msra.mxu0 0.0
        %3922 = vmatprep.subr.mxu0 0.0
        %3923 = vmatpush2.msra.mxu0 0.0
        %3924 = vmatprep.subr.mxu0 0.0
        %3925 = vmatpush2.msra.mxu0 0.0
        %3926 = vmatprep.subr.mxu0 0.0
        %3927 = vmatpush2.msra.mxu0 0.0
        %3928 = vmatprep.subr.mxu0 0.0
        %3929 = vmatpush2.msra.mxu0 0.0
        %3930 = vmatprep.subr.mxu0 0.0
        %3931 = vmatpush2.msra.mxu0 0.0
        %3932 = vmatprep.subr.mxu0 0.0
        %3933 = vmatpush2.msra.mxu0 0.0
        %3934 = vmatprep.subr.mxu0 0.0
        %3935 = vmatpush2.msra.mxu0 0.0
        %3936 = vmatprep.subr.mxu0 0.0
        %3937 = vmatpush2.msra.mxu0 0.0
        %3938 = vmatprep.mubr.f32.mxu0 0.0
        %v3939 = vand.u32 %v3510, 4294901760
        %v3940 = vsub.f32 %v3510, %v3939
        %v3941 = vand.u32 %v3940, 4294901760
        %3942 = vmatmul.mubr.f32.gmra.mxu0 %v3941
        %v3943 = vpop.f32.mrf.mxu0
        %v3944 = vadd.f32 %v3855, %v3943
        %v3945 = vpop.f32.mrf.mxu0
        %3946 = vdwg.mxu0
        %3947 = vmatprep.subr.mxu0 0.0
        %v3948 = vand.u32 %v217, 4294901760
        %v3949 = vsub.f32 %v217, %v3948
        %v3950 = vand.u32 %v3949, 4294901760
        %3951 = vmatpush1.msra.mxu0 %v3950
        %3952 = vmatprep.subr.mxu0 0.0
        %v3953 = vand.u32 %v216, 4294901760
        %v3954 = vsub.f32 %v216, %v3953
        %v3955 = vand.u32 %v3954, 4294901760
        %3956 = vmatpush1.msra.mxu0 %v3955
        %3957 = vmatprep.subr.mxu0 0.0
        %v3958 = vand.u32 %v215, 4294901760
        %v3959 = vsub.f32 %v215, %v3958
        %v3960 = vand.u32 %v3959, 4294901760
        %3961 = vmatpush1.msra.mxu0 %v3960
        %3962 = vmatprep.subr.mxu0 0.0
        %v3963 = vand.u32 %v214, 4294901760
        %v3964 = vsub.f32 %v214, %v3963
        %v3965 = vand.u32 %v3964, 4294901760
        %3966 = vmatpush1.msra.mxu0 %v3965
        %3967 = vmatprep.subr.mxu0 0.0
        %v3968 = vand.u32 %v213, 4294901760
        %v3969 = vsub.f32 %v213, %v3968
        %v3970 = vand.u32 %v3969, 4294901760
        %3971 = vmatpush1.msra.mxu0 %v3970
        %3972 = vmatprep.subr.mxu0 0.0
        %v3973 = vand.u32 %v212, 4294901760
        %v3974 = vsub.f32 %v212, %v3973
        %v3975 = vand.u32 %v3974, 4294901760
        %3976 = vmatpush1.msra.mxu0 %v3975
        %3977 = vmatprep.subr.mxu0 0.0
        %v3978 = vand.u32 %v211, 4294901760
        %v3979 = vsub.f32 %v211, %v3978
        %v3980 = vand.u32 %v3979, 4294901760
        %3981 = vmatpush1.msra.mxu0 %v3980
        %3982 = vmatprep.subr.mxu0 0.0
        %v3983 = vand.u32 %v210, 4294901760
        %v3984 = vsub.f32 %v210, %v3983
        %v3985 = vand.u32 %v3984, 4294901760
        %3986 = vmatpush1.msra.mxu0 %v3985
        %3987 = vmatprep.subr.mxu0 0.0
        %v3988 = vand.u32 %v209, 4294901760
        %v3989 = vsub.f32 %v209, %v3988
        %v3990 = vand.u32 %v3989, 4294901760
        %3991 = vmatpush1.msra.mxu0 %v3990
        %3992 = vmatprep.subr.mxu0 0.0
        %v3993 = vand.u32 %v208, 4294901760
        %v3994 = vsub.f32 %v208, %v3993
        %v3995 = vand.u32 %v3994, 4294901760
        %3996 = vmatpush1.msra.mxu0 %v3995
        %3997 = vmatprep.subr.mxu0 0.0
        %v3998 = vand.u32 %v207, 4294901760
        %v3999 = vsub.f32 %v207, %v3998
        %v4000 = vand.u32 %v3999, 4294901760
        %4001 = vmatpush1.msra.mxu0 %v4000
        %4002 = vmatprep.subr.mxu0 0.0
        %v4003 = vand.u32 %v206, 4294901760
        %v4004 = vsub.f32 %v206, %v4003
        %v4005 = vand.u32 %v4004, 4294901760
        %4006 = vmatpush1.msra.mxu0 %v4005
        %4007 = vmatprep.subr.mxu0 0.0
        %v4008 = vand.u32 %v205, 4294901760
        %v4009 = vsub.f32 %v205, %v4008
        %v4010 = vand.u32 %v4009, 4294901760
        %4011 = vmatpush1.msra.mxu0 %v4010
        %4012 = vmatprep.subr.mxu0 0.0
        %v4013 = vand.u32 %v204, 4294901760
        %v4014 = vsub.f32 %v204, %v4013
        %v4015 = vand.u32 %v4014, 4294901760
        %4016 = vmatpush1.msra.mxu0 %v4015
        %4017 = vmatprep.subr.mxu0 0.0
        %v4018 = vand.u32 %v203, 4294901760
        %v4019 = vsub.f32 %v203, %v4018
        %v4020 = vand.u32 %v4019, 4294901760
        %4021 = vmatpush1.msra.mxu0 %v4020
        %4022 = vmatprep.subr.mxu0 0.0
        %v4023 = vand.u32 %v202, 4294901760
        %v4024 = vsub.f32 %v202, %v4023
        %v4025 = vand.u32 %v4024, 4294901760
        %4026 = vmatpush1.msra.mxu0 %v4025
        %4027 = vmatprep.subr.mxu0 0.0
        %4028 = vmatpush2.msra.mxu0 0.0
        %4029 = vmatprep.subr.mxu0 0.0
        %4030 = vmatpush2.msra.mxu0 0.0
        %4031 = vmatprep.subr.mxu0 0.0
        %4032 = vmatpush2.msra.mxu0 0.0
        %4033 = vmatprep.subr.mxu0 0.0
        %4034 = vmatpush2.msra.mxu0 0.0
        %4035 = vmatprep.subr.mxu0 0.0
        %4036 = vmatpush2.msra.mxu0 0.0
        %4037 = vmatprep.subr.mxu0 0.0
        %4038 = vmatpush2.msra.mxu0 0.0
        %4039 = vmatprep.subr.mxu0 0.0
        %4040 = vmatpush2.msra.mxu0 0.0
        %4041 = vmatprep.subr.mxu0 0.0
        %4042 = vmatpush2.msra.mxu0 0.0
        %4043 = vmatprep.subr.mxu0 0.0
        %4044 = vmatpush2.msra.mxu0 0.0
        %4045 = vmatprep.subr.mxu0 0.0
        %4046 = vmatpush2.msra.mxu0 0.0
        %4047 = vmatprep.subr.mxu0 0.0
        %4048 = vmatpush2.msra.mxu0 0.0
        %4049 = vmatprep.subr.mxu0 0.0
        %4050 = vmatpush2.msra.mxu0 0.0
        %4051 = vmatprep.subr.mxu0 0.0
        %4052 = vmatpush2.msra.mxu0 0.0
        %4053 = vmatprep.subr.mxu0 0.0
        %4054 = vmatpush2.msra.mxu0 0.0
        %4055 = vmatprep.subr.mxu0 0.0
        %4056 = vmatpush2.msra.mxu0 0.0
        %4057 = vmatprep.subr.mxu0 0.0
        %4058 = vmatpush2.msra.mxu0 0.0
        %4059 = vmatprep.mubr.f32.mxu0 0.0
        %v4060 = vand.u32 %v3510, 4294901760
        %4061 = vmatmul.mubr.f32.gmra.mxu0 %v4060
        %v4062 = vpop.f32.mrf.mxu0
        %v4063 = vadd.f32 %v3944, %v4062
        %v4064 = vpop.f32.mrf.mxu0
        %4065 = vdwg.mxu0
        %4066 = vmatprep.subr.mxu0 0.0
        %v4067 = vand.u32 %v217, 4294901760
        %4068 = vmatpush1.msra.mxu0 %v4067
        %4069 = vmatprep.subr.mxu0 0.0
        %v4070 = vand.u32 %v216, 4294901760
        %4071 = vmatpush1.msra.mxu0 %v4070
        %4072 = vmatprep.subr.mxu0 0.0
        %v4073 = vand.u32 %v215, 4294901760
        %4074 = vmatpush1.msra.mxu0 %v4073
        %4075 = vmatprep.subr.mxu0 0.0
        %v4076 = vand.u32 %v214, 4294901760
        %4077 = vmatpush1.msra.mxu0 %v4076
        %4078 = vmatprep.subr.mxu0 0.0
        %v4079 = vand.u32 %v213, 4294901760
        %4080 = vmatpush1.msra.mxu0 %v4079
        %4081 = vmatprep.subr.mxu0 0.0
        %v4082 = vand.u32 %v212, 4294901760
        %4083 = vmatpush1.msra.mxu0 %v4082
        %4084 = vmatprep.subr.mxu0 0.0
        %v4085 = vand.u32 %v211, 4294901760
        %4086 = vmatpush1.msra.mxu0 %v4085
        %4087 = vmatprep.subr.mxu0 0.0
        %v4088 = vand.u32 %v210, 4294901760
        %4089 = vmatpush1.msra.mxu0 %v4088
        %4090 = vmatprep.subr.mxu0 0.0
        %v4091 = vand.u32 %v209, 4294901760
        %4092 = vmatpush1.msra.mxu0 %v4091
        %4093 = vmatprep.subr.mxu0 0.0
        %v4094 = vand.u32 %v208, 4294901760
        %4095 = vmatpush1.msra.mxu0 %v4094
        %4096 = vmatprep.subr.mxu0 0.0
        %v4097 = vand.u32 %v207, 4294901760
        %4098 = vmatpush1.msra.mxu0 %v4097
        %4099 = vmatprep.subr.mxu0 0.0
        %v4100 = vand.u32 %v206, 4294901760
        %4101 = vmatpush1.msra.mxu0 %v4100
        %4102 = vmatprep.subr.mxu0 0.0
        %v4103 = vand.u32 %v205, 4294901760
        %4104 = vmatpush1.msra.mxu0 %v4103
        %4105 = vmatprep.subr.mxu0 0.0
        %v4106 = vand.u32 %v204, 4294901760
        %4107 = vmatpush1.msra.mxu0 %v4106
        %4108 = vmatprep.subr.mxu0 0.0
        %v4109 = vand.u32 %v203, 4294901760
        %4110 = vmatpush1.msra.mxu0 %v4109
        %4111 = vmatprep.subr.mxu0 0.0
        %v4112 = vand.u32 %v202, 4294901760
        %4113 = vmatpush1.msra.mxu0 %v4112
        %4114 = vmatprep.subr.mxu0 0.0
        %4115 = vmatpush2.msra.mxu0 0.0
        %4116 = vmatprep.subr.mxu0 0.0
        %4117 = vmatpush2.msra.mxu0 0.0
        %4118 = vmatprep.subr.mxu0 0.0
        %4119 = vmatpush2.msra.mxu0 0.0
        %4120 = vmatprep.subr.mxu0 0.0
        %4121 = vmatpush2.msra.mxu0 0.0
        %4122 = vmatprep.subr.mxu0 0.0
        %4123 = vmatpush2.msra.mxu0 0.0
        %4124 = vmatprep.subr.mxu0 0.0
        %4125 = vmatpush2.msra.mxu0 0.0
        %4126 = vmatprep.subr.mxu0 0.0
        %4127 = vmatpush2.msra.mxu0 0.0
        %4128 = vmatprep.subr.mxu0 0.0
        %4129 = vmatpush2.msra.mxu0 0.0
        %4130 = vmatprep.subr.mxu0 0.0
        %4131 = vmatpush2.msra.mxu0 0.0
        %4132 = vmatprep.subr.mxu0 0.0
        %4133 = vmatpush2.msra.mxu0 0.0
        %4134 = vmatprep.subr.mxu0 0.0
        %4135 = vmatpush2.msra.mxu0 0.0
        %4136 = vmatprep.subr.mxu0 0.0
        %4137 = vmatpush2.msra.mxu0 0.0
        %4138 = vmatprep.subr.mxu0 0.0
        %4139 = vmatpush2.msra.mxu0 0.0
        %4140 = vmatprep.subr.mxu0 0.0
        %4141 = vmatpush2.msra.mxu0 0.0
        %4142 = vmatprep.subr.mxu0 0.0
        %4143 = vmatpush2.msra.mxu0 0.0
        %4144 = vmatprep.subr.mxu0 0.0
        %4145 = vmatpush2.msra.mxu0 0.0
        %4146 = vmatprep.mubr.f32.mxu0 0.0
        %v4147 = vand.u32 %v3510, 4294901760
        %4148 = vmatmul.mubr.f32.gmra.mxu0 %v4147
        %v4149 = vpop.f32.mrf.mxu0
        %v4150 = vadd.f32 %v4063, %v4149
        %v4151 = vpop.f32.mrf.mxu0
        %4152 = vdwg.mxu0
        %v4154 = vrot.slane %v4150, 1
        %v4157 = vadd.f32 %v3505, %v4150
        %v4158 = vadd.f32 %v3506, %v4154
        %v4159 = vtanh.pop %v4157
        %v4160 = vtanh.pop %v4158
        %4161 = vst [vmem:[%s194 + $0x5] sm:$0x1] %v4159
        %4162 = vst [vmem:[%s194 + $0xd] sm:$0x1] %v4160
        %v4163 = vld [vmem:[%s170 + $0x6] sm:$0x1]
        %v4164 = vld [vmem:[%s170 + $0xe] sm:$0x1]
        %v4167 = vrot.slane %v4160, 7
        %v4168 = vsel %vm877, %v4167, %v4159
        %4170 = vmatprep.subr.mxu0 0.0
        %v4171 = vand.u32 %v217, 4294901760
        %4172 = vmatpush1.msra.mxu0 %v4171
        %4173 = vmatprep.subr.mxu0 0.0
        %v4174 = vand.u32 %v216, 4294901760
        %4175 = vmatpush1.msra.mxu0 %v4174
        %4176 = vmatprep.subr.mxu0 0.0
        %v4177 = vand.u32 %v215, 4294901760
        %4178 = vmatpush1.msra.mxu0 %v4177
        %4179 = vmatprep.subr.mxu0 0.0
        %v4180 = vand.u32 %v214, 4294901760
        %4181 = vmatpush1.msra.mxu0 %v4180
        %4182 = vmatprep.subr.mxu0 0.0
        %v4183 = vand.u32 %v213, 4294901760
        %4184 = vmatpush1.msra.mxu0 %v4183
        %4185 = vmatprep.subr.mxu0 0.0
        %v4186 = vand.u32 %v212, 4294901760
        %4187 = vmatpush1.msra.mxu0 %v4186
        %4188 = vmatprep.subr.mxu0 0.0
        %v4189 = vand.u32 %v211, 4294901760
        %4190 = vmatpush1.msra.mxu0 %v4189
        %4191 = vmatprep.subr.mxu0 0.0
        %v4192 = vand.u32 %v210, 4294901760
        %4193 = vmatpush1.msra.mxu0 %v4192
        %4194 = vmatprep.subr.mxu0 0.0
        %v4195 = vand.u32 %v209, 4294901760
        %4196 = vmatpush1.msra.mxu0 %v4195
        %4197 = vmatprep.subr.mxu0 0.0
        %v4198 = vand.u32 %v208, 4294901760
        %4199 = vmatpush1.msra.mxu0 %v4198
        %4200 = vmatprep.subr.mxu0 0.0
        %v4201 = vand.u32 %v207, 4294901760
        %4202 = vmatpush1.msra.mxu0 %v4201
        %4203 = vmatprep.subr.mxu0 0.0
        %v4204 = vand.u32 %v206, 4294901760
        %4205 = vmatpush1.msra.mxu0 %v4204
        %4206 = vmatprep.subr.mxu0 0.0
        %v4207 = vand.u32 %v205, 4294901760
        %4208 = vmatpush1.msra.mxu0 %v4207
        %4209 = vmatprep.subr.mxu0 0.0
        %v4210 = vand.u32 %v204, 4294901760
        %4211 = vmatpush1.msra.mxu0 %v4210
        %4212 = vmatprep.subr.mxu0 0.0
        %v4213 = vand.u32 %v203, 4294901760
        %4214 = vmatpush1.msra.mxu0 %v4213
        %4215 = vmatprep.subr.mxu0 0.0
        %v4216 = vand.u32 %v202, 4294901760
        %4217 = vmatpush1.msra.mxu0 %v4216
        %4218 = vmatprep.subr.mxu0 0.0
        %4219 = vmatpush2.msra.mxu0 0.0
        %4220 = vmatprep.subr.mxu0 0.0
        %4221 = vmatpush2.msra.mxu0 0.0
        %4222 = vmatprep.subr.mxu0 0.0
        %4223 = vmatpush2.msra.mxu0 0.0
        %4224 = vmatprep.subr.mxu0 0.0
        %4225 = vmatpush2.msra.mxu0 0.0
        %4226 = vmatprep.subr.mxu0 0.0
        %4227 = vmatpush2.msra.mxu0 0.0
        %4228 = vmatprep.subr.mxu0 0.0
        %4229 = vmatpush2.msra.mxu0 0.0
        %4230 = vmatprep.subr.mxu0 0.0
        %4231 = vmatpush2.msra.mxu0 0.0
        %4232 = vmatprep.subr.mxu0 0.0
        %4233 = vmatpush2.msra.mxu0 0.0
        %4234 = vmatprep.subr.mxu0 0.0
        %4235 = vmatpush2.msra.mxu0 0.0
        %4236 = vmatprep.subr.mxu0 0.0
        %4237 = vmatpush2.msra.mxu0 0.0
        %4238 = vmatprep.subr.mxu0 0.0
        %4239 = vmatpush2.msra.mxu0 0.0
        %4240 = vmatprep.subr.mxu0 0.0
        %4241 = vmatpush2.msra.mxu0 0.0
        %4242 = vmatprep.subr.mxu0 0.0
        %4243 = vmatpush2.msra.mxu0 0.0
        %4244 = vmatprep.subr.mxu0 0.0
        %4245 = vmatpush2.msra.mxu0 0.0
        %4246 = vmatprep.subr.mxu0 0.0
        %4247 = vmatpush2.msra.mxu0 0.0
        %4248 = vmatprep.subr.mxu0 0.0
        %4249 = vmatpush2.msra.mxu0 0.0
        %4250 = vmatprep.mubr.f32.mxu0 0.0
        %v4251 = vand.u32 %v4168, 4294901760
        %v4252 = vsub.f32 %v4168, %v4251
        %v4253 = vand.u32 %v4252, 4294901760
        %v4254 = vsub.f32 %v4252, %v4253
        %v4255 = vand.u32 %v4254, 4294901760
        %4256 = vmatmul.mubr.f32.gmra.mxu0 %v4255
        %v4257 = vpop.f32.mrf.mxu0
        %v4258 = vadd.f32 0.0, %v4257
        %v4259 = vpop.f32.mrf.mxu0
        %4260 = vdwg.mxu0
        %4261 = vmatprep.subr.mxu0 0.0
        %v4262 = vand.u32 %v217, 4294901760
        %v4263 = vsub.f32 %v217, %v4262
        %v4264 = vand.u32 %v4263, 4294901760
        %v4265 = vsub.f32 %v4263, %v4264
        %v4266 = vand.u32 %v4265, 4294901760
        %4267 = vmatpush1.msra.mxu0 %v4266
        %4268 = vmatprep.subr.mxu0 0.0
        %v4269 = vand.u32 %v216, 4294901760
        %v4270 = vsub.f32 %v216, %v4269
        %v4271 = vand.u32 %v4270, 4294901760
        %v4272 = vsub.f32 %v4270, %v4271
        %v4273 = vand.u32 %v4272, 4294901760
        %4274 = vmatpush1.msra.mxu0 %v4273
        %4275 = vmatprep.subr.mxu0 0.0
        %v4276 = vand.u32 %v215, 4294901760
        %v4277 = vsub.f32 %v215, %v4276
        %v4278 = vand.u32 %v4277, 4294901760
        %v4279 = vsub.f32 %v4277, %v4278
        %v4280 = vand.u32 %v4279, 4294901760
        %4281 = vmatpush1.msra.mxu0 %v4280
        %4282 = vmatprep.subr.mxu0 0.0
        %v4283 = vand.u32 %v214, 4294901760
        %v4284 = vsub.f32 %v214, %v4283
        %v4285 = vand.u32 %v4284, 4294901760
        %v4286 = vsub.f32 %v4284, %v4285
        %v4287 = vand.u32 %v4286, 4294901760
        %4288 = vmatpush1.msra.mxu0 %v4287
        %4289 = vmatprep.subr.mxu0 0.0
        %v4290 = vand.u32 %v213, 4294901760
        %v4291 = vsub.f32 %v213, %v4290
        %v4292 = vand.u32 %v4291, 4294901760
        %v4293 = vsub.f32 %v4291, %v4292
        %v4294 = vand.u32 %v4293, 4294901760
        %4295 = vmatpush1.msra.mxu0 %v4294
        %4296 = vmatprep.subr.mxu0 0.0
        %v4297 = vand.u32 %v212, 4294901760
        %v4298 = vsub.f32 %v212, %v4297
        %v4299 = vand.u32 %v4298, 4294901760
        %v4300 = vsub.f32 %v4298, %v4299
        %v4301 = vand.u32 %v4300, 4294901760
        %4302 = vmatpush1.msra.mxu0 %v4301
        %4303 = vmatprep.subr.mxu0 0.0
        %v4304 = vand.u32 %v211, 4294901760
        %v4305 = vsub.f32 %v211, %v4304
        %v4306 = vand.u32 %v4305, 4294901760
        %v4307 = vsub.f32 %v4305, %v4306
        %v4308 = vand.u32 %v4307, 4294901760
        %4309 = vmatpush1.msra.mxu0 %v4308
        %4310 = vmatprep.subr.mxu0 0.0
        %v4311 = vand.u32 %v210, 4294901760
        %v4312 = vsub.f32 %v210, %v4311
        %v4313 = vand.u32 %v4312, 4294901760
        %v4314 = vsub.f32 %v4312, %v4313
        %v4315 = vand.u32 %v4314, 4294901760
        %4316 = vmatpush1.msra.mxu0 %v4315
        %4317 = vmatprep.subr.mxu0 0.0
        %v4318 = vand.u32 %v209, 4294901760
        %v4319 = vsub.f32 %v209, %v4318
        %v4320 = vand.u32 %v4319, 4294901760
        %v4321 = vsub.f32 %v4319, %v4320
        %v4322 = vand.u32 %v4321, 4294901760
        %4323 = vmatpush1.msra.mxu0 %v4322
        %4324 = vmatprep.subr.mxu0 0.0
        %v4325 = vand.u32 %v208, 4294901760
        %v4326 = vsub.f32 %v208, %v4325
        %v4327 = vand.u32 %v4326, 4294901760
        %v4328 = vsub.f32 %v4326, %v4327
        %v4329 = vand.u32 %v4328, 4294901760
        %4330 = vmatpush1.msra.mxu0 %v4329
        %4331 = vmatprep.subr.mxu0 0.0
        %v4332 = vand.u32 %v207, 4294901760
        %v4333 = vsub.f32 %v207, %v4332
        %v4334 = vand.u32 %v4333, 4294901760
        %v4335 = vsub.f32 %v4333, %v4334
        %v4336 = vand.u32 %v4335, 4294901760
        %4337 = vmatpush1.msra.mxu0 %v4336
        %4338 = vmatprep.subr.mxu0 0.0
        %v4339 = vand.u32 %v206, 4294901760
        %v4340 = vsub.f32 %v206, %v4339
        %v4341 = vand.u32 %v4340, 4294901760
        %v4342 = vsub.f32 %v4340, %v4341
        %v4343 = vand.u32 %v4342, 4294901760
        %4344 = vmatpush1.msra.mxu0 %v4343
        %4345 = vmatprep.subr.mxu0 0.0
        %v4346 = vand.u32 %v205, 4294901760
        %v4347 = vsub.f32 %v205, %v4346
        %v4348 = vand.u32 %v4347, 4294901760
        %v4349 = vsub.f32 %v4347, %v4348
        %v4350 = vand.u32 %v4349, 4294901760
        %4351 = vmatpush1.msra.mxu0 %v4350
        %4352 = vmatprep.subr.mxu0 0.0
        %v4353 = vand.u32 %v204, 4294901760
        %v4354 = vsub.f32 %v204, %v4353
        %v4355 = vand.u32 %v4354, 4294901760
        %v4356 = vsub.f32 %v4354, %v4355
        %v4357 = vand.u32 %v4356, 4294901760
        %4358 = vmatpush1.msra.mxu0 %v4357
        %4359 = vmatprep.subr.mxu0 0.0
        %v4360 = vand.u32 %v203, 4294901760
        %v4361 = vsub.f32 %v203, %v4360
        %v4362 = vand.u32 %v4361, 4294901760
        %v4363 = vsub.f32 %v4361, %v4362
        %v4364 = vand.u32 %v4363, 4294901760
        %4365 = vmatpush1.msra.mxu0 %v4364
        %4366 = vmatprep.subr.mxu0 0.0
        %v4367 = vand.u32 %v202, 4294901760
        %v4368 = vsub.f32 %v202, %v4367
        %v4369 = vand.u32 %v4368, 4294901760
        %v4370 = vsub.f32 %v4368, %v4369
        %v4371 = vand.u32 %v4370, 4294901760
        %4372 = vmatpush1.msra.mxu0 %v4371
        %4373 = vmatprep.subr.mxu0 0.0
        %4374 = vmatpush2.msra.mxu0 0.0
        %4375 = vmatprep.subr.mxu0 0.0
        %4376 = vmatpush2.msra.mxu0 0.0
        %4377 = vmatprep.subr.mxu0 0.0
        %4378 = vmatpush2.msra.mxu0 0.0
        %4379 = vmatprep.subr.mxu0 0.0
        %4380 = vmatpush2.msra.mxu0 0.0
        %4381 = vmatprep.subr.mxu0 0.0
        %4382 = vmatpush2.msra.mxu0 0.0
        %4383 = vmatprep.subr.mxu0 0.0
        %4384 = vmatpush2.msra.mxu0 0.0
        %4385 = vmatprep.subr.mxu0 0.0
        %4386 = vmatpush2.msra.mxu0 0.0
        %4387 = vmatprep.subr.mxu0 0.0
        %4388 = vmatpush2.msra.mxu0 0.0
        %4389 = vmatprep.subr.mxu0 0.0
        %4390 = vmatpush2.msra.mxu0 0.0
        %4391 = vmatprep.subr.mxu0 0.0
        %4392 = vmatpush2.msra.mxu0 0.0
        %4393 = vmatprep.subr.mxu0 0.0
        %4394 = vmatpush2.msra.mxu0 0.0
        %4395 = vmatprep.subr.mxu0 0.0
        %4396 = vmatpush2.msra.mxu0 0.0
        %4397 = vmatprep.subr.mxu0 0.0
        %4398 = vmatpush2.msra.mxu0 0.0
        %4399 = vmatprep.subr.mxu0 0.0
        %4400 = vmatpush2.msra.mxu0 0.0
        %4401 = vmatprep.subr.mxu0 0.0
        %4402 = vmatpush2.msra.mxu0 0.0
        %4403 = vmatprep.subr.mxu0 0.0
        %4404 = vmatpush2.msra.mxu0 0.0
        %4405 = vmatprep.mubr.f32.mxu0 0.0
        %v4406 = vand.u32 %v4168, 4294901760
        %4407 = vmatmul.mubr.f32.gmra.mxu0 %v4406
        %v4408 = vpop.f32.mrf.mxu0
        %v4409 = vadd.f32 %v4258, %v4408
        %v4410 = vpop.f32.mrf.mxu0
        %4411 = vdwg.mxu0
        %4412 = vmatprep.subr.mxu0 0.0
        %v4413 = vand.u32 %v217, 4294901760
        %v4414 = vsub.f32 %v217, %v4413
        %4415 = vmatpush1.msra.mxu0 %v4414
        %4416 = vmatprep.subr.mxu0 0.0
        %v4417 = vand.u32 %v216, 4294901760
        %v4418 = vsub.f32 %v216, %v4417
        %4419 = vmatpush1.msra.mxu0 %v4418
        %4420 = vmatprep.subr.mxu0 0.0
        %v4421 = vand.u32 %v215, 4294901760
        %v4422 = vsub.f32 %v215, %v4421
        %4423 = vmatpush1.msra.mxu0 %v4422
        %4424 = vmatprep.subr.mxu0 0.0
        %v4425 = vand.u32 %v214, 4294901760
        %v4426 = vsub.f32 %v214, %v4425
        %4427 = vmatpush1.msra.mxu0 %v4426
        %4428 = vmatprep.subr.mxu0 0.0
        %v4429 = vand.u32 %v213, 4294901760
        %v4430 = vsub.f32 %v213, %v4429
        %4431 = vmatpush1.msra.mxu0 %v4430
        %4432 = vmatprep.subr.mxu0 0.0
        %v4433 = vand.u32 %v212, 4294901760
        %v4434 = vsub.f32 %v212, %v4433
        %4435 = vmatpush1.msra.mxu0 %v4434
        %4436 = vmatprep.subr.mxu0 0.0
        %v4437 = vand.u32 %v211, 4294901760
        %v4438 = vsub.f32 %v211, %v4437
        %4439 = vmatpush1.msra.mxu0 %v4438
        %4440 = vmatprep.subr.mxu0 0.0
        %v4441 = vand.u32 %v210, 4294901760
        %v4442 = vsub.f32 %v210, %v4441
        %4443 = vmatpush1.msra.mxu0 %v4442
        %4444 = vmatprep.subr.mxu0 0.0
        %v4445 = vand.u32 %v209, 4294901760
        %v4446 = vsub.f32 %v209, %v4445
        %4447 = vmatpush1.msra.mxu0 %v4446
        %4448 = vmatprep.subr.mxu0 0.0
        %v4449 = vand.u32 %v208, 4294901760
        %v4450 = vsub.f32 %v208, %v4449
        %4451 = vmatpush1.msra.mxu0 %v4450
        %4452 = vmatprep.subr.mxu0 0.0
        %v4453 = vand.u32 %v207, 4294901760
        %v4454 = vsub.f32 %v207, %v4453
        %4455 = vmatpush1.msra.mxu0 %v4454
        %4456 = vmatprep.subr.mxu0 0.0
        %v4457 = vand.u32 %v206, 4294901760
        %v4458 = vsub.f32 %v206, %v4457
        %4459 = vmatpush1.msra.mxu0 %v4458
        %4460 = vmatprep.subr.mxu0 0.0
        %v4461 = vand.u32 %v205, 4294901760
        %v4462 = vsub.f32 %v205, %v4461
        %4463 = vmatpush1.msra.mxu0 %v4462
        %4464 = vmatprep.subr.mxu0 0.0
        %v4465 = vand.u32 %v204, 4294901760
        %v4466 = vsub.f32 %v204, %v4465
        %4467 = vmatpush1.msra.mxu0 %v4466
        %4468 = vmatprep.subr.mxu0 0.0
        %v4469 = vand.u32 %v203, 4294901760
        %v4470 = vsub.f32 %v203, %v4469
        %4471 = vmatpush1.msra.mxu0 %v4470
        %4472 = vmatprep.subr.mxu0 0.0
        %v4473 = vand.u32 %v202, 4294901760
        %v4474 = vsub.f32 %v202, %v4473
        %4475 = vmatpush1.msra.mxu0 %v4474
        %4476 = vmatprep.subr.mxu0 0.0
        %4477 = vmatpush2.msra.mxu0 0.0
        %4478 = vmatprep.subr.mxu0 0.0
        %4479 = vmatpush2.msra.mxu0 0.0
        %4480 = vmatprep.subr.mxu0 0.0
        %4481 = vmatpush2.msra.mxu0 0.0
        %4482 = vmatprep.subr.mxu0 0.0
        %4483 = vmatpush2.msra.mxu0 0.0
        %4484 = vmatprep.subr.mxu0 0.0
        %4485 = vmatpush2.msra.mxu0 0.0
        %4486 = vmatprep.subr.mxu0 0.0
        %4487 = vmatpush2.msra.mxu0 0.0
        %4488 = vmatprep.subr.mxu0 0.0
        %4489 = vmatpush2.msra.mxu0 0.0
        %4490 = vmatprep.subr.mxu0 0.0
        %4491 = vmatpush2.msra.mxu0 0.0
        %4492 = vmatprep.subr.mxu0 0.0
        %4493 = vmatpush2.msra.mxu0 0.0
        %4494 = vmatprep.subr.mxu0 0.0
        %4495 = vmatpush2.msra.mxu0 0.0
        %4496 = vmatprep.subr.mxu0 0.0
        %4497 = vmatpush2.msra.mxu0 0.0
        %4498 = vmatprep.subr.mxu0 0.0
        %4499 = vmatpush2.msra.mxu0 0.0
        %4500 = vmatprep.subr.mxu0 0.0
        %4501 = vmatpush2.msra.mxu0 0.0
        %4502 = vmatprep.subr.mxu0 0.0
        %4503 = vmatpush2.msra.mxu0 0.0
        %4504 = vmatprep.subr.mxu0 0.0
        %4505 = vmatpush2.msra.mxu0 0.0
        %4506 = vmatprep.subr.mxu0 0.0
        %4507 = vmatpush2.msra.mxu0 0.0
        %4508 = vmatprep.mubr.f32.mxu0 0.0
        %v4509 = vand.u32 %v4168, 4294901760
        %v4510 = vsub.f32 %v4168, %v4509
        %4511 = vmatmul.mubr.f32.gmra.mxu0 %v4510
        %v4512 = vpop.f32.mrf.mxu0
        %v4513 = vadd.f32 %v4409, %v4512
        %v4514 = vpop.f32.mrf.mxu0
        %4515 = vdwg.mxu0
        %4516 = vmatprep.subr.mxu0 0.0
        %v4517 = vand.u32 %v217, 4294901760
        %4518 = vmatpush1.msra.mxu0 %v4517
        %4519 = vmatprep.subr.mxu0 0.0
        %v4520 = vand.u32 %v216, 4294901760
        %4521 = vmatpush1.msra.mxu0 %v4520
        %4522 = vmatprep.subr.mxu0 0.0
        %v4523 = vand.u32 %v215, 4294901760
        %4524 = vmatpush1.msra.mxu0 %v4523
        %4525 = vmatprep.subr.mxu0 0.0
        %v4526 = vand.u32 %v214, 4294901760
        %4527 = vmatpush1.msra.mxu0 %v4526
        %4528 = vmatprep.subr.mxu0 0.0
        %v4529 = vand.u32 %v213, 4294901760
        %4530 = vmatpush1.msra.mxu0 %v4529
        %4531 = vmatprep.subr.mxu0 0.0
        %v4532 = vand.u32 %v212, 4294901760
        %4533 = vmatpush1.msra.mxu0 %v4532
        %4534 = vmatprep.subr.mxu0 0.0
        %v4535 = vand.u32 %v211, 4294901760
        %4536 = vmatpush1.msra.mxu0 %v4535
        %4537 = vmatprep.subr.mxu0 0.0
        %v4538 = vand.u32 %v210, 4294901760
        %4539 = vmatpush1.msra.mxu0 %v4538
        %4540 = vmatprep.subr.mxu0 0.0
        %v4541 = vand.u32 %v209, 4294901760
        %4542 = vmatpush1.msra.mxu0 %v4541
        %4543 = vmatprep.subr.mxu0 0.0
        %v4544 = vand.u32 %v208, 4294901760
        %4545 = vmatpush1.msra.mxu0 %v4544
        %4546 = vmatprep.subr.mxu0 0.0
        %v4547 = vand.u32 %v207, 4294901760
        %4548 = vmatpush1.msra.mxu0 %v4547
        %4549 = vmatprep.subr.mxu0 0.0
        %v4550 = vand.u32 %v206, 4294901760
        %4551 = vmatpush1.msra.mxu0 %v4550
        %4552 = vmatprep.subr.mxu0 0.0
        %v4553 = vand.u32 %v205, 4294901760
        %4554 = vmatpush1.msra.mxu0 %v4553
        %4555 = vmatprep.subr.mxu0 0.0
        %v4556 = vand.u32 %v204, 4294901760
        %4557 = vmatpush1.msra.mxu0 %v4556
        %4558 = vmatprep.subr.mxu0 0.0
        %v4559 = vand.u32 %v203, 4294901760
        %4560 = vmatpush1.msra.mxu0 %v4559
        %4561 = vmatprep.subr.mxu0 0.0
        %v4562 = vand.u32 %v202, 4294901760
        %4563 = vmatpush1.msra.mxu0 %v4562
        %4564 = vmatprep.subr.mxu0 0.0
        %4565 = vmatpush2.msra.mxu0 0.0
        %4566 = vmatprep.subr.mxu0 0.0
        %4567 = vmatpush2.msra.mxu0 0.0
        %4568 = vmatprep.subr.mxu0 0.0
        %4569 = vmatpush2.msra.mxu0 0.0
        %4570 = vmatprep.subr.mxu0 0.0
        %4571 = vmatpush2.msra.mxu0 0.0
        %4572 = vmatprep.subr.mxu0 0.0
        %4573 = vmatpush2.msra.mxu0 0.0
        %4574 = vmatprep.subr.mxu0 0.0
        %4575 = vmatpush2.msra.mxu0 0.0
        %4576 = vmatprep.subr.mxu0 0.0
        %4577 = vmatpush2.msra.mxu0 0.0
        %4578 = vmatprep.subr.mxu0 0.0
        %4579 = vmatpush2.msra.mxu0 0.0
        %4580 = vmatprep.subr.mxu0 0.0
        %4581 = vmatpush2.msra.mxu0 0.0
        %4582 = vmatprep.subr.mxu0 0.0
        %4583 = vmatpush2.msra.mxu0 0.0
        %4584 = vmatprep.subr.mxu0 0.0
        %4585 = vmatpush2.msra.mxu0 0.0
        %4586 = vmatprep.subr.mxu0 0.0
        %4587 = vmatpush2.msra.mxu0 0.0
        %4588 = vmatprep.subr.mxu0 0.0
        %4589 = vmatpush2.msra.mxu0 0.0
        %4590 = vmatprep.subr.mxu0 0.0
        %4591 = vmatpush2.msra.mxu0 0.0
        %4592 = vmatprep.subr.mxu0 0.0
        %4593 = vmatpush2.msra.mxu0 0.0
        %4594 = vmatprep.subr.mxu0 0.0
        %4595 = vmatpush2.msra.mxu0 0.0
        %4596 = vmatprep.mubr.f32.mxu0 0.0
        %v4597 = vand.u32 %v4168, 4294901760
        %v4598 = vsub.f32 %v4168, %v4597
        %v4599 = vand.u32 %v4598, 4294901760
        %4600 = vmatmul.mubr.f32.gmra.mxu0 %v4599
        %v4601 = vpop.f32.mrf.mxu0
        %v4602 = vadd.f32 %v4513, %v4601
        %v4603 = vpop.f32.mrf.mxu0
        %4604 = vdwg.mxu0
        %4605 = vmatprep.subr.mxu0 0.0
        %v4606 = vand.u32 %v217, 4294901760
        %v4607 = vsub.f32 %v217, %v4606
        %v4608 = vand.u32 %v4607, 4294901760
        %4609 = vmatpush1.msra.mxu0 %v4608
        %4610 = vmatprep.subr.mxu0 0.0
        %v4611 = vand.u32 %v216, 4294901760
        %v4612 = vsub.f32 %v216, %v4611
        %v4613 = vand.u32 %v4612, 4294901760
        %4614 = vmatpush1.msra.mxu0 %v4613
        %4615 = vmatprep.subr.mxu0 0.0
        %v4616 = vand.u32 %v215, 4294901760
        %v4617 = vsub.f32 %v215, %v4616
        %v4618 = vand.u32 %v4617, 4294901760
        %4619 = vmatpush1.msra.mxu0 %v4618
        %4620 = vmatprep.subr.mxu0 0.0
        %v4621 = vand.u32 %v214, 4294901760
        %v4622 = vsub.f32 %v214, %v4621
        %v4623 = vand.u32 %v4622, 4294901760
        %4624 = vmatpush1.msra.mxu0 %v4623
        %4625 = vmatprep.subr.mxu0 0.0
        %v4626 = vand.u32 %v213, 4294901760
        %v4627 = vsub.f32 %v213, %v4626
        %v4628 = vand.u32 %v4627, 4294901760
        %4629 = vmatpush1.msra.mxu0 %v4628
        %4630 = vmatprep.subr.mxu0 0.0
        %v4631 = vand.u32 %v212, 4294901760
        %v4632 = vsub.f32 %v212, %v4631
        %v4633 = vand.u32 %v4632, 4294901760
        %4634 = vmatpush1.msra.mxu0 %v4633
        %4635 = vmatprep.subr.mxu0 0.0
        %v4636 = vand.u32 %v211, 4294901760
        %v4637 = vsub.f32 %v211, %v4636
        %v4638 = vand.u32 %v4637, 4294901760
        %4639 = vmatpush1.msra.mxu0 %v4638
        %4640 = vmatprep.subr.mxu0 0.0
        %v4641 = vand.u32 %v210, 4294901760
        %v4642 = vsub.f32 %v210, %v4641
        %v4643 = vand.u32 %v4642, 4294901760
        %4644 = vmatpush1.msra.mxu0 %v4643
        %4645 = vmatprep.subr.mxu0 0.0
        %v4646 = vand.u32 %v209, 4294901760
        %v4647 = vsub.f32 %v209, %v4646
        %v4648 = vand.u32 %v4647, 4294901760
        %4649 = vmatpush1.msra.mxu0 %v4648
        %4650 = vmatprep.subr.mxu0 0.0
        %v4651 = vand.u32 %v208, 4294901760
        %v4652 = vsub.f32 %v208, %v4651
        %v4653 = vand.u32 %v4652, 4294901760
        %4654 = vmatpush1.msra.mxu0 %v4653
        %4655 = vmatprep.subr.mxu0 0.0
        %v4656 = vand.u32 %v207, 4294901760
        %v4657 = vsub.f32 %v207, %v4656
        %v4658 = vand.u32 %v4657, 4294901760
        %4659 = vmatpush1.msra.mxu0 %v4658
        %4660 = vmatprep.subr.mxu0 0.0
        %v4661 = vand.u32 %v206, 4294901760
        %v4662 = vsub.f32 %v206, %v4661
        %v4663 = vand.u32 %v4662, 4294901760
        %4664 = vmatpush1.msra.mxu0 %v4663
        %4665 = vmatprep.subr.mxu0 0.0
        %v4666 = vand.u32 %v205, 4294901760
        %v4667 = vsub.f32 %v205, %v4666
        %v4668 = vand.u32 %v4667, 4294901760
        %4669 = vmatpush1.msra.mxu0 %v4668
        %4670 = vmatprep.subr.mxu0 0.0
        %v4671 = vand.u32 %v204, 4294901760
        %v4672 = vsub.f32 %v204, %v4671
        %v4673 = vand.u32 %v4672, 4294901760
        %4674 = vmatpush1.msra.mxu0 %v4673
        %4675 = vmatprep.subr.mxu0 0.0
        %v4676 = vand.u32 %v203, 4294901760
        %v4677 = vsub.f32 %v203, %v4676
        %v4678 = vand.u32 %v4677, 4294901760
        %4679 = vmatpush1.msra.mxu0 %v4678
        %4680 = vmatprep.subr.mxu0 0.0
        %v4681 = vand.u32 %v202, 4294901760
        %v4682 = vsub.f32 %v202, %v4681
        %v4683 = vand.u32 %v4682, 4294901760
        %4684 = vmatpush1.msra.mxu0 %v4683
        %4685 = vmatprep.subr.mxu0 0.0
        %4686 = vmatpush2.msra.mxu0 0.0
        %4687 = vmatprep.subr.mxu0 0.0
        %4688 = vmatpush2.msra.mxu0 0.0
        %4689 = vmatprep.subr.mxu0 0.0
        %4690 = vmatpush2.msra.mxu0 0.0
        %4691 = vmatprep.subr.mxu0 0.0
        %4692 = vmatpush2.msra.mxu0 0.0
        %4693 = vmatprep.subr.mxu0 0.0
        %4694 = vmatpush2.msra.mxu0 0.0
        %4695 = vmatprep.subr.mxu0 0.0
        %4696 = vmatpush2.msra.mxu0 0.0
        %4697 = vmatprep.subr.mxu0 0.0
        %4698 = vmatpush2.msra.mxu0 0.0
        %4699 = vmatprep.subr.mxu0 0.0
        %4700 = vmatpush2.msra.mxu0 0.0
        %4701 = vmatprep.subr.mxu0 0.0
        %4702 = vmatpush2.msra.mxu0 0.0
        %4703 = vmatprep.subr.mxu0 0.0
        %4704 = vmatpush2.msra.mxu0 0.0
        %4705 = vmatprep.subr.mxu0 0.0
        %4706 = vmatpush2.msra.mxu0 0.0
        %4707 = vmatprep.subr.mxu0 0.0
        %4708 = vmatpush2.msra.mxu0 0.0
        %4709 = vmatprep.subr.mxu0 0.0
        %4710 = vmatpush2.msra.mxu0 0.0
        %4711 = vmatprep.subr.mxu0 0.0
        %4712 = vmatpush2.msra.mxu0 0.0
        %4713 = vmatprep.subr.mxu0 0.0
        %4714 = vmatpush2.msra.mxu0 0.0
        %4715 = vmatprep.subr.mxu0 0.0
        %4716 = vmatpush2.msra.mxu0 0.0
        %4717 = vmatprep.mubr.f32.mxu0 0.0
        %v4718 = vand.u32 %v4168, 4294901760
        %4719 = vmatmul.mubr.f32.gmra.mxu0 %v4718
        %v4720 = vpop.f32.mrf.mxu0
        %v4721 = vadd.f32 %v4602, %v4720
        %v4722 = vpop.f32.mrf.mxu0
        %4723 = vdwg.mxu0
        %4724 = vmatprep.subr.mxu0 0.0
        %v4725 = vand.u32 %v217, 4294901760
        %4726 = vmatpush1.msra.mxu0 %v4725
        %4727 = vmatprep.subr.mxu0 0.0
        %v4728 = vand.u32 %v216, 4294901760
        %4729 = vmatpush1.msra.mxu0 %v4728
        %4730 = vmatprep.subr.mxu0 0.0
        %v4731 = vand.u32 %v215, 4294901760
        %4732 = vmatpush1.msra.mxu0 %v4731
        %4733 = vmatprep.subr.mxu0 0.0
        %v4734 = vand.u32 %v214, 4294901760
        %4735 = vmatpush1.msra.mxu0 %v4734
        %4736 = vmatprep.subr.mxu0 0.0
        %v4737 = vand.u32 %v213, 4294901760
        %4738 = vmatpush1.msra.mxu0 %v4737
        %4739 = vmatprep.subr.mxu0 0.0
        %v4740 = vand.u32 %v212, 4294901760
        %4741 = vmatpush1.msra.mxu0 %v4740
        %4742 = vmatprep.subr.mxu0 0.0
        %v4743 = vand.u32 %v211, 4294901760
        %4744 = vmatpush1.msra.mxu0 %v4743
        %4745 = vmatprep.subr.mxu0 0.0
        %v4746 = vand.u32 %v210, 4294901760
        %4747 = vmatpush1.msra.mxu0 %v4746
        %4748 = vmatprep.subr.mxu0 0.0
        %v4749 = vand.u32 %v209, 4294901760
        %4750 = vmatpush1.msra.mxu0 %v4749
        %4751 = vmatprep.subr.mxu0 0.0
        %v4752 = vand.u32 %v208, 4294901760
        %4753 = vmatpush1.msra.mxu0 %v4752
        %4754 = vmatprep.subr.mxu0 0.0
        %v4755 = vand.u32 %v207, 4294901760
        %4756 = vmatpush1.msra.mxu0 %v4755
        %4757 = vmatprep.subr.mxu0 0.0
        %v4758 = vand.u32 %v206, 4294901760
        %4759 = vmatpush1.msra.mxu0 %v4758
        %4760 = vmatprep.subr.mxu0 0.0
        %v4761 = vand.u32 %v205, 4294901760
        %4762 = vmatpush1.msra.mxu0 %v4761
        %4763 = vmatprep.subr.mxu0 0.0
        %v4764 = vand.u32 %v204, 4294901760
        %4765 = vmatpush1.msra.mxu0 %v4764
        %4766 = vmatprep.subr.mxu0 0.0
        %v4767 = vand.u32 %v203, 4294901760
        %4768 = vmatpush1.msra.mxu0 %v4767
        %4769 = vmatprep.subr.mxu0 0.0
        %v4770 = vand.u32 %v202, 4294901760
        %4771 = vmatpush1.msra.mxu0 %v4770
        %4772 = vmatprep.subr.mxu0 0.0
        %4773 = vmatpush2.msra.mxu0 0.0
        %4774 = vmatprep.subr.mxu0 0.0
        %4775 = vmatpush2.msra.mxu0 0.0
        %4776 = vmatprep.subr.mxu0 0.0
        %4777 = vmatpush2.msra.mxu0 0.0
        %4778 = vmatprep.subr.mxu0 0.0
        %4779 = vmatpush2.msra.mxu0 0.0
        %4780 = vmatprep.subr.mxu0 0.0
        %4781 = vmatpush2.msra.mxu0 0.0
        %4782 = vmatprep.subr.mxu0 0.0
        %4783 = vmatpush2.msra.mxu0 0.0
        %4784 = vmatprep.subr.mxu0 0.0
        %4785 = vmatpush2.msra.mxu0 0.0
        %4786 = vmatprep.subr.mxu0 0.0
        %4787 = vmatpush2.msra.mxu0 0.0
        %4788 = vmatprep.subr.mxu0 0.0
        %4789 = vmatpush2.msra.mxu0 0.0
        %4790 = vmatprep.subr.mxu0 0.0
        %4791 = vmatpush2.msra.mxu0 0.0
        %4792 = vmatprep.subr.mxu0 0.0
        %4793 = vmatpush2.msra.mxu0 0.0
        %4794 = vmatprep.subr.mxu0 0.0
        %4795 = vmatpush2.msra.mxu0 0.0
        %4796 = vmatprep.subr.mxu0 0.0
        %4797 = vmatpush2.msra.mxu0 0.0
        %4798 = vmatprep.subr.mxu0 0.0
        %4799 = vmatpush2.msra.mxu0 0.0
        %4800 = vmatprep.subr.mxu0 0.0
        %4801 = vmatpush2.msra.mxu0 0.0
        %4802 = vmatprep.subr.mxu0 0.0
        %4803 = vmatpush2.msra.mxu0 0.0
        %4804 = vmatprep.mubr.f32.mxu0 0.0
        %v4805 = vand.u32 %v4168, 4294901760
        %4806 = vmatmul.mubr.f32.gmra.mxu0 %v4805
        %v4807 = vpop.f32.mrf.mxu0
        %v4808 = vadd.f32 %v4721, %v4807
        %v4809 = vpop.f32.mrf.mxu0
        %4810 = vdwg.mxu0
        %v4812 = vrot.slane %v4808, 1
        %v4815 = vadd.f32 %v4163, %v4808
        %v4816 = vadd.f32 %v4164, %v4812
        %v4817 = vtanh.pop %v4815
        %v4818 = vtanh.pop %v4816
        %4819 = vst [vmem:[%s194 + $0x6] sm:$0x1] %v4817
        %4820 = vst [vmem:[%s194 + $0xe] sm:$0x1] %v4818
        %v4821 = vld [vmem:[%s170 + $0x7] sm:$0x1]
        %v4822 = vld [vmem:[%s170 + $0xf] sm:$0x1]
        %v4825 = vrot.slane %v4818, 7
        %v4826 = vsel %vm877, %v4825, %v4817
        %4828 = vmatprep.subr.mxu0 0.0
        %v4829 = vand.u32 %v217, 4294901760
        %4830 = vmatpush1.msra.mxu0 %v4829
        %4831 = vmatprep.subr.mxu0 0.0
        %v4832 = vand.u32 %v216, 4294901760
        %4833 = vmatpush1.msra.mxu0 %v4832
        %4834 = vmatprep.subr.mxu0 0.0
        %v4835 = vand.u32 %v215, 4294901760
        %4836 = vmatpush1.msra.mxu0 %v4835
        %4837 = vmatprep.subr.mxu0 0.0
        %v4838 = vand.u32 %v214, 4294901760
        %4839 = vmatpush1.msra.mxu0 %v4838
        %4840 = vmatprep.subr.mxu0 0.0
        %v4841 = vand.u32 %v213, 4294901760
        %4842 = vmatpush1.msra.mxu0 %v4841
        %4843 = vmatprep.subr.mxu0 0.0
        %v4844 = vand.u32 %v212, 4294901760
        %4845 = vmatpush1.msra.mxu0 %v4844
        %4846 = vmatprep.subr.mxu0 0.0
        %v4847 = vand.u32 %v211, 4294901760
        %4848 = vmatpush1.msra.mxu0 %v4847
        %4849 = vmatprep.subr.mxu0 0.0
        %v4850 = vand.u32 %v210, 4294901760
        %4851 = vmatpush1.msra.mxu0 %v4850
        %4852 = vmatprep.subr.mxu0 0.0
        %v4853 = vand.u32 %v209, 4294901760
        %4854 = vmatpush1.msra.mxu0 %v4853
        %4855 = vmatprep.subr.mxu0 0.0
        %v4856 = vand.u32 %v208, 4294901760
        %4857 = vmatpush1.msra.mxu0 %v4856
        %4858 = vmatprep.subr.mxu0 0.0
        %v4859 = vand.u32 %v207, 4294901760
        %4860 = vmatpush1.msra.mxu0 %v4859
        %4861 = vmatprep.subr.mxu0 0.0
        %v4862 = vand.u32 %v206, 4294901760
        %4863 = vmatpush1.msra.mxu0 %v4862
        %4864 = vmatprep.subr.mxu0 0.0
        %v4865 = vand.u32 %v205, 4294901760
        %4866 = vmatpush1.msra.mxu0 %v4865
        %4867 = vmatprep.subr.mxu0 0.0
        %v4868 = vand.u32 %v204, 4294901760
        %4869 = vmatpush1.msra.mxu0 %v4868
        %4870 = vmatprep.subr.mxu0 0.0
        %v4871 = vand.u32 %v203, 4294901760
        %4872 = vmatpush1.msra.mxu0 %v4871
        %4873 = vmatprep.subr.mxu0 0.0
        %v4874 = vand.u32 %v202, 4294901760
        %4875 = vmatpush1.msra.mxu0 %v4874
        %4876 = vmatprep.subr.mxu0 0.0
        %4877 = vmatpush2.msra.mxu0 0.0
        %4878 = vmatprep.subr.mxu0 0.0
        %4879 = vmatpush2.msra.mxu0 0.0
        %4880 = vmatprep.subr.mxu0 0.0
        %4881 = vmatpush2.msra.mxu0 0.0
        %4882 = vmatprep.subr.mxu0 0.0
        %4883 = vmatpush2.msra.mxu0 0.0
        %4884 = vmatprep.subr.mxu0 0.0
        %4885 = vmatpush2.msra.mxu0 0.0
        %4886 = vmatprep.subr.mxu0 0.0
        %4887 = vmatpush2.msra.mxu0 0.0
        %4888 = vmatprep.subr.mxu0 0.0
        %4889 = vmatpush2.msra.mxu0 0.0
        %4890 = vmatprep.subr.mxu0 0.0
        %4891 = vmatpush2.msra.mxu0 0.0
        %4892 = vmatprep.subr.mxu0 0.0
        %4893 = vmatpush2.msra.mxu0 0.0
        %4894 = vmatprep.subr.mxu0 0.0
        %4895 = vmatpush2.msra.mxu0 0.0
        %4896 = vmatprep.subr.mxu0 0.0
        %4897 = vmatpush2.msra.mxu0 0.0
        %4898 = vmatprep.subr.mxu0 0.0
        %4899 = vmatpush2.msra.mxu0 0.0
        %4900 = vmatprep.subr.mxu0 0.0
        %4901 = vmatpush2.msra.mxu0 0.0
        %4902 = vmatprep.subr.mxu0 0.0
        %4903 = vmatpush2.msra.mxu0 0.0
        %4904 = vmatprep.subr.mxu0 0.0
        %4905 = vmatpush2.msra.mxu0 0.0
        %4906 = vmatprep.subr.mxu0 0.0
        %4907 = vmatpush2.msra.mxu0 0.0
        %4908 = vmatprep.mubr.f32.mxu0 0.0
        %v4909 = vand.u32 %v4826, 4294901760
        %v4910 = vsub.f32 %v4826, %v4909
        %v4911 = vand.u32 %v4910, 4294901760
        %v4912 = vsub.f32 %v4910, %v4911
        %v4913 = vand.u32 %v4912, 4294901760
        %4914 = vmatmul.mubr.f32.gmra.mxu0 %v4913
        %v4915 = vpop.f32.mrf.mxu0
        %v4916 = vadd.f32 0.0, %v4915
        %v4917 = vpop.f32.mrf.mxu0
        %4918 = vdwg.mxu0
        %4919 = vmatprep.subr.mxu0 0.0
        %v4920 = vand.u32 %v217, 4294901760
        %v4921 = vsub.f32 %v217, %v4920
        %v4922 = vand.u32 %v4921, 4294901760
        %v4923 = vsub.f32 %v4921, %v4922
        %v4924 = vand.u32 %v4923, 4294901760
        %4925 = vmatpush1.msra.mxu0 %v4924
        %4926 = vmatprep.subr.mxu0 0.0
        %v4927 = vand.u32 %v216, 4294901760
        %v4928 = vsub.f32 %v216, %v4927
        %v4929 = vand.u32 %v4928, 4294901760
        %v4930 = vsub.f32 %v4928, %v4929
        %v4931 = vand.u32 %v4930, 4294901760
        %4932 = vmatpush1.msra.mxu0 %v4931
        %4933 = vmatprep.subr.mxu0 0.0
        %v4934 = vand.u32 %v215, 4294901760
        %v4935 = vsub.f32 %v215, %v4934
        %v4936 = vand.u32 %v4935, 4294901760
        %v4937 = vsub.f32 %v4935, %v4936
        %v4938 = vand.u32 %v4937, 4294901760
        %4939 = vmatpush1.msra.mxu0 %v4938
        %4940 = vmatprep.subr.mxu0 0.0
        %v4941 = vand.u32 %v214, 4294901760
        %v4942 = vsub.f32 %v214, %v4941
        %v4943 = vand.u32 %v4942, 4294901760
        %v4944 = vsub.f32 %v4942, %v4943
        %v4945 = vand.u32 %v4944, 4294901760
        %4946 = vmatpush1.msra.mxu0 %v4945
        %4947 = vmatprep.subr.mxu0 0.0
        %v4948 = vand.u32 %v213, 4294901760
        %v4949 = vsub.f32 %v213, %v4948
        %v4950 = vand.u32 %v4949, 4294901760
        %v4951 = vsub.f32 %v4949, %v4950
        %v4952 = vand.u32 %v4951, 4294901760
        %4953 = vmatpush1.msra.mxu0 %v4952
        %4954 = vmatprep.subr.mxu0 0.0
        %v4955 = vand.u32 %v212, 4294901760
        %v4956 = vsub.f32 %v212, %v4955
        %v4957 = vand.u32 %v4956, 4294901760
        %v4958 = vsub.f32 %v4956, %v4957
        %v4959 = vand.u32 %v4958, 4294901760
        %4960 = vmatpush1.msra.mxu0 %v4959
        %4961 = vmatprep.subr.mxu0 0.0
        %v4962 = vand.u32 %v211, 4294901760
        %v4963 = vsub.f32 %v211, %v4962
        %v4964 = vand.u32 %v4963, 4294901760
        %v4965 = vsub.f32 %v4963, %v4964
        %v4966 = vand.u32 %v4965, 4294901760
        %4967 = vmatpush1.msra.mxu0 %v4966
        %4968 = vmatprep.subr.mxu0 0.0
        %v4969 = vand.u32 %v210, 4294901760
        %v4970 = vsub.f32 %v210, %v4969
        %v4971 = vand.u32 %v4970, 4294901760
        %v4972 = vsub.f32 %v4970, %v4971
        %v4973 = vand.u32 %v4972, 4294901760
        %4974 = vmatpush1.msra.mxu0 %v4973
        %4975 = vmatprep.subr.mxu0 0.0
        %v4976 = vand.u32 %v209, 4294901760
        %v4977 = vsub.f32 %v209, %v4976
        %v4978 = vand.u32 %v4977, 4294901760
        %v4979 = vsub.f32 %v4977, %v4978
        %v4980 = vand.u32 %v4979, 4294901760
        %4981 = vmatpush1.msra.mxu0 %v4980
        %4982 = vmatprep.subr.mxu0 0.0
        %v4983 = vand.u32 %v208, 4294901760
        %v4984 = vsub.f32 %v208, %v4983
        %v4985 = vand.u32 %v4984, 4294901760
        %v4986 = vsub.f32 %v4984, %v4985
        %v4987 = vand.u32 %v4986, 4294901760
        %4988 = vmatpush1.msra.mxu0 %v4987
        %4989 = vmatprep.subr.mxu0 0.0
        %v4990 = vand.u32 %v207, 4294901760
        %v4991 = vsub.f32 %v207, %v4990
        %v4992 = vand.u32 %v4991, 4294901760
        %v4993 = vsub.f32 %v4991, %v4992
        %v4994 = vand.u32 %v4993, 4294901760
        %4995 = vmatpush1.msra.mxu0 %v4994
        %4996 = vmatprep.subr.mxu0 0.0
        %v4997 = vand.u32 %v206, 4294901760
        %v4998 = vsub.f32 %v206, %v4997
        %v4999 = vand.u32 %v4998, 4294901760
        %v5000 = vsub.f32 %v4998, %v4999
        %v5001 = vand.u32 %v5000, 4294901760
        %5002 = vmatpush1.msra.mxu0 %v5001
        %5003 = vmatprep.subr.mxu0 0.0
        %v5004 = vand.u32 %v205, 4294901760
        %v5005 = vsub.f32 %v205, %v5004
        %v5006 = vand.u32 %v5005, 4294901760
        %v5007 = vsub.f32 %v5005, %v5006
        %v5008 = vand.u32 %v5007, 4294901760
        %5009 = vmatpush1.msra.mxu0 %v5008
        %5010 = vmatprep.subr.mxu0 0.0
        %v5011 = vand.u32 %v204, 4294901760
        %v5012 = vsub.f32 %v204, %v5011
        %v5013 = vand.u32 %v5012, 4294901760
        %v5014 = vsub.f32 %v5012, %v5013
        %v5015 = vand.u32 %v5014, 4294901760
        %5016 = vmatpush1.msra.mxu0 %v5015
        %5017 = vmatprep.subr.mxu0 0.0
        %v5018 = vand.u32 %v203, 4294901760
        %v5019 = vsub.f32 %v203, %v5018
        %v5020 = vand.u32 %v5019, 4294901760
        %v5021 = vsub.f32 %v5019, %v5020
        %v5022 = vand.u32 %v5021, 4294901760
        %5023 = vmatpush1.msra.mxu0 %v5022
        %5024 = vmatprep.subr.mxu0 0.0
        %v5025 = vand.u32 %v202, 4294901760
        %v5026 = vsub.f32 %v202, %v5025
        %v5027 = vand.u32 %v5026, 4294901760
        %v5028 = vsub.f32 %v5026, %v5027
        %v5029 = vand.u32 %v5028, 4294901760
        %5030 = vmatpush1.msra.mxu0 %v5029
        %5031 = vmatprep.subr.mxu0 0.0
        %5032 = vmatpush2.msra.mxu0 0.0
        %5033 = vmatprep.subr.mxu0 0.0
        %5034 = vmatpush2.msra.mxu0 0.0
        %5035 = vmatprep.subr.mxu0 0.0
        %5036 = vmatpush2.msra.mxu0 0.0
        %5037 = vmatprep.subr.mxu0 0.0
        %5038 = vmatpush2.msra.mxu0 0.0
        %5039 = vmatprep.subr.mxu0 0.0
        %5040 = vmatpush2.msra.mxu0 0.0
        %5041 = vmatprep.subr.mxu0 0.0
        %5042 = vmatpush2.msra.mxu0 0.0
        %5043 = vmatprep.subr.mxu0 0.0
        %5044 = vmatpush2.msra.mxu0 0.0
        %5045 = vmatprep.subr.mxu0 0.0
        %5046 = vmatpush2.msra.mxu0 0.0
        %5047 = vmatprep.subr.mxu0 0.0
        %5048 = vmatpush2.msra.mxu0 0.0
        %5049 = vmatprep.subr.mxu0 0.0
        %5050 = vmatpush2.msra.mxu0 0.0
        %5051 = vmatprep.subr.mxu0 0.0
        %5052 = vmatpush2.msra.mxu0 0.0
        %5053 = vmatprep.subr.mxu0 0.0
        %5054 = vmatpush2.msra.mxu0 0.0
        %5055 = vmatprep.subr.mxu0 0.0
        %5056 = vmatpush2.msra.mxu0 0.0
        %5057 = vmatprep.subr.mxu0 0.0
        %5058 = vmatpush2.msra.mxu0 0.0
        %5059 = vmatprep.subr.mxu0 0.0
        %5060 = vmatpush2.msra.mxu0 0.0
        %5061 = vmatprep.subr.mxu0 0.0
        %5062 = vmatpush2.msra.mxu0 0.0
        %5063 = vmatprep.mubr.f32.mxu0 0.0
        %v5064 = vand.u32 %v4826, 4294901760
        %5065 = vmatmul.mubr.f32.gmra.mxu0 %v5064
        %v5066 = vpop.f32.mrf.mxu0
        %v5067 = vadd.f32 %v4916, %v5066
        %v5068 = vpop.f32.mrf.mxu0
        %5069 = vdwg.mxu0
        %5070 = vmatprep.subr.mxu0 0.0
        %v5071 = vand.u32 %v217, 4294901760
        %v5072 = vsub.f32 %v217, %v5071
        %5073 = vmatpush1.msra.mxu0 %v5072
        %5074 = vmatprep.subr.mxu0 0.0
        %v5075 = vand.u32 %v216, 4294901760
        %v5076 = vsub.f32 %v216, %v5075
        %5077 = vmatpush1.msra.mxu0 %v5076
        %5078 = vmatprep.subr.mxu0 0.0
        %v5079 = vand.u32 %v215, 4294901760
        %v5080 = vsub.f32 %v215, %v5079
        %5081 = vmatpush1.msra.mxu0 %v5080
        %5082 = vmatprep.subr.mxu0 0.0
        %v5083 = vand.u32 %v214, 4294901760
        %v5084 = vsub.f32 %v214, %v5083
        %5085 = vmatpush1.msra.mxu0 %v5084
        %5086 = vmatprep.subr.mxu0 0.0
        %v5087 = vand.u32 %v213, 4294901760
        %v5088 = vsub.f32 %v213, %v5087
        %5089 = vmatpush1.msra.mxu0 %v5088
        %5090 = vmatprep.subr.mxu0 0.0
        %v5091 = vand.u32 %v212, 4294901760
        %v5092 = vsub.f32 %v212, %v5091
        %5093 = vmatpush1.msra.mxu0 %v5092
        %5094 = vmatprep.subr.mxu0 0.0
        %v5095 = vand.u32 %v211, 4294901760
        %v5096 = vsub.f32 %v211, %v5095
        %5097 = vmatpush1.msra.mxu0 %v5096
        %5098 = vmatprep.subr.mxu0 0.0
        %v5099 = vand.u32 %v210, 4294901760
        %v5100 = vsub.f32 %v210, %v5099
        %5101 = vmatpush1.msra.mxu0 %v5100
        %5102 = vmatprep.subr.mxu0 0.0
        %v5103 = vand.u32 %v209, 4294901760
        %v5104 = vsub.f32 %v209, %v5103
        %5105 = vmatpush1.msra.mxu0 %v5104
        %5106 = vmatprep.subr.mxu0 0.0
        %v5107 = vand.u32 %v208, 4294901760
        %v5108 = vsub.f32 %v208, %v5107
        %5109 = vmatpush1.msra.mxu0 %v5108
        %5110 = vmatprep.subr.mxu0 0.0
        %v5111 = vand.u32 %v207, 4294901760
        %v5112 = vsub.f32 %v207, %v5111
        %5113 = vmatpush1.msra.mxu0 %v5112
        %5114 = vmatprep.subr.mxu0 0.0
        %v5115 = vand.u32 %v206, 4294901760
        %v5116 = vsub.f32 %v206, %v5115
        %5117 = vmatpush1.msra.mxu0 %v5116
        %5118 = vmatprep.subr.mxu0 0.0
        %v5119 = vand.u32 %v205, 4294901760
        %v5120 = vsub.f32 %v205, %v5119
        %5121 = vmatpush1.msra.mxu0 %v5120
        %5122 = vmatprep.subr.mxu0 0.0
        %v5123 = vand.u32 %v204, 4294901760
        %v5124 = vsub.f32 %v204, %v5123
        %5125 = vmatpush1.msra.mxu0 %v5124
        %5126 = vmatprep.subr.mxu0 0.0
        %v5127 = vand.u32 %v203, 4294901760
        %v5128 = vsub.f32 %v203, %v5127
        %5129 = vmatpush1.msra.mxu0 %v5128
        %5130 = vmatprep.subr.mxu0 0.0
        %v5131 = vand.u32 %v202, 4294901760
        %v5132 = vsub.f32 %v202, %v5131
        %5133 = vmatpush1.msra.mxu0 %v5132
        %5134 = vmatprep.subr.mxu0 0.0
        %5135 = vmatpush2.msra.mxu0 0.0
        %5136 = vmatprep.subr.mxu0 0.0
        %5137 = vmatpush2.msra.mxu0 0.0
        %5138 = vmatprep.subr.mxu0 0.0
        %5139 = vmatpush2.msra.mxu0 0.0
        %5140 = vmatprep.subr.mxu0 0.0
        %5141 = vmatpush2.msra.mxu0 0.0
        %5142 = vmatprep.subr.mxu0 0.0
        %5143 = vmatpush2.msra.mxu0 0.0
        %5144 = vmatprep.subr.mxu0 0.0
        %5145 = vmatpush2.msra.mxu0 0.0
        %5146 = vmatprep.subr.mxu0 0.0
        %5147 = vmatpush2.msra.mxu0 0.0
        %5148 = vmatprep.subr.mxu0 0.0
        %5149 = vmatpush2.msra.mxu0 0.0
        %5150 = vmatprep.subr.mxu0 0.0
        %5151 = vmatpush2.msra.mxu0 0.0
        %5152 = vmatprep.subr.mxu0 0.0
        %5153 = vmatpush2.msra.mxu0 0.0
        %5154 = vmatprep.subr.mxu0 0.0
        %5155 = vmatpush2.msra.mxu0 0.0
        %5156 = vmatprep.subr.mxu0 0.0
        %5157 = vmatpush2.msra.mxu0 0.0
        %5158 = vmatprep.subr.mxu0 0.0
        %5159 = vmatpush2.msra.mxu0 0.0
        %5160 = vmatprep.subr.mxu0 0.0
        %5161 = vmatpush2.msra.mxu0 0.0
        %5162 = vmatprep.subr.mxu0 0.0
        %5163 = vmatpush2.msra.mxu0 0.0
        %5164 = vmatprep.subr.mxu0 0.0
        %5165 = vmatpush2.msra.mxu0 0.0
        %5166 = vmatprep.mubr.f32.mxu0 0.0
        %v5167 = vand.u32 %v4826, 4294901760
        %v5168 = vsub.f32 %v4826, %v5167
        %5169 = vmatmul.mubr.f32.gmra.mxu0 %v5168
        %v5170 = vpop.f32.mrf.mxu0
        %v5171 = vadd.f32 %v5067, %v5170
        %v5172 = vpop.f32.mrf.mxu0
        %5173 = vdwg.mxu0
        %5174 = vmatprep.subr.mxu0 0.0
        %v5175 = vand.u32 %v217, 4294901760
        %5176 = vmatpush1.msra.mxu0 %v5175
        %5177 = vmatprep.subr.mxu0 0.0
        %v5178 = vand.u32 %v216, 4294901760
        %5179 = vmatpush1.msra.mxu0 %v5178
        %5180 = vmatprep.subr.mxu0 0.0
        %v5181 = vand.u32 %v215, 4294901760
        %5182 = vmatpush1.msra.mxu0 %v5181
        %5183 = vmatprep.subr.mxu0 0.0
        %v5184 = vand.u32 %v214, 4294901760
        %5185 = vmatpush1.msra.mxu0 %v5184
        %5186 = vmatprep.subr.mxu0 0.0
        %v5187 = vand.u32 %v213, 4294901760
        %5188 = vmatpush1.msra.mxu0 %v5187
        %5189 = vmatprep.subr.mxu0 0.0
        %v5190 = vand.u32 %v212, 4294901760
        %5191 = vmatpush1.msra.mxu0 %v5190
        %5192 = vmatprep.subr.mxu0 0.0
        %v5193 = vand.u32 %v211, 4294901760
        %5194 = vmatpush1.msra.mxu0 %v5193
        %5195 = vmatprep.subr.mxu0 0.0
        %v5196 = vand.u32 %v210, 4294901760
        %5197 = vmatpush1.msra.mxu0 %v5196
        %5198 = vmatprep.subr.mxu0 0.0
        %v5199 = vand.u32 %v209, 4294901760
        %5200 = vmatpush1.msra.mxu0 %v5199
        %5201 = vmatprep.subr.mxu0 0.0
        %v5202 = vand.u32 %v208, 4294901760
        %5203 = vmatpush1.msra.mxu0 %v5202
        %5204 = vmatprep.subr.mxu0 0.0
        %v5205 = vand.u32 %v207, 4294901760
        %5206 = vmatpush1.msra.mxu0 %v5205
        %5207 = vmatprep.subr.mxu0 0.0
        %v5208 = vand.u32 %v206, 4294901760
        %5209 = vmatpush1.msra.mxu0 %v5208
        %5210 = vmatprep.subr.mxu0 0.0
        %v5211 = vand.u32 %v205, 4294901760
        %5212 = vmatpush1.msra.mxu0 %v5211
        %5213 = vmatprep.subr.mxu0 0.0
        %v5214 = vand.u32 %v204, 4294901760
        %5215 = vmatpush1.msra.mxu0 %v5214
        %5216 = vmatprep.subr.mxu0 0.0
        %v5217 = vand.u32 %v203, 4294901760
        %5218 = vmatpush1.msra.mxu0 %v5217
        %5219 = vmatprep.subr.mxu0 0.0
        %v5220 = vand.u32 %v202, 4294901760
        %5221 = vmatpush1.msra.mxu0 %v5220
        %5222 = vmatprep.subr.mxu0 0.0
        %5223 = vmatpush2.msra.mxu0 0.0
        %5224 = vmatprep.subr.mxu0 0.0
        %5225 = vmatpush2.msra.mxu0 0.0
        %5226 = vmatprep.subr.mxu0 0.0
        %5227 = vmatpush2.msra.mxu0 0.0
        %5228 = vmatprep.subr.mxu0 0.0
        %5229 = vmatpush2.msra.mxu0 0.0
        %5230 = vmatprep.subr.mxu0 0.0
        %5231 = vmatpush2.msra.mxu0 0.0
        %5232 = vmatprep.subr.mxu0 0.0
        %5233 = vmatpush2.msra.mxu0 0.0
        %5234 = vmatprep.subr.mxu0 0.0
        %5235 = vmatpush2.msra.mxu0 0.0
        %5236 = vmatprep.subr.mxu0 0.0
        %5237 = vmatpush2.msra.mxu0 0.0
        %5238 = vmatprep.subr.mxu0 0.0
        %5239 = vmatpush2.msra.mxu0 0.0
        %5240 = vmatprep.subr.mxu0 0.0
        %5241 = vmatpush2.msra.mxu0 0.0
        %5242 = vmatprep.subr.mxu0 0.0
        %5243 = vmatpush2.msra.mxu0 0.0
        %5244 = vmatprep.subr.mxu0 0.0
        %5245 = vmatpush2.msra.mxu0 0.0
        %5246 = vmatprep.subr.mxu0 0.0
        %5247 = vmatpush2.msra.mxu0 0.0
        %5248 = vmatprep.subr.mxu0 0.0
        %5249 = vmatpush2.msra.mxu0 0.0
        %5250 = vmatprep.subr.mxu0 0.0
        %5251 = vmatpush2.msra.mxu0 0.0
        %5252 = vmatprep.subr.mxu0 0.0
        %5253 = vmatpush2.msra.mxu0 0.0
        %5254 = vmatprep.mubr.f32.mxu0 0.0
        %v5255 = vand.u32 %v4826, 4294901760
        %v5256 = vsub.f32 %v4826, %v5255
        %v5257 = vand.u32 %v5256, 4294901760
        %5258 = vmatmul.mubr.f32.gmra.mxu0 %v5257
        %v5259 = vpop.f32.mrf.mxu0
        %v5260 = vadd.f32 %v5171, %v5259
        %v5261 = vpop.f32.mrf.mxu0
        %5262 = vdwg.mxu0
        %5263 = vmatprep.subr.mxu0 0.0
        %v5264 = vand.u32 %v217, 4294901760
        %v5265 = vsub.f32 %v217, %v5264
        %v5266 = vand.u32 %v5265, 4294901760
        %5267 = vmatpush1.msra.mxu0 %v5266
        %5268 = vmatprep.subr.mxu0 0.0
        %v5269 = vand.u32 %v216, 4294901760
        %v5270 = vsub.f32 %v216, %v5269
        %v5271 = vand.u32 %v5270, 4294901760
        %5272 = vmatpush1.msra.mxu0 %v5271
        %5273 = vmatprep.subr.mxu0 0.0
        %v5274 = vand.u32 %v215, 4294901760
        %v5275 = vsub.f32 %v215, %v5274
        %v5276 = vand.u32 %v5275, 4294901760
        %5277 = vmatpush1.msra.mxu0 %v5276
        %5278 = vmatprep.subr.mxu0 0.0
        %v5279 = vand.u32 %v214, 4294901760
        %v5280 = vsub.f32 %v214, %v5279
        %v5281 = vand.u32 %v5280, 4294901760
        %5282 = vmatpush1.msra.mxu0 %v5281
        %5283 = vmatprep.subr.mxu0 0.0
        %v5284 = vand.u32 %v213, 4294901760
        %v5285 = vsub.f32 %v213, %v5284
        %v5286 = vand.u32 %v5285, 4294901760
        %5287 = vmatpush1.msra.mxu0 %v5286
        %5288 = vmatprep.subr.mxu0 0.0
        %v5289 = vand.u32 %v212, 4294901760
        %v5290 = vsub.f32 %v212, %v5289
        %v5291 = vand.u32 %v5290, 4294901760
        %5292 = vmatpush1.msra.mxu0 %v5291
        %5293 = vmatprep.subr.mxu0 0.0
        %v5294 = vand.u32 %v211, 4294901760
        %v5295 = vsub.f32 %v211, %v5294
        %v5296 = vand.u32 %v5295, 4294901760
        %5297 = vmatpush1.msra.mxu0 %v5296
        %5298 = vmatprep.subr.mxu0 0.0
        %v5299 = vand.u32 %v210, 4294901760
        %v5300 = vsub.f32 %v210, %v5299
        %v5301 = vand.u32 %v5300, 4294901760
        %5302 = vmatpush1.msra.mxu0 %v5301
        %5303 = vmatprep.subr.mxu0 0.0
        %v5304 = vand.u32 %v209, 4294901760
        %v5305 = vsub.f32 %v209, %v5304
        %v5306 = vand.u32 %v5305, 4294901760
        %5307 = vmatpush1.msra.mxu0 %v5306
        %5308 = vmatprep.subr.mxu0 0.0
        %v5309 = vand.u32 %v208, 4294901760
        %v5310 = vsub.f32 %v208, %v5309
        %v5311 = vand.u32 %v5310, 4294901760
        %5312 = vmatpush1.msra.mxu0 %v5311
        %5313 = vmatprep.subr.mxu0 0.0
        %v5314 = vand.u32 %v207, 4294901760
        %v5315 = vsub.f32 %v207, %v5314
        %v5316 = vand.u32 %v5315, 4294901760
        %5317 = vmatpush1.msra.mxu0 %v5316
        %5318 = vmatprep.subr.mxu0 0.0
        %v5319 = vand.u32 %v206, 4294901760
        %v5320 = vsub.f32 %v206, %v5319
        %v5321 = vand.u32 %v5320, 4294901760
        %5322 = vmatpush1.msra.mxu0 %v5321
        %5323 = vmatprep.subr.mxu0 0.0
        %v5324 = vand.u32 %v205, 4294901760
        %v5325 = vsub.f32 %v205, %v5324
        %v5326 = vand.u32 %v5325, 4294901760
        %5327 = vmatpush1.msra.mxu0 %v5326
        %5328 = vmatprep.subr.mxu0 0.0
        %v5329 = vand.u32 %v204, 4294901760
        %v5330 = vsub.f32 %v204, %v5329
        %v5331 = vand.u32 %v5330, 4294901760
        %5332 = vmatpush1.msra.mxu0 %v5331
        %5333 = vmatprep.subr.mxu0 0.0
        %v5334 = vand.u32 %v203, 4294901760
        %v5335 = vsub.f32 %v203, %v5334
        %v5336 = vand.u32 %v5335, 4294901760
        %5337 = vmatpush1.msra.mxu0 %v5336
        %5338 = vmatprep.subr.mxu0 0.0
        %v5339 = vand.u32 %v202, 4294901760
        %v5340 = vsub.f32 %v202, %v5339
        %v5341 = vand.u32 %v5340, 4294901760
        %5342 = vmatpush1.msra.mxu0 %v5341
        %5343 = vmatprep.subr.mxu0 0.0
        %5344 = vmatpush2.msra.mxu0 0.0
        %5345 = vmatprep.subr.mxu0 0.0
        %5346 = vmatpush2.msra.mxu0 0.0
        %5347 = vmatprep.subr.mxu0 0.0
        %5348 = vmatpush2.msra.mxu0 0.0
        %5349 = vmatprep.subr.mxu0 0.0
        %5350 = vmatpush2.msra.mxu0 0.0
        %5351 = vmatprep.subr.mxu0 0.0
        %5352 = vmatpush2.msra.mxu0 0.0
        %5353 = vmatprep.subr.mxu0 0.0
        %5354 = vmatpush2.msra.mxu0 0.0
        %5355 = vmatprep.subr.mxu0 0.0
        %5356 = vmatpush2.msra.mxu0 0.0
        %5357 = vmatprep.subr.mxu0 0.0
        %5358 = vmatpush2.msra.mxu0 0.0
        %5359 = vmatprep.subr.mxu0 0.0
        %5360 = vmatpush2.msra.mxu0 0.0
        %5361 = vmatprep.subr.mxu0 0.0
        %5362 = vmatpush2.msra.mxu0 0.0
        %5363 = vmatprep.subr.mxu0 0.0
        %5364 = vmatpush2.msra.mxu0 0.0
        %5365 = vmatprep.subr.mxu0 0.0
        %5366 = vmatpush2.msra.mxu0 0.0
        %5367 = vmatprep.subr.mxu0 0.0
        %5368 = vmatpush2.msra.mxu0 0.0
        %5369 = vmatprep.subr.mxu0 0.0
        %5370 = vmatpush2.msra.mxu0 0.0
        %5371 = vmatprep.subr.mxu0 0.0
        %5372 = vmatpush2.msra.mxu0 0.0
        %5373 = vmatprep.subr.mxu0 0.0
        %5374 = vmatpush2.msra.mxu0 0.0
        %5375 = vmatprep.mubr.f32.mxu0 0.0
        %v5376 = vand.u32 %v4826, 4294901760
        %5377 = vmatmul.mubr.f32.gmra.mxu0 %v5376
        %v5378 = vpop.f32.mrf.mxu0
        %v5379 = vadd.f32 %v5260, %v5378
        %v5380 = vpop.f32.mrf.mxu0
        %5381 = vdwg.mxu0
        %5382 = vmatprep.subr.mxu0 0.0
        %v5383 = vand.u32 %v217, 4294901760
        %5384 = vmatpush1.msra.mxu0 %v5383
        %5385 = vmatprep.subr.mxu0 0.0
        %v5386 = vand.u32 %v216, 4294901760
        %5387 = vmatpush1.msra.mxu0 %v5386
        %5388 = vmatprep.subr.mxu0 0.0
        %v5389 = vand.u32 %v215, 4294901760
        %5390 = vmatpush1.msra.mxu0 %v5389
        %5391 = vmatprep.subr.mxu0 0.0
        %v5392 = vand.u32 %v214, 4294901760
        %5393 = vmatpush1.msra.mxu0 %v5392
        %5394 = vmatprep.subr.mxu0 0.0
        %v5395 = vand.u32 %v213, 4294901760
        %5396 = vmatpush1.msra.mxu0 %v5395
        %5397 = vmatprep.subr.mxu0 0.0
        %v5398 = vand.u32 %v212, 4294901760
        %5399 = vmatpush1.msra.mxu0 %v5398
        %5400 = vmatprep.subr.mxu0 0.0
        %v5401 = vand.u32 %v211, 4294901760
        %5402 = vmatpush1.msra.mxu0 %v5401
        %5403 = vmatprep.subr.mxu0 0.0
        %v5404 = vand.u32 %v210, 4294901760
        %5405 = vmatpush1.msra.mxu0 %v5404
        %5406 = vmatprep.subr.mxu0 0.0
        %v5407 = vand.u32 %v209, 4294901760
        %5408 = vmatpush1.msra.mxu0 %v5407
        %5409 = vmatprep.subr.mxu0 0.0
        %v5410 = vand.u32 %v208, 4294901760
        %5411 = vmatpush1.msra.mxu0 %v5410
        %5412 = vmatprep.subr.mxu0 0.0
        %v5413 = vand.u32 %v207, 4294901760
        %5414 = vmatpush1.msra.mxu0 %v5413
        %5415 = vmatprep.subr.mxu0 0.0
        %v5416 = vand.u32 %v206, 4294901760
        %5417 = vmatpush1.msra.mxu0 %v5416
        %5418 = vmatprep.subr.mxu0 0.0
        %v5419 = vand.u32 %v205, 4294901760
        %5420 = vmatpush1.msra.mxu0 %v5419
        %5421 = vmatprep.subr.mxu0 0.0
        %v5422 = vand.u32 %v204, 4294901760
        %5423 = vmatpush1.msra.mxu0 %v5422
        %5424 = vmatprep.subr.mxu0 0.0
        %v5425 = vand.u32 %v203, 4294901760
        %5426 = vmatpush1.msra.mxu0 %v5425
        %5427 = vmatprep.subr.mxu0 0.0
        %v5428 = vand.u32 %v202, 4294901760
        %5429 = vmatpush1.msra.mxu0 %v5428
        %5430 = vmatprep.subr.mxu0 0.0
        %5431 = vmatpush2.msra.mxu0 0.0
        %5432 = vmatprep.subr.mxu0 0.0
        %5433 = vmatpush2.msra.mxu0 0.0
        %5434 = vmatprep.subr.mxu0 0.0
        %5435 = vmatpush2.msra.mxu0 0.0
        %5436 = vmatprep.subr.mxu0 0.0
        %5437 = vmatpush2.msra.mxu0 0.0
        %5438 = vmatprep.subr.mxu0 0.0
        %5439 = vmatpush2.msra.mxu0 0.0
        %5440 = vmatprep.subr.mxu0 0.0
        %5441 = vmatpush2.msra.mxu0 0.0
        %5442 = vmatprep.subr.mxu0 0.0
        %5443 = vmatpush2.msra.mxu0 0.0
        %5444 = vmatprep.subr.mxu0 0.0
        %5445 = vmatpush2.msra.mxu0 0.0
        %5446 = vmatprep.subr.mxu0 0.0
        %5447 = vmatpush2.msra.mxu0 0.0
        %5448 = vmatprep.subr.mxu0 0.0
        %5449 = vmatpush2.msra.mxu0 0.0
        %5450 = vmatprep.subr.mxu0 0.0
        %5451 = vmatpush2.msra.mxu0 0.0
        %5452 = vmatprep.subr.mxu0 0.0
        %5453 = vmatpush2.msra.mxu0 0.0
        %5454 = vmatprep.subr.mxu0 0.0
        %5455 = vmatpush2.msra.mxu0 0.0
        %5456 = vmatprep.subr.mxu0 0.0
        %5457 = vmatpush2.msra.mxu0 0.0
        %5458 = vmatprep.subr.mxu0 0.0
        %5459 = vmatpush2.msra.mxu0 0.0
        %5460 = vmatprep.subr.mxu0 0.0
        %5461 = vmatpush2.msra.mxu0 0.0
        %5462 = vmatprep.mubr.f32.mxu0 0.0
        %v5463 = vand.u32 %v4826, 4294901760
        %5464 = vmatmul.mubr.f32.gmra.mxu0 %v5463
        %v5465 = vpop.f32.mrf.mxu0
        %v5466 = vadd.f32 %v5379, %v5465
        %v5467 = vpop.f32.mrf.mxu0
        %5468 = vdwg.mxu0
        %v5470 = vrot.slane %v5466, 1
        %v5473 = vadd.f32 %v4821, %v5466
        %v5474 = vadd.f32 %v4822, %v5470
        %v5475 = vtanh.pop %v5473
        %v5476 = vtanh.pop %v5474
        %5477 = vst [vmem:[%s194 + $0x7] sm:$0x1] %v5475
        %5478 = vst [vmem:[%s194 + $0xf] sm:$0x1] %v5476
        %v5481 = vrot.slane %v5476, 7
        %v5482 = vsel %vm877, %v5481, %v5475
        %5484 = vst [vmem:[#allocation2] sm:$0x3] %v5482
        %s5485 = sand.u32 %s91, 1
        %s5486 = scalar_lea.sflag [#allocation5], %s5485
        %s5487 = sand.u32 %s91, 1
        %s5488 = smul.addr %s5487, 16
        %s5489 = scalar_lea.vmem [#allocation8], %s5488
        // Predicated region
        $region41: #{tpu_custom_call.1} parent=27 // pred_check
          %p5490 = pneg %p101
        $region42: #{tpu_custom_call.1} parent=27 // pred_check_branch
          %5492 = sbr.rel (%p5490) target = $region44
        $region43: #{tpu_custom_call.1} parent=27 // pred_region
          %s5493 = smul.u32 2, %s24
          %s5495 = ssub.s32 256, 256
          %5496 = vsyncadd %s5486, %s5495
          %s5497 = smul.addr %s5493, 2
          %s5498 = sadd.s32 %s25, %s5497
          %s5499 = smul.addr %s5498, 128
          %s5500 = scalar_lea.hbm %s2, %s5499
          %s5501 = sshll.u32 %s5489, 4
          %s5502 = int_to_ptr.vmem [resolvable:$true] %s5501
          %5507 = dma.vmem_to_hbm [thread:$0]  %s5502, 256, %s5500, %s5486, 128, 256, 8
        $region44: #{tpu_custom_call.1} parent=27 // pred_fallthru
          _
      $region28: #{tpu_custom_call.1} parent=5 // pred_fallthru
        _
      %p5508 = scmp.le.s32.totalorder 2, %s15
      // Predicated region
      $region45: #{tpu_custom_call.1} parent=5 // pred_check
        %p5509 = pneg %p5508
      $region46: #{tpu_custom_call.1} parent=5 // pred_check_branch
        %5511 = sbr.rel (%p5509) target = $region48
      $region47: #{tpu_custom_call.1} parent=5 // pred_region
        %s5512 = ssub.s32 %s15, 2
        // Predicated region
        $region49: #{tpu_custom_call.1} parent=47 // pred_check
          %p5513 = pneg %p107
        $region50: #{tpu_custom_call.1} parent=47 // pred_check_branch
          %5515 = sbr.rel (%p5513) target = $region52
        $region51: #{tpu_custom_call.1} parent=47 // pred_region
          %s5516 = sand.u32 %s92, 1
          %s5517 = scalar_lea.sflag [#allocation5], %s5516
          %s5518 = sand.u32 %s92, 1
          %s5519 = smul.addr %s5518, 16
          %s5520 = scalar_lea.vmem [#allocation8], %s5519
          %5521 = dma.done %s5517, 256
        $region52: #{tpu_custom_call.1} parent=47 // pred_fallthru
          _
      $region48: #{tpu_custom_call.1} parent=5 // pred_fallthru
        _
    $region6: #{tpu_custom_call.1} parent=1 // loop_footer
      %s19 = sadd.s32 1, %s15
    $region7: #{tpu_custom_call.1} parent=1 // loop_footer_branch
      %14 = sbr.rel target = $region3
    $region8: #{tpu_custom_call.1} parent=1 // loop_exit
      _
    %5522 = vsyncpa [#allocation4], 1
    %s5523 = scalar_lea.sflag [#allocation4], 1
    %5524 = vsyncpa %s5523, 1
    %5525 = vsyncpa [#allocation7], 1
    %5526 = vsyncpa [#allocation5], 1
    %s5527 = scalar_lea.sflag [#allocation5], 1
    %5528 = vsyncpa %s5527, 1

</llo_original>
